<compile_context>
chip_gen: v5e
topology: v5e:2x2
jax: 0.10.0
libtpu: 0.0.40
codegen_flags: <defaults>
</compile_context>

<pallas_src>
import functools

import jax
import jax.numpy as jnp
from jax import lax
from jax.experimental import pallas as pl
from jax.experimental.pallas import tpu as pltpu


# ----------------------------- kernel -----------------------------

def _layernorm(x, w, b, eps=1e-12):
    # TF-style LayerNorm (biased variance, eps inside the sqrt) -- matches the module.
    u = jnp.mean(x, axis=-1, keepdims=True)
    c = x - u
    s = jnp.mean(c * c, axis=-1, keepdims=True)
    return w * (c * lax.rsqrt(s + eps)) + b


def fusion_kernel(x_ref, pos_ref,
                  ln1w_ref, ln1b_ref,
                  wqkv_ref, bqkv_ref,
                  wo_ref, bo_ref,
                  ln2w_ref, ln2b_ref,
                  wfc_ref, bfc_ref, wpj_ref, bpj_ref,
                  o_ref, *, layers, heads, qkv_stride):
    x0 = x_ref[0].astype(jnp.float32)            # (t, d) -- one batch element
    t, d = x0.shape
    hd = d // heads
    scale = 1.0 / (hd ** 0.5)

    h = x0 + pos_ref[...].astype(jnp.float32)    # x + frame_position_embeddings

    # TODO(synk): if a bundle dump ever shows vreg spills from this static unroll,
    # switch to lax.fori_loop over layers with dynamic ref[l] weight indexing.
    for l in range(layers):                      # static unroll over 6 layers
        # ---------------- self-attention sub-block ----------------
        hn = _layernorm(h, ln1w_ref[l], ln1b_ref[l])
        qkv = jnp.dot(hn.astype(jnp.bfloat16), wqkv_ref[l],
                      preferred_element_type=jnp.float32) + bqkv_ref[l]
        # 128-lane-strided fused QKV: slices start on vreg boundaries.
        q = qkv[:, 0:d] * scale                              # scale folded into q
        k = qkv[:, qkv_stride:qkv_stride + d]
        v = qkv[:, 2 * qkv_stride:2 * qkv_stride + d]

        if heads == 1:
            s = jnp.einsum('qe,ke->qk',
                           q.astype(jnp.bfloat16), k.astype(jnp.bfloat16),
                           preferred_element_type=jnp.float32)
            s = s - jnp.max(s, axis=-1, keepdims=True)
            p = jnp.exp(s)
            p = p / jnp.sum(p, axis=-1, keepdims=True)       # exact reciprocal
            ctx = jnp.dot(p.astype(jnp.bfloat16), v.astype(jnp.bfloat16),
                          preferred_element_type=jnp.float32)            # (t, d)
        else:
            qh = q.reshape(t, heads, hd).astype(jnp.bfloat16)
            kh = k.reshape(t, heads, hd).astype(jnp.bfloat16)
            vh = v.reshape(t, heads, hd).astype(jnp.bfloat16)
            s = jnp.einsum('qhe,khe->hqk', qh, kh,
                           preferred_element_type=jnp.float32)
            s = s - jnp.max(s, axis=-1, keepdims=True)
            p = jnp.exp(s)
            p = p / jnp.sum(p, axis=-1, keepdims=True)
            ctx = jnp.einsum('hqk,khe->qhe', p.astype(jnp.bfloat16), vh,
                             preferred_element_type=jnp.float32).reshape(t, d)

        h = h + jnp.dot(ctx.astype(jnp.bfloat16), wo_ref[l],
                        preferred_element_type=jnp.float32) + bo_ref[l]

        # ---------------------- MLP sub-block ----------------------
        hn2 = _layernorm(h, ln2w_ref[l], ln2b_ref[l])
        f = jnp.dot(hn2.astype(jnp.bfloat16), wfc_ref[l],
                    preferred_element_type=jnp.float32) + bfc_ref[l]      # (t, 4d)
        f = f * jax.nn.sigmoid(1.702 * f)                                 # QuickGELU
        h = h + jnp.dot(f.astype(jnp.bfloat16), wpj_ref[l],
                        preferred_element_type=jnp.float32) + bpj_ref[l]  # (t, d)

    # residual with the pre-pos-emb input, temporal mean folded as sum * 1/T
    out = jnp.sum(h + x0, axis=0, keepdims=True) * (1.0 / t)              # (1, d)
    o_ref[0] = out.astype(o_ref.dtype)


# ----------------------------- wrapper -----------------------------

def fusion_forward(x, params, *, heads, layers):
    b, t, d = x.shape
    qkv_stride = params['wqkv'].shape[-1] // 3
    kernel = functools.partial(fusion_kernel, layers=layers, heads=heads,
                               qkv_stride=qkv_stride)
    args = (
        x, params['pos'][:t],
        params['ln1w'], params['ln1b'],
        params['wqkv'], params['bqkv'],
        params['wo'], params['bo'],
        params['ln2w'], params['ln2b'],
        params['wfc'], params['bfc'], params['wpj'], params['bpj'],
    )

    def whole(a):
        zeros = (0,) * a.ndim
        return pl.BlockSpec(a.shape, lambda i, _z=zeros: _z)  # weights resident in VMEM

    in_specs = [pl.BlockSpec((1, t, d), lambda i: (i, 0, 0))]
    in_specs += [whole(a) for a in args[1:]]

    # Advisory cost estimate (latency-bound custom call inside larger jits).
    hd = d // heads
    flops = b * layers * (2 * t * d * 3 * qkv_stride      # fused qkv
                          + 4 * heads * t * t * hd        # scores + context
                          + 2 * t * d * d                 # out proj
                          + 4 * 2 * t * d * d)            # fc + proj
    transcendentals = b * layers * (heads * t * t + t * 4 * d + 2 * t)
    bytes_accessed = sum(int(a.size) * a.dtype.itemsize for a in args) \
                     + b * d * x.dtype.itemsize

    out = pl.pallas_call(
        kernel,
        grid=(b,),
        out_shape=jax.ShapeDtypeStruct((b, 1, d), x.dtype),
        in_specs=in_specs,
        out_specs=pl.BlockSpec((1, 1, d), lambda i: (i, 0, 0)),
        compiler_params=pltpu.CompilerParams(
            dimension_semantics=("parallel",),
            vmem_limit_bytes=16 << 20,
        ),
        cost_estimate=pl.CostEstimate(flops=int(flops),
                                      transcendentals=int(transcendentals),
                                      bytes_accessed=int(bytes_accessed)),
    )(*args)
    return out[:, 0, :]


# -------------------- deterministic parameter init --------------------
# Weights are stored pre-transposed as (layers, in_dim, out_dim) and in bf16 at rest;
# q/k/v are fused into one (layers, d, 3*stride) weight with a 128-lane stride.
# Biases / LayerNorm params are flat (layers, dim) f32.

def make_params(key, T, d, layers):
    ks = jax.random.split(key, 13)
    n = lambda k, shape, s: jax.random.normal(k, shape, jnp.float32) * s
    stride = max(128, -(-d // 128) * 128)      # 128-lane-aligned q/k/v stride

    wq = n(ks[1], (layers, d, d), d ** -0.5)
    wk = n(ks[3], (layers, d, d), d ** -0.5)
    wv = n(ks[5], (layers, d, d), d ** -0.5)
    bq = n(ks[2], (layers, d), 0.02)
    bk = n(ks[4], (layers, d), 0.02)
    bv = n(ks[6], (layers, d), 0.02)

    wqkv = jnp.zeros((layers, d, 3 * stride), jnp.float32)
    wqkv = wqkv.at[:, :, 0:d].set(wq)
    wqkv = wqkv.at[:, :, stride:stride + d].set(wk)
    wqkv = wqkv.at[:, :, 2 * stride:2 * stride + d].set(wv)
    bqkv = jnp.zeros((layers, 3 * stride), jnp.float32)
    bqkv = bqkv.at[:, 0:d].set(bq)
    bqkv = bqkv.at[:, stride:stride + d].set(bk)
    bqkv = bqkv.at[:, 2 * stride:2 * stride + d].set(bv)

    return dict(
        pos=n(ks[0], (T, d), 0.02),                        # nn.Embedding(T, d) table
        ln1w=jnp.ones((layers, d), jnp.float32),
        ln1b=jnp.zeros((layers, d), jnp.float32),
        wqkv=wqkv.astype(jnp.bfloat16),                    # fused in_proj.weight^T (padded)
        bqkv=bqkv,
        wo=n(ks[7], (layers, d, d), d ** -0.5).astype(jnp.bfloat16),   # out_proj.weight^T
        bo=n(ks[8], (layers, d), 0.02),
        ln2w=jnp.ones((layers, d), jnp.float32),
        ln2b=jnp.zeros((layers, d), jnp.float32),
        wfc=n(ks[9], (layers, d, 4 * d), d ** -0.5).astype(jnp.bfloat16),      # c_fc^T
        bfc=n(ks[10], (layers, 4 * d), 0.02),
        wpj=n(ks[11], (layers, 4 * d, d), (4 * d) ** -0.5).astype(jnp.bfloat16),  # c_proj^T
        bpj=n(ks[12], (layers, d), 0.02),
    )


# ----------------------- pure-JAX reference -----------------------
# Mirrors the kernel's mixed-precision policy (bf16 matmul operands, f32 accumulate,
# f32 everywhere else) so the comparison isolates kernel bugs, not dtype policy.

def fusion_ref(x, params, *, heads, layers):
    b, t, d = x.shape
    hd = d // heads
    scale = hd ** -0.5
    stride = params['wqkv'].shape[-1] // 3
    bf16 = jnp.bfloat16

    def ln(v, w, bb):
        u = v.mean(-1, keepdims=True)
        c = v - u
        s = (c * c).mean(-1, keepdims=True)
        return w * (c * lax.rsqrt(s + 1e-12)) + bb

    x0 = x.astype(jnp.float32)
    h = x0 + params['pos'][:t][None]
    for l in range(layers):
        hn = ln(h, params['ln1w'][l], params['ln1b'][l])
        qkv = jnp.einsum('btd,de->bte', hn.astype(bf16), params['wqkv'][l],
                         preferred_element_type=jnp.float32) + params['bqkv'][l]
        q = qkv[..., 0:d] * scale
        k = qkv[..., stride:stride + d]
        v = qkv[..., 2 * stride:2 * stride + d]
        q = q.reshape(b, t, heads, hd).astype(bf16)
        k = k.reshape(b, t, heads, hd).astype(bf16)
        v = v.reshape(b, t, heads, hd).astype(bf16)
        s = jnp.einsum('bqhe,bkhe->bhqk', q, k,
                       preferred_element_type=jnp.float32)
        s = s - jnp.max(s, axis=-1, keepdims=True)
        p = jnp.exp(s)
        p = p / jnp.sum(p, axis=-1, keepdims=True)
        ctx = jnp.einsum('bhqk,bkhe->bqhe', p.astype(bf16), v,
                         preferred_element_type=jnp.float32).reshape(b, t, d)
        h = h + jnp.einsum('btd,de->bte', ctx.astype(bf16), params['wo'][l],
                           preferred_element_type=jnp.float32) + params['bo'][l]
        hn2 = ln(h, params['ln2w'][l], params['ln2b'][l])
        f = jnp.einsum('btd,de->bte', hn2.astype(bf16), params['wfc'][l],
                       preferred_element_type=jnp.float32) + params['bfc'][l]
        f = f * jax.nn.sigmoid(1.702 * f)
        h = h + jnp.einsum('btd,de->bte', f.astype(bf16), params['wpj'][l],
                           preferred_element_type=jnp.float32) + params['bpj'][l]
    return jnp.mean(h + x0, axis=1).astype(x.dtype)


# ------------------------------ main ------------------------------

if __name__ == "__main__":
    # Fusion(T=8, emb_dim=64) -> heads = 64 // 64 = 1, 6 transformer layers.
    B, T, D = 2, 8, 64
    LAYERS = 6
    HEADS = max(D // 64, 1)

    key = jax.random.PRNGKey(0)
    kx, kp = jax.random.split(key)
    x = jax.random.normal(kx, (B, T, D), jnp.float32)
    params = make_params(kp, T, D, LAYERS)

    out = jax.block_until_ready(fusion_forward(x, params, heads=HEADS, layers=LAYERS))
    assert out.shape == (B, D), out.shape

    ref = jax.block_until_ready(fusion_ref(x, params, heads=HEADS, layers=LAYERS))
    err = float(jnp.max(jnp.abs(out - ref)))
    assert jnp.allclose(out, ref, atol=2e-3, rtol=2e-3), err

    print("KERNEL_OK")
</pallas_src>

<mosaic_0001>
module attributes {stable_mosaic.version = 11 : i64} {
  func.func @fusion_kernel(%arg0: i32, %arg1: memref<1x8x64xf32, #tpu.memory_space<vmem>>, %arg2: memref<8x64xf32, #tpu.memory_space<vmem>>, %arg3: memref<6x64xf32, #tpu.memory_space<vmem>>, %arg4: memref<6x64xf32, #tpu.memory_space<vmem>>, %arg5: memref<6x64x384xbf16, #tpu.memory_space<vmem>>, %arg6: memref<6x384xf32, #tpu.memory_space<vmem>>, %arg7: memref<6x64x64xbf16, #tpu.memory_space<vmem>>, %arg8: memref<6x64xf32, #tpu.memory_space<vmem>>, %arg9: memref<6x64xf32, #tpu.memory_space<vmem>>, %arg10: memref<6x64xf32, #tpu.memory_space<vmem>>, %arg11: memref<6x64x256xbf16, #tpu.memory_space<vmem>>, %arg12: memref<6x256xf32, #tpu.memory_space<vmem>>, %arg13: memref<6x256x64xbf16, #tpu.memory_space<vmem>>, %arg14: memref<6x64xf32, #tpu.memory_space<vmem>>, %arg15: memref<1x1x64xf32, #tpu.memory_space<vmem>>) attributes {dimension_semantics = [#tpu.dimension_semantics<parallel>], iteration_bounds = array<i64: 2>, scalar_prefetch = 0 : i64, scratch_operands = 0 : i64, tpu.core_type = #tpu.core_type<tc>, window_params = [{transform_indices = @transform_0, window_bounds = array<i64: 1, 8, 64>}, {pipeline_mode = #tpu.pipeline_mode<synchronous>, transform_indices = @transform_1, window_bounds = array<i64: 8, 64>}, {pipeline_mode = #tpu.pipeline_mode<synchronous>, transform_indices = @transform_2, window_bounds = array<i64: 6, 64>}, {pipeline_mode = #tpu.pipeline_mode<synchronous>, transform_indices = @transform_3, window_bounds = array<i64: 6, 64>}, {pipeline_mode = #tpu.pipeline_mode<synchronous>, transform_indices = @transform_4, window_bounds = array<i64: 6, 64, 384>}, {pipeline_mode = #tpu.pipeline_mode<synchronous>, transform_indices = @transform_5, window_bounds = array<i64: 6, 384>}, {pipeline_mode = #tpu.pipeline_mode<synchronous>, transform_indices = @transform_6, window_bounds = array<i64: 6, 64, 64>}, {pipeline_mode = #tpu.pipeline_mode<synchronous>, transform_indices = @transform_7, window_bounds = array<i64: 6, 64>}, {pipeline_mode = #tpu.pipeline_mode<synchronous>, transform_indices = @transform_8, window_bounds = array<i64: 6, 64>}, {pipeline_mode = #tpu.pipeline_mode<synchronous>, transform_indices = @transform_9, window_bounds = array<i64: 6, 64>}, {pipeline_mode = #tpu.pipeline_mode<synchronous>, transform_indices = @transform_10, window_bounds = array<i64: 6, 64, 256>}, {pipeline_mode = #tpu.pipeline_mode<synchronous>, transform_indices = @transform_11, window_bounds = array<i64: 6, 256>}, {pipeline_mode = #tpu.pipeline_mode<synchronous>, transform_indices = @transform_12, window_bounds = array<i64: 6, 256, 64>}, {pipeline_mode = #tpu.pipeline_mode<synchronous>, transform_indices = @transform_13, window_bounds = array<i64: 6, 64>}, {transform_indices = @transform_14, window_bounds = array<i64: 1, 1, 64>}]} {
    %c0 = arith.constant 0 : index
    %c0_0 = arith.constant 0 : index
    %c0_1 = arith.constant 0 : index
    %0 = vector.load %arg1[%c0, %c0_0, %c0_1] : memref<1x8x64xf32, #tpu.memory_space<vmem>>, vector<1x8x64xf32>
    %1 = vector.shape_cast %0 : vector<1x8x64xf32> to vector<8x64xf32>
    %c0_2 = arith.constant 0 : index
    %c0_3 = arith.constant 0 : index
    %2 = vector.load %arg2[%c0_2, %c0_3] : memref<8x64xf32, #tpu.memory_space<vmem>>, vector<8x64xf32>
    %3 = arith.addf %1, %2 : vector<8x64xf32>
    %c0_4 = arith.constant 0 : index
    %c0_5 = arith.constant 0 : index
    %4 = vector.load %arg3[%c0_4, %c0_5] : memref<6x64xf32, #tpu.memory_space<vmem>>, vector<1x64xf32>
    %5 = vector.shape_cast %4 : vector<1x64xf32> to vector<64xf32>
    %c0_6 = arith.constant 0 : index
    %c0_7 = arith.constant 0 : index
    %6 = vector.load %arg4[%c0_6, %c0_7] : memref<6x64xf32, #tpu.memory_space<vmem>>, vector<1x64xf32>
    %7 = vector.shape_cast %6 : vector<1x64xf32> to vector<64xf32>
    %cst = arith.constant dense<0.000000e+00> : vector<8xf32>
    %8 = vector.multi_reduction <add>, %3, %cst [1] : vector<8x64xf32> to vector<8xf32>
    %9 = vector.shape_cast %8 : vector<8xf32> to vector<8x1xf32>
    %cst_8 = arith.constant 6.400000e+01 : f32
    %10 = vector.broadcast %cst_8 : f32 to vector<8x1xf32>
    %11 = arith.divf %9, %10 : vector<8x1xf32>
    %12 = vector.broadcast %11 : vector<8x1xf32> to vector<8x64xf32>
    %13 = arith.subf %3, %12 : vector<8x64xf32>
    %14 = arith.mulf %13, %13 : vector<8x64xf32>
    %cst_9 = arith.constant dense<0.000000e+00> : vector<8xf32>
    %15 = vector.multi_reduction <add>, %14, %cst_9 [1] : vector<8x64xf32> to vector<8xf32>
    %16 = vector.shape_cast %15 : vector<8xf32> to vector<8x1xf32>
    %cst_10 = arith.constant 6.400000e+01 : f32
    %17 = vector.broadcast %cst_10 : f32 to vector<8x1xf32>
    %18 = arith.divf %16, %17 : vector<8x1xf32>
    %cst_11 = arith.constant 9.99999996E-13 : f32
    %19 = vector.broadcast %cst_11 : f32 to vector<8x1xf32>
    %20 = arith.addf %18, %19 : vector<8x1xf32>
    %21 = math.rsqrt %20 : vector<8x1xf32>
    %22 = vector.broadcast %21 : vector<8x1xf32> to vector<8x64xf32>
    %23 = arith.mulf %13, %22 : vector<8x64xf32>
    %24 = vector.shape_cast %5 : vector<64xf32> to vector<1x64xf32>
    %25 = vector.broadcast %24 : vector<1x64xf32> to vector<8x64xf32>
    %26 = arith.mulf %25, %23 : vector<8x64xf32>
    %27 = vector.shape_cast %7 : vector<64xf32> to vector<1x64xf32>
    %28 = vector.broadcast %27 : vector<1x64xf32> to vector<8x64xf32>
    %29 = arith.addf %26, %28 : vector<8x64xf32>
    %30 = arith.truncf %29 : vector<8x64xf32> to vector<8x64xbf16>
    %c0_12 = arith.constant 0 : index
    %c0_13 = arith.constant 0 : index
    %c0_14 = arith.constant 0 : index
    %31 = vector.load %arg5[%c0_12, %c0_13, %c0_14] : memref<6x64x384xbf16, #tpu.memory_space<vmem>>, vector<1x64x384xbf16>
    %32 = vector.shape_cast %31 : vector<1x64x384xbf16> to vector<64x384xbf16>
    %cst_15 = arith.constant dense<0.000000e+00> : vector<8x384xf32>
    %33 = tpu.matmul %30, %32, %cst_15 {dimension_numbers = #tpu.dot_dimension_numbers<[1], [0], [0], [1], [0, 0, 1, 1], [], []>} : vector<8x64xbf16>, vector<64x384xbf16>, vector<8x384xf32> -> vector<8x384xf32>
    %c0_16 = arith.constant 0 : index
    %c0_17 = arith.constant 0 : index
    %34 = vector.load %arg6[%c0_16, %c0_17] : memref<6x384xf32, #tpu.memory_space<vmem>>, vector<1x384xf32>
    %35 = vector.shape_cast %34 : vector<1x384xf32> to vector<384xf32>
    %36 = vector.shape_cast %35 : vector<384xf32> to vector<1x384xf32>
    %37 = vector.broadcast %36 : vector<1x384xf32> to vector<8x384xf32>
    %38 = arith.addf %33, %37 : vector<8x384xf32>
    %39 = vector.extract_strided_slice %38 {offsets = [0, 0], sizes = [8, 64], strides = [1, 1]} : vector<8x384xf32> to vector<8x64xf32>
    %cst_18 = arith.constant 1.250000e-01 : f32
    %40 = vector.broadcast %cst_18 : f32 to vector<8x64xf32>
    %41 = arith.mulf %39, %40 : vector<8x64xf32>
    %42 = vector.extract_strided_slice %38 {offsets = [0, 128], sizes = [8, 64], strides = [1, 1]} : vector<8x384xf32> to vector<8x64xf32>
    %43 = vector.extract_strided_slice %38 {offsets = [0, 256], sizes = [8, 64], strides = [1, 1]} : vector<8x384xf32> to vector<8x64xf32>
    %44 = arith.truncf %41 : vector<8x64xf32> to vector<8x64xbf16>
    %45 = arith.truncf %42 : vector<8x64xf32> to vector<8x64xbf16>
    "tpu.trace_start"() <{level = 10 : i32, message = "qe,ke->qk"}> : () -> ()
    %cst_19 = arith.constant dense<0.000000e+00> : vector<8x8xf32>
    %46 = tpu.matmul %44, %45, %cst_19 {dimension_numbers = #tpu.dot_dimension_numbers<[1], [1], [0], [0], [0, 0, 1, 0], [], []>} : vector<8x64xbf16>, vector<8x64xbf16>, vector<8x8xf32> -> vector<8x8xf32>
    "tpu.trace_stop"() : () -> ()
    %cst_20 = arith.constant dense<0xFF800000> : vector<8xf32>
    %47 = vector.multi_reduction <maximumf>, %46, %cst_20 [1] : vector<8x8xf32> to vector<8xf32>
    %48 = vector.shape_cast %47 : vector<8xf32> to vector<8x1xf32>
    %49 = vector.broadcast %48 : vector<8x1xf32> to vector<8x8xf32>
    %50 = arith.subf %46, %49 : vector<8x8xf32>
    %51 = math.exp %50 : vector<8x8xf32>
    %cst_21 = arith.constant dense<0.000000e+00> : vector<8xf32>
    %52 = vector.multi_reduction <add>, %51, %cst_21 [1] : vector<8x8xf32> to vector<8xf32>
    %53 = vector.shape_cast %52 : vector<8xf32> to vector<8x1xf32>
    %54 = vector.broadcast %53 : vector<8x1xf32> to vector<8x8xf32>
    %55 = arith.divf %51, %54 : vector<8x8xf32>
    %56 = arith.truncf %55 : vector<8x8xf32> to vector<8x8xbf16>
    %57 = arith.truncf %43 : vector<8x64xf32> to vector<8x64xbf16>
    %cst_22 = arith.constant dense<0.000000e+00> : vector<8x64xf32>
    %58 = tpu.matmul %56, %57, %cst_22 {dimension_numbers = #tpu.dot_dimension_numbers<[1], [0], [0], [1], [0, 0, 1, 1], [], []>} : vector<8x8xbf16>, vector<8x64xbf16>, vector<8x64xf32> -> vector<8x64xf32>
    %59 = arith.truncf %58 : vector<8x64xf32> to vector<8x64xbf16>
    %c0_23 = arith.constant 0 : index
    %c0_24 = arith.constant 0 : index
    %c0_25 = arith.constant 0 : index
    %60 = vector.load %arg7[%c0_23, %c0_24, %c0_25] : memref<6x64x64xbf16, #tpu.memory_space<vmem>>, vector<1x64x64xbf16>
    %61 = vector.shape_cast %60 : vector<1x64x64xbf16> to vector<64x64xbf16>
    %cst_26 = arith.constant dense<0.000000e+00> : vector<8x64xf32>
    %62 = tpu.matmul %59, %61, %cst_26 {dimension_numbers = #tpu.dot_dimension_numbers<[1], [0], [0], [1], [0, 0, 1, 1], [], []>} : vector<8x64xbf16>, vector<64x64xbf16>, vector<8x64xf32> -> vector<8x64xf32>
    %63 = arith.addf %3, %62 : vector<8x64xf32>
    %c0_27 = arith.constant 0 : index
    %c0_28 = arith.constant 0 : index
    %64 = vector.load %arg8[%c0_27, %c0_28] : memref<6x64xf32, #tpu.memory_space<vmem>>, vector<1x64xf32>
    %65 = vector.shape_cast %64 : vector<1x64xf32> to vector<64xf32>
    %66 = vector.shape_cast %65 : vector<64xf32> to vector<1x64xf32>
    %67 = vector.broadcast %66 : vector<1x64xf32> to vector<8x64xf32>
    %68 = arith.addf %63, %67 : vector<8x64xf32>
    %c0_29 = arith.constant 0 : index
    %c0_30 = arith.constant 0 : index
    %69 = vector.load %arg9[%c0_29, %c0_30] : memref<6x64xf32, #tpu.memory_space<vmem>>, vector<1x64xf32>
    %70 = vector.shape_cast %69 : vector<1x64xf32> to vector<64xf32>
    %c0_31 = arith.constant 0 : index
    %c0_32 = arith.constant 0 : index
    %71 = vector.load %arg10[%c0_31, %c0_32] : memref<6x64xf32, #tpu.memory_space<vmem>>, vector<1x64xf32>
    %72 = vector.shape_cast %71 : vector<1x64xf32> to vector<64xf32>
    %cst_33 = arith.constant dense<0.000000e+00> : vector<8xf32>
    %73 = vector.multi_reduction <add>, %68, %cst_33 [1] : vector<8x64xf32> to vector<8xf32>
    %74 = vector.shape_cast %73 : vector<8xf32> to vector<8x1xf32>
    %cst_34 = arith.constant 6.400000e+01 : f32
    %75 = vector.broadcast %cst_34 : f32 to vector<8x1xf32>
    %76 = arith.divf %74, %75 : vector<8x1xf32>
    %77 = vector.broadcast %76 : vector<8x1xf32> to vector<8x64xf32>
    %78 = arith.subf %68, %77 : vector<8x64xf32>
    %79 = arith.mulf %78, %78 : vector<8x64xf32>
    %cst_35 = arith.constant dense<0.000000e+00> : vector<8xf32>
    %80 = vector.multi_reduction <add>, %79, %cst_35 [1] : vector<8x64xf32> to vector<8xf32>
    %81 = vector.shape_cast %80 : vector<8xf32> to vector<8x1xf32>
    %cst_36 = arith.constant 6.400000e+01 : f32
    %82 = vector.broadcast %cst_36 : f32 to vector<8x1xf32>
    %83 = arith.divf %81, %82 : vector<8x1xf32>
    %cst_37 = arith.constant 9.99999996E-13 : f32
    %84 = vector.broadcast %cst_37 : f32 to vector<8x1xf32>
    %85 = arith.addf %83, %84 : vector<8x1xf32>
    %86 = math.rsqrt %85 : vector<8x1xf32>
    %87 = vector.broadcast %86 : vector<8x1xf32> to vector<8x64xf32>
    %88 = arith.mulf %78, %87 : vector<8x64xf32>
    %89 = vector.shape_cast %70 : vector<64xf32> to vector<1x64xf32>
    %90 = vector.broadcast %89 : vector<1x64xf32> to vector<8x64xf32>
    %91 = arith.mulf %90, %88 : vector<8x64xf32>
    %92 = vector.shape_cast %72 : vector<64xf32> to vector<1x64xf32>
    %93 = vector.broadcast %92 : vector<1x64xf32> to vector<8x64xf32>
    %94 = arith.addf %91, %93 : vector<8x64xf32>
    %95 = arith.truncf %94 : vector<8x64xf32> to vector<8x64xbf16>
    %c0_38 = arith.constant 0 : index
    %c0_39 = arith.constant 0 : index
    %c0_40 = arith.constant 0 : index
    %96 = vector.load %arg11[%c0_38, %c0_39, %c0_40] : memref<6x64x256xbf16, #tpu.memory_space<vmem>>, vector<1x64x256xbf16>
    %97 = vector.shape_cast %96 : vector<1x64x256xbf16> to vector<64x256xbf16>
    %cst_41 = arith.constant dense<0.000000e+00> : vector<8x256xf32>
    %98 = tpu.matmul %95, %97, %cst_41 {dimension_numbers = #tpu.dot_dimension_numbers<[1], [0], [0], [1], [0, 0, 1, 1], [], []>} : vector<8x64xbf16>, vector<64x256xbf16>, vector<8x256xf32> -> vector<8x256xf32>
    %c0_42 = arith.constant 0 : index
    %c0_43 = arith.constant 0 : index
    %99 = vector.load %arg12[%c0_42, %c0_43] : memref<6x256xf32, #tpu.memory_space<vmem>>, vector<1x256xf32>
    %100 = vector.shape_cast %99 : vector<1x256xf32> to vector<256xf32>
    %101 = vector.shape_cast %100 : vector<256xf32> to vector<1x256xf32>
    %102 = vector.broadcast %101 : vector<1x256xf32> to vector<8x256xf32>
    %103 = arith.addf %98, %102 : vector<8x256xf32>
    %cst_44 = arith.constant 1.702000e+00 : f32
    %104 = vector.broadcast %cst_44 : f32 to vector<8x256xf32>
    %105 = arith.mulf %104, %103 : vector<8x256xf32>
    %106 = arith.negf %105 : vector<8x256xf32>
    %107 = math.exp %106 : vector<8x256xf32>
    %cst_45 = arith.constant 1.000000e+00 : f32
    %108 = vector.broadcast %cst_45 : f32 to vector<8x256xf32>
    %109 = arith.addf %108, %107 : vector<8x256xf32>
    %110 = arith.divf %108, %109 : vector<8x256xf32>
    %111 = arith.mulf %103, %110 : vector<8x256xf32>
    %112 = arith.truncf %111 : vector<8x256xf32> to vector<8x256xbf16>
    %c0_46 = arith.constant 0 : index
    %c0_47 = arith.constant 0 : index
    %c0_48 = arith.constant 0 : index
    %113 = vector.load %arg13[%c0_46, %c0_47, %c0_48] : memref<6x256x64xbf16, #tpu.memory_space<vmem>>, vector<1x256x64xbf16>
    %114 = vector.shape_cast %113 : vector<1x256x64xbf16> to vector<256x64xbf16>
    %cst_49 = arith.constant dense<0.000000e+00> : vector<8x64xf32>
    %115 = tpu.matmul %112, %114, %cst_49 {dimension_numbers = #tpu.dot_dimension_numbers<[1], [0], [0], [1], [0, 0, 1, 1], [], []>} : vector<8x256xbf16>, vector<256x64xbf16>, vector<8x64xf32> -> vector<8x64xf32>
    %116 = arith.addf %68, %115 : vector<8x64xf32>
    %c0_50 = arith.constant 0 : index
    %c0_51 = arith.constant 0 : index
    %117 = vector.load %arg14[%c0_50, %c0_51] : memref<6x64xf32, #tpu.memory_space<vmem>>, vector<1x64xf32>
    %118 = vector.shape_cast %117 : vector<1x64xf32> to vector<64xf32>
    %119 = vector.shape_cast %118 : vector<64xf32> to vector<1x64xf32>
    %120 = vector.broadcast %119 : vector<1x64xf32> to vector<8x64xf32>
    %121 = arith.addf %116, %120 : vector<8x64xf32>
    %c1 = arith.constant 1 : index
    %c0_52 = arith.constant 0 : index
    %122 = vector.load %arg3[%c1, %c0_52] : memref<6x64xf32, #tpu.memory_space<vmem>>, vector<1x64xf32>
    %123 = vector.shape_cast %122 : vector<1x64xf32> to vector<64xf32>
    %c1_53 = arith.constant 1 : index
    %c0_54 = arith.constant 0 : index
    %124 = vector.load %arg4[%c1_53, %c0_54] : memref<6x64xf32, #tpu.memory_space<vmem>>, vector<1x64xf32>
    %125 = vector.shape_cast %124 : vector<1x64xf32> to vector<64xf32>
    %cst_55 = arith.constant dense<0.000000e+00> : vector<8xf32>
    %126 = vector.multi_reduction <add>, %121, %cst_55 [1] : vector<8x64xf32> to vector<8xf32>
    %127 = vector.shape_cast %126 : vector<8xf32> to vector<8x1xf32>
    %cst_56 = arith.constant 6.400000e+01 : f32
    %128 = vector.broadcast %cst_56 : f32 to vector<8x1xf32>
    %129 = arith.divf %127, %128 : vector<8x1xf32>
    %130 = vector.broadcast %129 : vector<8x1xf32> to vector<8x64xf32>
    %131 = arith.subf %121, %130 : vector<8x64xf32>
    %132 = arith.mulf %131, %131 : vector<8x64xf32>
    %cst_57 = arith.constant dense<0.000000e+00> : vector<8xf32>
    %133 = vector.multi_reduction <add>, %132, %cst_57 [1] : vector<8x64xf32> to vector<8xf32>
    %134 = vector.shape_cast %133 : vector<8xf32> to vector<8x1xf32>
    %cst_58 = arith.constant 6.400000e+01 : f32
    %135 = vector.broadcast %cst_58 : f32 to vector<8x1xf32>
    %136 = arith.divf %134, %135 : vector<8x1xf32>
    %cst_59 = arith.constant 9.99999996E-13 : f32
    %137 = vector.broadcast %cst_59 : f32 to vector<8x1xf32>
    %138 = arith.addf %136, %137 : vector<8x1xf32>
    %139 = math.rsqrt %138 : vector<8x1xf32>
    %140 = vector.broadcast %139 : vector<8x1xf32> to vector<8x64xf32>
    %141 = arith.mulf %131, %140 : vector<8x64xf32>
    %142 = vector.shape_cast %123 : vector<64xf32> to vector<1x64xf32>
    %143 = vector.broadcast %142 : vector<1x64xf32> to vector<8x64xf32>
    %144 = arith.mulf %143, %141 : vector<8x64xf32>
    %145 = vector.shape_cast %125 : vector<64xf32> to vector<1x64xf32>
    %146 = vector.broadcast %145 : vector<1x64xf32> to vector<8x64xf32>
    %147 = arith.addf %144, %146 : vector<8x64xf32>
    %148 = arith.truncf %147 : vector<8x64xf32> to vector<8x64xbf16>
    %c1_60 = arith.constant 1 : index
    %c0_61 = arith.constant 0 : index
    %c0_62 = arith.constant 0 : index
    %149 = vector.load %arg5[%c1_60, %c0_61, %c0_62] : memref<6x64x384xbf16, #tpu.memory_space<vmem>>, vector<1x64x384xbf16>
    %150 = vector.shape_cast %149 : vector<1x64x384xbf16> to vector<64x384xbf16>
    %cst_63 = arith.constant dense<0.000000e+00> : vector<8x384xf32>
    %151 = tpu.matmul %148, %150, %cst_63 {dimension_numbers = #tpu.dot_dimension_numbers<[1], [0], [0], [1], [0, 0, 1, 1], [], []>} : vector<8x64xbf16>, vector<64x384xbf16>, vector<8x384xf32> -> vector<8x384xf32>
    %c1_64 = arith.constant 1 : index
    %c0_65 = arith.constant 0 : index
    %152 = vector.load %arg6[%c1_64, %c0_65] : memref<6x384xf32, #tpu.memory_space<vmem>>, vector<1x384xf32>
    %153 = vector.shape_cast %152 : vector<1x384xf32> to vector<384xf32>
    %154 = vector.shape_cast %153 : vector<384xf32> to vector<1x384xf32>
    %155 = vector.broadcast %154 : vector<1x384xf32> to vector<8x384xf32>
    %156 = arith.addf %151, %155 : vector<8x384xf32>
    %157 = vector.extract_strided_slice %156 {offsets = [0, 0], sizes = [8, 64], strides = [1, 1]} : vector<8x384xf32> to vector<8x64xf32>
    %cst_66 = arith.constant 1.250000e-01 : f32
    %158 = vector.broadcast %cst_66 : f32 to vector<8x64xf32>
    %159 = arith.mulf %157, %158 : vector<8x64xf32>
    %160 = vector.extract_strided_slice %156 {offsets = [0, 128], sizes = [8, 64], strides = [1, 1]} : vector<8x384xf32> to vector<8x64xf32>
    %161 = vector.extract_strided_slice %156 {offsets = [0, 256], sizes = [8, 64], strides = [1, 1]} : vector<8x384xf32> to vector<8x64xf32>
    %162 = arith.truncf %159 : vector<8x64xf32> to vector<8x64xbf16>
    %163 = arith.truncf %160 : vector<8x64xf32> to vector<8x64xbf16>
    "tpu.trace_start"() <{level = 10 : i32, message = "qe,ke->qk"}> : () -> ()
    %cst_67 = arith.constant dense<0.000000e+00> : vector<8x8xf32>
    %164 = tpu.matmul %162, %163, %cst_67 {dimension_numbers = #tpu.dot_dimension_numbers<[1], [1], [0], [0], [0, 0, 1, 0], [], []>} : vector<8x64xbf16>, vector<8x64xbf16>, vector<8x8xf32> -> vector<8x8xf32>
    "tpu.trace_stop"() : () -> ()
    %cst_68 = arith.constant dense<0xFF800000> : vector<8xf32>
    %165 = vector.multi_reduction <maximumf>, %164, %cst_68 [1] : vector<8x8xf32> to vector<8xf32>
    %166 = vector.shape_cast %165 : vector<8xf32> to vector<8x1xf32>
    %167 = vector.broadcast %166 : vector<8x1xf32> to vector<8x8xf32>
    %168 = arith.subf %164, %167 : vector<8x8xf32>
    %169 = math.exp %168 : vector<8x8xf32>
    %cst_69 = arith.constant dense<0.000000e+00> : vector<8xf32>
    %170 = vector.multi_reduction <add>, %169, %cst_69 [1] : vector<8x8xf32> to vector<8xf32>
    %171 = vector.shape_cast %170 : vector<8xf32> to vector<8x1xf32>
    %172 = vector.broadcast %171 : vector<8x1xf32> to vector<8x8xf32>
    %173 = arith.divf %169, %172 : vector<8x8xf32>
    %174 = arith.truncf %173 : vector<8x8xf32> to vector<8x8xbf16>
    %175 = arith.truncf %161 : vector<8x64xf32> to vector<8x64xbf16>
    %cst_70 = arith.constant dense<0.000000e+00> : vector<8x64xf32>
    %176 = tpu.matmul %174, %175, %cst_70 {dimension_numbers = #tpu.dot_dimension_numbers<[1], [0], [0], [1], [0, 0, 1, 1], [], []>} : vector<8x8xbf16>, vector<8x64xbf16>, vector<8x64xf32> -> vector<8x64xf32>
    %177 = arith.truncf %176 : vector<8x64xf32> to vector<8x64xbf16>
    %c1_71 = arith.constant 1 : index
    %c0_72 = arith.constant 0 : index
    %c0_73 = arith.constant 0 : index
    %178 = vector.load %arg7[%c1_71, %c0_72, %c0_73] : memref<6x64x64xbf16, #tpu.memory_space<vmem>>, vector<1x64x64xbf16>
    %179 = vector.shape_cast %178 : vector<1x64x64xbf16> to vector<64x64xbf16>
    %cst_74 = arith.constant dense<0.000000e+00> : vector<8x64xf32>
    %180 = tpu.matmul %177, %179, %cst_74 {dimension_numbers = #tpu.dot_dimension_numbers<[1], [0], [0], [1], [0, 0, 1, 1], [], []>} : vector<8x64xbf16>, vector<64x64xbf16>, vector<8x64xf32> -> vector<8x64xf32>
    %181 = arith.addf %121, %180 : vector<8x64xf32>
    %c1_75 = arith.constant 1 : index
    %c0_76 = arith.constant 0 : index
    %182 = vector.load %arg8[%c1_75, %c0_76] : memref<6x64xf32, #tpu.memory_space<vmem>>, vector<1x64xf32>
    %183 = vector.shape_cast %182 : vector<1x64xf32> to vector<64xf32>
    %184 = vector.shape_cast %183 : vector<64xf32> to vector<1x64xf32>
    %185 = vector.broadcast %184 : vector<1x64xf32> to vector<8x64xf32>
    %186 = arith.addf %181, %185 : vector<8x64xf32>
    %c1_77 = arith.constant 1 : index
    %c0_78 = arith.constant 0 : index
    %187 = vector.load %arg9[%c1_77, %c0_78] : memref<6x64xf32, #tpu.memory_space<vmem>>, vector<1x64xf32>
    %188 = vector.shape_cast %187 : vector<1x64xf32> to vector<64xf32>
    %c1_79 = arith.constant 1 : index
    %c0_80 = arith.constant 0 : index
    %189 = vector.load %arg10[%c1_79, %c0_80] : memref<6x64xf32, #tpu.memory_space<vmem>>, vector<1x64xf32>
    %190 = vector.shape_cast %189 : vector<1x64xf32> to vector<64xf32>
    %cst_81 = arith.constant dense<0.000000e+00> : vector<8xf32>
    %191 = vector.multi_reduction <add>, %186, %cst_81 [1] : vector<8x64xf32> to vector<8xf32>
    %192 = vector.shape_cast %191 : vector<8xf32> to vector<8x1xf32>
    %cst_82 = arith.constant 6.400000e+01 : f32
    %193 = vector.broadcast %cst_82 : f32 to vector<8x1xf32>
    %194 = arith.divf %192, %193 : vector<8x1xf32>
    %195 = vector.broadcast %194 : vector<8x1xf32> to vector<8x64xf32>
    %196 = arith.subf %186, %195 : vector<8x64xf32>
    %197 = arith.mulf %196, %196 : vector<8x64xf32>
    %cst_83 = arith.constant dense<0.000000e+00> : vector<8xf32>
    %198 = vector.multi_reduction <add>, %197, %cst_83 [1] : vector<8x64xf32> to vector<8xf32>
    %199 = vector.shape_cast %198 : vector<8xf32> to vector<8x1xf32>
    %cst_84 = arith.constant 6.400000e+01 : f32
    %200 = vector.broadcast %cst_84 : f32 to vector<8x1xf32>
    %201 = arith.divf %199, %200 : vector<8x1xf32>
    %cst_85 = arith.constant 9.99999996E-13 : f32
    %202 = vector.broadcast %cst_85 : f32 to vector<8x1xf32>
    %203 = arith.addf %201, %202 : vector<8x1xf32>
    %204 = math.rsqrt %203 : vector<8x1xf32>
    %205 = vector.broadcast %204 : vector<8x1xf32> to vector<8x64xf32>
    %206 = arith.mulf %196, %205 : vector<8x64xf32>
    %207 = vector.shape_cast %188 : vector<64xf32> to vector<1x64xf32>
    %208 = vector.broadcast %207 : vector<1x64xf32> to vector<8x64xf32>
    %209 = arith.mulf %208, %206 : vector<8x64xf32>
    %210 = vector.shape_cast %190 : vector<64xf32> to vector<1x64xf32>
    %211 = vector.broadcast %210 : vector<1x64xf32> to vector<8x64xf32>
    %212 = arith.addf %209, %211 : vector<8x64xf32>
    %213 = arith.truncf %212 : vector<8x64xf32> to vector<8x64xbf16>
    %c1_86 = arith.constant 1 : index
    %c0_87 = arith.constant 0 : index
    %c0_88 = arith.constant 0 : index
    %214 = vector.load %arg11[%c1_86, %c0_87, %c0_88] : memref<6x64x256xbf16, #tpu.memory_space<vmem>>, vector<1x64x256xbf16>
    %215 = vector.shape_cast %214 : vector<1x64x256xbf16> to vector<64x256xbf16>
    %cst_89 = arith.constant dense<0.000000e+00> : vector<8x256xf32>
    %216 = tpu.matmul %213, %215, %cst_89 {dimension_numbers = #tpu.dot_dimension_numbers<[1], [0], [0], [1], [0, 0, 1, 1], [], []>} : vector<8x64xbf16>, vector<64x256xbf16>, vector<8x256xf32> -> vector<8x256xf32>
    %c1_90 = arith.constant 1 : index
    %c0_91 = arith.constant 0 : index
    %217 = vector.load %arg12[%c1_90, %c0_91] : memref<6x256xf32, #tpu.memory_space<vmem>>, vector<1x256xf32>
    %218 = vector.shape_cast %217 : vector<1x256xf32> to vector<256xf32>
    %219 = vector.shape_cast %218 : vector<256xf32> to vector<1x256xf32>
    %220 = vector.broadcast %219 : vector<1x256xf32> to vector<8x256xf32>
    %221 = arith.addf %216, %220 : vector<8x256xf32>
    %cst_92 = arith.constant 1.702000e+00 : f32
    %222 = vector.broadcast %cst_92 : f32 to vector<8x256xf32>
    %223 = arith.mulf %222, %221 : vector<8x256xf32>
    %224 = arith.negf %223 : vector<8x256xf32>
    %225 = math.exp %224 : vector<8x256xf32>
    %cst_93 = arith.constant 1.000000e+00 : f32
    %226 = vector.broadcast %cst_93 : f32 to vector<8x256xf32>
    %227 = arith.addf %226, %225 : vector<8x256xf32>
    %228 = arith.divf %226, %227 : vector<8x256xf32>
    %229 = arith.mulf %221, %228 : vector<8x256xf32>
    %230 = arith.truncf %229 : vector<8x256xf32> to vector<8x256xbf16>
    %c1_94 = arith.constant 1 : index
    %c0_95 = arith.constant 0 : index
    %c0_96 = arith.constant 0 : index
    %231 = vector.load %arg13[%c1_94, %c0_95, %c0_96] : memref<6x256x64xbf16, #tpu.memory_space<vmem>>, vector<1x256x64xbf16>
    %232 = vector.shape_cast %231 : vector<1x256x64xbf16> to vector<256x64xbf16>
    %cst_97 = arith.constant dense<0.000000e+00> : vector<8x64xf32>
    %233 = tpu.matmul %230, %232, %cst_97 {dimension_numbers = #tpu.dot_dimension_numbers<[1], [0], [0], [1], [0, 0, 1, 1], [], []>} : vector<8x256xbf16>, vector<256x64xbf16>, vector<8x64xf32> -> vector<8x64xf32>
    %234 = arith.addf %186, %233 : vector<8x64xf32>
    %c1_98 = arith.constant 1 : index
    %c0_99 = arith.constant 0 : index
    %235 = vector.load %arg14[%c1_98, %c0_99] : memref<6x64xf32, #tpu.memory_space<vmem>>, vector<1x64xf32>
    %236 = vector.shape_cast %235 : vector<1x64xf32> to vector<64xf32>
    %237 = vector.shape_cast %236 : vector<64xf32> to vector<1x64xf32>
    %238 = vector.broadcast %237 : vector<1x64xf32> to vector<8x64xf32>
    %239 = arith.addf %234, %238 : vector<8x64xf32>
    %c2 = arith.constant 2 : index
    %c0_100 = arith.constant 0 : index
    %240 = vector.load %arg3[%c2, %c0_100] : memref<6x64xf32, #tpu.memory_space<vmem>>, vector<1x64xf32>
    %241 = vector.shape_cast %240 : vector<1x64xf32> to vector<64xf32>
    %c2_101 = arith.constant 2 : index
    %c0_102 = arith.constant 0 : index
    %242 = vector.load %arg4[%c2_101, %c0_102] : memref<6x64xf32, #tpu.memory_space<vmem>>, vector<1x64xf32>
    %243 = vector.shape_cast %242 : vector<1x64xf32> to vector<64xf32>
    %cst_103 = arith.constant dense<0.000000e+00> : vector<8xf32>
    %244 = vector.multi_reduction <add>, %239, %cst_103 [1] : vector<8x64xf32> to vector<8xf32>
    %245 = vector.shape_cast %244 : vector<8xf32> to vector<8x1xf32>
    %cst_104 = arith.constant 6.400000e+01 : f32
    %246 = vector.broadcast %cst_104 : f32 to vector<8x1xf32>
    %247 = arith.divf %245, %246 : vector<8x1xf32>
    %248 = vector.broadcast %247 : vector<8x1xf32> to vector<8x64xf32>
    %249 = arith.subf %239, %248 : vector<8x64xf32>
    %250 = arith.mulf %249, %249 : vector<8x64xf32>
    %cst_105 = arith.constant dense<0.000000e+00> : vector<8xf32>
    %251 = vector.multi_reduction <add>, %250, %cst_105 [1] : vector<8x64xf32> to vector<8xf32>
    %252 = vector.shape_cast %251 : vector<8xf32> to vector<8x1xf32>
    %cst_106 = arith.constant 6.400000e+01 : f32
    %253 = vector.broadcast %cst_106 : f32 to vector<8x1xf32>
    %254 = arith.divf %252, %253 : vector<8x1xf32>
    %cst_107 = arith.constant 9.99999996E-13 : f32
    %255 = vector.broadcast %cst_107 : f32 to vector<8x1xf32>
    %256 = arith.addf %254, %255 : vector<8x1xf32>
    %257 = math.rsqrt %256 : vector<8x1xf32>
    %258 = vector.broadcast %257 : vector<8x1xf32> to vector<8x64xf32>
    %259 = arith.mulf %249, %258 : vector<8x64xf32>
    %260 = vector.shape_cast %241 : vector<64xf32> to vector<1x64xf32>
    %261 = vector.broadcast %260 : vector<1x64xf32> to vector<8x64xf32>
    %262 = arith.mulf %261, %259 : vector<8x64xf32>
    %263 = vector.shape_cast %243 : vector<64xf32> to vector<1x64xf32>
    %264 = vector.broadcast %263 : vector<1x64xf32> to vector<8x64xf32>
    %265 = arith.addf %262, %264 : vector<8x64xf32>
    %266 = arith.truncf %265 : vector<8x64xf32> to vector<8x64xbf16>
    %c2_108 = arith.constant 2 : index
    %c0_109 = arith.constant 0 : index
    %c0_110 = arith.constant 0 : index
    %267 = vector.load %arg5[%c2_108, %c0_109, %c0_110] : memref<6x64x384xbf16, #tpu.memory_space<vmem>>, vector<1x64x384xbf16>
    %268 = vector.shape_cast %267 : vector<1x64x384xbf16> to vector<64x384xbf16>
    %cst_111 = arith.constant dense<0.000000e+00> : vector<8x384xf32>
    %269 = tpu.matmul %266, %268, %cst_111 {dimension_numbers = #tpu.dot_dimension_numbers<[1], [0], [0], [1], [0, 0, 1, 1], [], []>} : vector<8x64xbf16>, vector<64x384xbf16>, vector<8x384xf32> -> vector<8x384xf32>
    %c2_112 = arith.constant 2 : index
    %c0_113 = arith.constant 0 : index
    %270 = vector.load %arg6[%c2_112, %c0_113] : memref<6x384xf32, #tpu.memory_space<vmem>>, vector<1x384xf32>
    %271 = vector.shape_cast %270 : vector<1x384xf32> to vector<384xf32>
    %272 = vector.shape_cast %271 : vector<384xf32> to vector<1x384xf32>
    %273 = vector.broadcast %272 : vector<1x384xf32> to vector<8x384xf32>
    %274 = arith.addf %269, %273 : vector<8x384xf32>
    %275 = vector.extract_strided_slice %274 {offsets = [0, 0], sizes = [8, 64], strides = [1, 1]} : vector<8x384xf32> to vector<8x64xf32>
    %cst_114 = arith.constant 1.250000e-01 : f32
    %276 = vector.broadcast %cst_114 : f32 to vector<8x64xf32>
    %277 = arith.mulf %275, %276 : vector<8x64xf32>
    %278 = vector.extract_strided_slice %274 {offsets = [0, 128], sizes = [8, 64], strides = [1, 1]} : vector<8x384xf32> to vector<8x64xf32>
    %279 = vector.extract_strided_slice %274 {offsets = [0, 256], sizes = [8, 64], strides = [1, 1]} : vector<8x384xf32> to vector<8x64xf32>
    %280 = arith.truncf %277 : vector<8x64xf32> to vector<8x64xbf16>
    %281 = arith.truncf %278 : vector<8x64xf32> to vector<8x64xbf16>
    "tpu.trace_start"() <{level = 10 : i32, message = "qe,ke->qk"}> : () -> ()
    %cst_115 = arith.constant dense<0.000000e+00> : vector<8x8xf32>
    %282 = tpu.matmul %280, %281, %cst_115 {dimension_numbers = #tpu.dot_dimension_numbers<[1], [1], [0], [0], [0, 0, 1, 0], [], []>} : vector<8x64xbf16>, vector<8x64xbf16>, vector<8x8xf32> -> vector<8x8xf32>
    "tpu.trace_stop"() : () -> ()
    %cst_116 = arith.constant dense<0xFF800000> : vector<8xf32>
    %283 = vector.multi_reduction <maximumf>, %282, %cst_116 [1] : vector<8x8xf32> to vector<8xf32>
    %284 = vector.shape_cast %283 : vector<8xf32> to vector<8x1xf32>
    %285 = vector.broadcast %284 : vector<8x1xf32> to vector<8x8xf32>
    %286 = arith.subf %282, %285 : vector<8x8xf32>
    %287 = math.exp %286 : vector<8x8xf32>
    %cst_117 = arith.constant dense<0.000000e+00> : vector<8xf32>
    %288 = vector.multi_reduction <add>, %287, %cst_117 [1] : vector<8x8xf32> to vector<8xf32>
    %289 = vector.shape_cast %288 : vector<8xf32> to vector<8x1xf32>
    %290 = vector.broadcast %289 : vector<8x1xf32> to vector<8x8xf32>
    %291 = arith.divf %287, %290 : vector<8x8xf32>
    %292 = arith.truncf %291 : vector<8x8xf32> to vector<8x8xbf16>
    %293 = arith.truncf %279 : vector<8x64xf32> to vector<8x64xbf16>
    %cst_118 = arith.constant dense<0.000000e+00> : vector<8x64xf32>
    %294 = tpu.matmul %292, %293, %cst_118 {dimension_numbers = #tpu.dot_dimension_numbers<[1], [0], [0], [1], [0, 0, 1, 1], [], []>} : vector<8x8xbf16>, vector<8x64xbf16>, vector<8x64xf32> -> vector<8x64xf32>
    %295 = arith.truncf %294 : vector<8x64xf32> to vector<8x64xbf16>
    %c2_119 = arith.constant 2 : index
    %c0_120 = arith.constant 0 : index
    %c0_121 = arith.constant 0 : index
    %296 = vector.load %arg7[%c2_119, %c0_120, %c0_121] : memref<6x64x64xbf16, #tpu.memory_space<vmem>>, vector<1x64x64xbf16>
    %297 = vector.shape_cast %296 : vector<1x64x64xbf16> to vector<64x64xbf16>
    %cst_122 = arith.constant dense<0.000000e+00> : vector<8x64xf32>
    %298 = tpu.matmul %295, %297, %cst_122 {dimension_numbers = #tpu.dot_dimension_numbers<[1], [0], [0], [1], [0, 0, 1, 1], [], []>} : vector<8x64xbf16>, vector<64x64xbf16>, vector<8x64xf32> -> vector<8x64xf32>
    %299 = arith.addf %239, %298 : vector<8x64xf32>
    %c2_123 = arith.constant 2 : index
    %c0_124 = arith.constant 0 : index
    %300 = vector.load %arg8[%c2_123, %c0_124] : memref<6x64xf32, #tpu.memory_space<vmem>>, vector<1x64xf32>
    %301 = vector.shape_cast %300 : vector<1x64xf32> to vector<64xf32>
    %302 = vector.shape_cast %301 : vector<64xf32> to vector<1x64xf32>
    %303 = vector.broadcast %302 : vector<1x64xf32> to vector<8x64xf32>
    %304 = arith.addf %299, %303 : vector<8x64xf32>
    %c2_125 = arith.constant 2 : index
    %c0_126 = arith.constant 0 : index
    %305 = vector.load %arg9[%c2_125, %c0_126] : memref<6x64xf32, #tpu.memory_space<vmem>>, vector<1x64xf32>
    %306 = vector.shape_cast %305 : vector<1x64xf32> to vector<64xf32>
    %c2_127 = arith.constant 2 : index
    %c0_128 = arith.constant 0 : index
    %307 = vector.load %arg10[%c2_127, %c0_128] : memref<6x64xf32, #tpu.memory_space<vmem>>, vector<1x64xf32>
    %308 = vector.shape_cast %307 : vector<1x64xf32> to vector<64xf32>
    %cst_129 = arith.constant dense<0.000000e+00> : vector<8xf32>
    %309 = vector.multi_reduction <add>, %304, %cst_129 [1] : vector<8x64xf32> to vector<8xf32>
    %310 = vector.shape_cast %309 : vector<8xf32> to vector<8x1xf32>
    %cst_130 = arith.constant 6.400000e+01 : f32
    %311 = vector.broadcast %cst_130 : f32 to vector<8x1xf32>
    %312 = arith.divf %310, %311 : vector<8x1xf32>
    %313 = vector.broadcast %312 : vector<8x1xf32> to vector<8x64xf32>
    %314 = arith.subf %304, %313 : vector<8x64xf32>
    %315 = arith.mulf %314, %314 : vector<8x64xf32>
    %cst_131 = arith.constant dense<0.000000e+00> : vector<8xf32>
    %316 = vector.multi_reduction <add>, %315, %cst_131 [1] : vector<8x64xf32> to vector<8xf32>
    %317 = vector.shape_cast %316 : vector<8xf32> to vector<8x1xf32>
    %cst_132 = arith.constant 6.400000e+01 : f32
    %318 = vector.broadcast %cst_132 : f32 to vector<8x1xf32>
    %319 = arith.divf %317, %318 : vector<8x1xf32>
    %cst_133 = arith.constant 9.99999996E-13 : f32
    %320 = vector.broadcast %cst_133 : f32 to vector<8x1xf32>
    %321 = arith.addf %319, %320 : vector<8x1xf32>
    %322 = math.rsqrt %321 : vector<8x1xf32>
    %323 = vector.broadcast %322 : vector<8x1xf32> to vector<8x64xf32>
    %324 = arith.mulf %314, %323 : vector<8x64xf32>
    %325 = vector.shape_cast %306 : vector<64xf32> to vector<1x64xf32>
    %326 = vector.broadcast %325 : vector<1x64xf32> to vector<8x64xf32>
    %327 = arith.mulf %326, %324 : vector<8x64xf32>
    %328 = vector.shape_cast %308 : vector<64xf32> to vector<1x64xf32>
    %329 = vector.broadcast %328 : vector<1x64xf32> to vector<8x64xf32>
    %330 = arith.addf %327, %329 : vector<8x64xf32>
    %331 = arith.truncf %330 : vector<8x64xf32> to vector<8x64xbf16>
    %c2_134 = arith.constant 2 : index
    %c0_135 = arith.constant 0 : index
    %c0_136 = arith.constant 0 : index
    %332 = vector.load %arg11[%c2_134, %c0_135, %c0_136] : memref<6x64x256xbf16, #tpu.memory_space<vmem>>, vector<1x64x256xbf16>
    %333 = vector.shape_cast %332 : vector<1x64x256xbf16> to vector<64x256xbf16>
    %cst_137 = arith.constant dense<0.000000e+00> : vector<8x256xf32>
    %334 = tpu.matmul %331, %333, %cst_137 {dimension_numbers = #tpu.dot_dimension_numbers<[1], [0], [0], [1], [0, 0, 1, 1], [], []>} : vector<8x64xbf16>, vector<64x256xbf16>, vector<8x256xf32> -> vector<8x256xf32>
    %c2_138 = arith.constant 2 : index
    %c0_139 = arith.constant 0 : index
    %335 = vector.load %arg12[%c2_138, %c0_139] : memref<6x256xf32, #tpu.memory_space<vmem>>, vector<1x256xf32>
    %336 = vector.shape_cast %335 : vector<1x256xf32> to vector<256xf32>
    %337 = vector.shape_cast %336 : vector<256xf32> to vector<1x256xf32>
    %338 = vector.broadcast %337 : vector<1x256xf32> to vector<8x256xf32>
    %339 = arith.addf %334, %338 : vector<8x256xf32>
    %cst_140 = arith.constant 1.702000e+00 : f32
    %340 = vector.broadcast %cst_140 : f32 to vector<8x256xf32>
    %341 = arith.mulf %340, %339 : vector<8x256xf32>
    %342 = arith.negf %341 : vector<8x256xf32>
    %343 = math.exp %342 : vector<8x256xf32>
    %cst_141 = arith.constant 1.000000e+00 : f32
    %344 = vector.broadcast %cst_141 : f32 to vector<8x256xf32>
    %345 = arith.addf %344, %343 : vector<8x256xf32>
    %346 = arith.divf %344, %345 : vector<8x256xf32>
    %347 = arith.mulf %339, %346 : vector<8x256xf32>
    %348 = arith.truncf %347 : vector<8x256xf32> to vector<8x256xbf16>
    %c2_142 = arith.constant 2 : index
    %c0_143 = arith.constant 0 : index
    %c0_144 = arith.constant 0 : index
    %349 = vector.load %arg13[%c2_142, %c0_143, %c0_144] : memref<6x256x64xbf16, #tpu.memory_space<vmem>>, vector<1x256x64xbf16>
    %350 = vector.shape_cast %349 : vector<1x256x64xbf16> to vector<256x64xbf16>
    %cst_145 = arith.constant dense<0.000000e+00> : vector<8x64xf32>
    %351 = tpu.matmul %348, %350, %cst_145 {dimension_numbers = #tpu.dot_dimension_numbers<[1], [0], [0], [1], [0, 0, 1, 1], [], []>} : vector<8x256xbf16>, vector<256x64xbf16>, vector<8x64xf32> -> vector<8x64xf32>
    %352 = arith.addf %304, %351 : vector<8x64xf32>
    %c2_146 = arith.constant 2 : index
    %c0_147 = arith.constant 0 : index
    %353 = vector.load %arg14[%c2_146, %c0_147] : memref<6x64xf32, #tpu.memory_space<vmem>>, vector<1x64xf32>
    %354 = vector.shape_cast %353 : vector<1x64xf32> to vector<64xf32>
    %355 = vector.shape_cast %354 : vector<64xf32> to vector<1x64xf32>
    %356 = vector.broadcast %355 : vector<1x64xf32> to vector<8x64xf32>
    %357 = arith.addf %352, %356 : vector<8x64xf32>
    %c3 = arith.constant 3 : index
    %c0_148 = arith.constant 0 : index
    %358 = vector.load %arg3[%c3, %c0_148] : memref<6x64xf32, #tpu.memory_space<vmem>>, vector<1x64xf32>
    %359 = vector.shape_cast %358 : vector<1x64xf32> to vector<64xf32>
    %c3_149 = arith.constant 3 : index
    %c0_150 = arith.constant 0 : index
    %360 = vector.load %arg4[%c3_149, %c0_150] : memref<6x64xf32, #tpu.memory_space<vmem>>, vector<1x64xf32>
    %361 = vector.shape_cast %360 : vector<1x64xf32> to vector<64xf32>
    %cst_151 = arith.constant dense<0.000000e+00> : vector<8xf32>
    %362 = vector.multi_reduction <add>, %357, %cst_151 [1] : vector<8x64xf32> to vector<8xf32>
    %363 = vector.shape_cast %362 : vector<8xf32> to vector<8x1xf32>
    %cst_152 = arith.constant 6.400000e+01 : f32
    %364 = vector.broadcast %cst_152 : f32 to vector<8x1xf32>
    %365 = arith.divf %363, %364 : vector<8x1xf32>
    %366 = vector.broadcast %365 : vector<8x1xf32> to vector<8x64xf32>
    %367 = arith.subf %357, %366 : vector<8x64xf32>
    %368 = arith.mulf %367, %367 : vector<8x64xf32>
    %cst_153 = arith.constant dense<0.000000e+00> : vector<8xf32>
    %369 = vector.multi_reduction <add>, %368, %cst_153 [1] : vector<8x64xf32> to vector<8xf32>
    %370 = vector.shape_cast %369 : vector<8xf32> to vector<8x1xf32>
    %cst_154 = arith.constant 6.400000e+01 : f32
    %371 = vector.broadcast %cst_154 : f32 to vector<8x1xf32>
    %372 = arith.divf %370, %371 : vector<8x1xf32>
    %cst_155 = arith.constant 9.99999996E-13 : f32
    %373 = vector.broadcast %cst_155 : f32 to vector<8x1xf32>
    %374 = arith.addf %372, %373 : vector<8x1xf32>
    %375 = math.rsqrt %374 : vector<8x1xf32>
    %376 = vector.broadcast %375 : vector<8x1xf32> to vector<8x64xf32>
    %377 = arith.mulf %367, %376 : vector<8x64xf32>
    %378 = vector.shape_cast %359 : vector<64xf32> to vector<1x64xf32>
    %379 = vector.broadcast %378 : vector<1x64xf32> to vector<8x64xf32>
    %380 = arith.mulf %379, %377 : vector<8x64xf32>
    %381 = vector.shape_cast %361 : vector<64xf32> to vector<1x64xf32>
    %382 = vector.broadcast %381 : vector<1x64xf32> to vector<8x64xf32>
    %383 = arith.addf %380, %382 : vector<8x64xf32>
    %384 = arith.truncf %383 : vector<8x64xf32> to vector<8x64xbf16>
    %c3_156 = arith.constant 3 : index
    %c0_157 = arith.constant 0 : index
    %c0_158 = arith.constant 0 : index
    %385 = vector.load %arg5[%c3_156, %c0_157, %c0_158] : memref<6x64x384xbf16, #tpu.memory_space<vmem>>, vector<1x64x384xbf16>
    %386 = vector.shape_cast %385 : vector<1x64x384xbf16> to vector<64x384xbf16>
    %cst_159 = arith.constant dense<0.000000e+00> : vector<8x384xf32>
    %387 = tpu.matmul %384, %386, %cst_159 {dimension_numbers = #tpu.dot_dimension_numbers<[1], [0], [0], [1], [0, 0, 1, 1], [], []>} : vector<8x64xbf16>, vector<64x384xbf16>, vector<8x384xf32> -> vector<8x384xf32>
    %c3_160 = arith.constant 3 : index
    %c0_161 = arith.constant 0 : index
    %388 = vector.load %arg6[%c3_160, %c0_161] : memref<6x384xf32, #tpu.memory_space<vmem>>, vector<1x384xf32>
    %389 = vector.shape_cast %388 : vector<1x384xf32> to vector<384xf32>
    %390 = vector.shape_cast %389 : vector<384xf32> to vector<1x384xf32>
    %391 = vector.broadcast %390 : vector<1x384xf32> to vector<8x384xf32>
    %392 = arith.addf %387, %391 : vector<8x384xf32>
    %393 = vector.extract_strided_slice %392 {offsets = [0, 0], sizes = [8, 64], strides = [1, 1]} : vector<8x384xf32> to vector<8x64xf32>
    %cst_162 = arith.constant 1.250000e-01 : f32
    %394 = vector.broadcast %cst_162 : f32 to vector<8x64xf32>
    %395 = arith.mulf %393, %394 : vector<8x64xf32>
    %396 = vector.extract_strided_slice %392 {offsets = [0, 128], sizes = [8, 64], strides = [1, 1]} : vector<8x384xf32> to vector<8x64xf32>
    %397 = vector.extract_strided_slice %392 {offsets = [0, 256], sizes = [8, 64], strides = [1, 1]} : vector<8x384xf32> to vector<8x64xf32>
    %398 = arith.truncf %395 : vector<8x64xf32> to vector<8x64xbf16>
    %399 = arith.truncf %396 : vector<8x64xf32> to vector<8x64xbf16>
    "tpu.trace_start"() <{level = 10 : i32, message = "qe,ke->qk"}> : () -> ()
    %cst_163 = arith.constant dense<0.000000e+00> : vector<8x8xf32>
    %400 = tpu.matmul %398, %399, %cst_163 {dimension_numbers = #tpu.dot_dimension_numbers<[1], [1], [0], [0], [0, 0, 1, 0], [], []>} : vector<8x64xbf16>, vector<8x64xbf16>, vector<8x8xf32> -> vector<8x8xf32>
    "tpu.trace_stop"() : () -> ()
    %cst_164 = arith.constant dense<0xFF800000> : vector<8xf32>
    %401 = vector.multi_reduction <maximumf>, %400, %cst_164 [1] : vector<8x8xf32> to vector<8xf32>
    %402 = vector.shape_cast %401 : vector<8xf32> to vector<8x1xf32>
    %403 = vector.broadcast %402 : vector<8x1xf32> to vector<8x8xf32>
    %404 = arith.subf %400, %403 : vector<8x8xf32>
    %405 = math.exp %404 : vector<8x8xf32>
    %cst_165 = arith.constant dense<0.000000e+00> : vector<8xf32>
    %406 = vector.multi_reduction <add>, %405, %cst_165 [1] : vector<8x8xf32> to vector<8xf32>
    %407 = vector.shape_cast %406 : vector<8xf32> to vector<8x1xf32>
    %408 = vector.broadcast %407 : vector<8x1xf32> to vector<8x8xf32>
    %409 = arith.divf %405, %408 : vector<8x8xf32>
    %410 = arith.truncf %409 : vector<8x8xf32> to vector<8x8xbf16>
    %411 = arith.truncf %397 : vector<8x64xf32> to vector<8x64xbf16>
    %cst_166 = arith.constant dense<0.000000e+00> : vector<8x64xf32>
    %412 = tpu.matmul %410, %411, %cst_166 {dimension_numbers = #tpu.dot_dimension_numbers<[1], [0], [0], [1], [0, 0, 1, 1], [], []>} : vector<8x8xbf16>, vector<8x64xbf16>, vector<8x64xf32> -> vector<8x64xf32>
    %413 = arith.truncf %412 : vector<8x64xf32> to vector<8x64xbf16>
    %c3_167 = arith.constant 3 : index
    %c0_168 = arith.constant 0 : index
    %c0_169 = arith.constant 0 : index
    %414 = vector.load %arg7[%c3_167, %c0_168, %c0_169] : memref<6x64x64xbf16, #tpu.memory_space<vmem>>, vector<1x64x64xbf16>
    %415 = vector.shape_cast %414 : vector<1x64x64xbf16> to vector<64x64xbf16>
    %cst_170 = arith.constant dense<0.000000e+00> : vector<8x64xf32>
    %416 = tpu.matmul %413, %415, %cst_170 {dimension_numbers = #tpu.dot_dimension_numbers<[1], [0], [0], [1], [0, 0, 1, 1], [], []>} : vector<8x64xbf16>, vector<64x64xbf16>, vector<8x64xf32> -> vector<8x64xf32>
    %417 = arith.addf %357, %416 : vector<8x64xf32>
    %c3_171 = arith.constant 3 : index
    %c0_172 = arith.constant 0 : index
    %418 = vector.load %arg8[%c3_171, %c0_172] : memref<6x64xf32, #tpu.memory_space<vmem>>, vector<1x64xf32>
    %419 = vector.shape_cast %418 : vector<1x64xf32> to vector<64xf32>
    %420 = vector.shape_cast %419 : vector<64xf32> to vector<1x64xf32>
    %421 = vector.broadcast %420 : vector<1x64xf32> to vector<8x64xf32>
    %422 = arith.addf %417, %421 : vector<8x64xf32>
    %c3_173 = arith.constant 3 : index
    %c0_174 = arith.constant 0 : index
    %423 = vector.load %arg9[%c3_173, %c0_174] : memref<6x64xf32, #tpu.memory_space<vmem>>, vector<1x64xf32>
    %424 = vector.shape_cast %423 : vector<1x64xf32> to vector<64xf32>
    %c3_175 = arith.constant 3 : index
    %c0_176 = arith.constant 0 : index
    %425 = vector.load %arg10[%c3_175, %c0_176] : memref<6x64xf32, #tpu.memory_space<vmem>>, vector<1x64xf32>
    %426 = vector.shape_cast %425 : vector<1x64xf32> to vector<64xf32>
    %cst_177 = arith.constant dense<0.000000e+00> : vector<8xf32>
    %427 = vector.multi_reduction <add>, %422, %cst_177 [1] : vector<8x64xf32> to vector<8xf32>
    %428 = vector.shape_cast %427 : vector<8xf32> to vector<8x1xf32>
    %cst_178 = arith.constant 6.400000e+01 : f32
    %429 = vector.broadcast %cst_178 : f32 to vector<8x1xf32>
    %430 = arith.divf %428, %429 : vector<8x1xf32>
    %431 = vector.broadcast %430 : vector<8x1xf32> to vector<8x64xf32>
    %432 = arith.subf %422, %431 : vector<8x64xf32>
    %433 = arith.mulf %432, %432 : vector<8x64xf32>
    %cst_179 = arith.constant dense<0.000000e+00> : vector<8xf32>
    %434 = vector.multi_reduction <add>, %433, %cst_179 [1] : vector<8x64xf32> to vector<8xf32>
    %435 = vector.shape_cast %434 : vector<8xf32> to vector<8x1xf32>
    %cst_180 = arith.constant 6.400000e+01 : f32
    %436 = vector.broadcast %cst_180 : f32 to vector<8x1xf32>
    %437 = arith.divf %435, %436 : vector<8x1xf32>
    %cst_181 = arith.constant 9.99999996E-13 : f32
    %438 = vector.broadcast %cst_181 : f32 to vector<8x1xf32>
    %439 = arith.addf %437, %438 : vector<8x1xf32>
    %440 = math.rsqrt %439 : vector<8x1xf32>
    %441 = vector.broadcast %440 : vector<8x1xf32> to vector<8x64xf32>
    %442 = arith.mulf %432, %441 : vector<8x64xf32>
    %443 = vector.shape_cast %424 : vector<64xf32> to vector<1x64xf32>
    %444 = vector.broadcast %443 : vector<1x64xf32> to vector<8x64xf32>
    %445 = arith.mulf %444, %442 : vector<8x64xf32>
    %446 = vector.shape_cast %426 : vector<64xf32> to vector<1x64xf32>
    %447 = vector.broadcast %446 : vector<1x64xf32> to vector<8x64xf32>
    %448 = arith.addf %445, %447 : vector<8x64xf32>
    %449 = arith.truncf %448 : vector<8x64xf32> to vector<8x64xbf16>
    %c3_182 = arith.constant 3 : index
    %c0_183 = arith.constant 0 : index
    %c0_184 = arith.constant 0 : index
    %450 = vector.load %arg11[%c3_182, %c0_183, %c0_184] : memref<6x64x256xbf16, #tpu.memory_space<vmem>>, vector<1x64x256xbf16>
    %451 = vector.shape_cast %450 : vector<1x64x256xbf16> to vector<64x256xbf16>
    %cst_185 = arith.constant dense<0.000000e+00> : vector<8x256xf32>
    %452 = tpu.matmul %449, %451, %cst_185 {dimension_numbers = #tpu.dot_dimension_numbers<[1], [0], [0], [1], [0, 0, 1, 1], [], []>} : vector<8x64xbf16>, vector<64x256xbf16>, vector<8x256xf32> -> vector<8x256xf32>
    %c3_186 = arith.constant 3 : index
    %c0_187 = arith.constant 0 : index
    %453 = vector.load %arg12[%c3_186, %c0_187] : memref<6x256xf32, #tpu.memory_space<vmem>>, vector<1x256xf32>
    %454 = vector.shape_cast %453 : vector<1x256xf32> to vector<256xf32>
    %455 = vector.shape_cast %454 : vector<256xf32> to vector<1x256xf32>
    %456 = vector.broadcast %455 : vector<1x256xf32> to vector<8x256xf32>
    %457 = arith.addf %452, %456 : vector<8x256xf32>
    %cst_188 = arith.constant 1.702000e+00 : f32
    %458 = vector.broadcast %cst_188 : f32 to vector<8x256xf32>
    %459 = arith.mulf %458, %457 : vector<8x256xf32>
    %460 = arith.negf %459 : vector<8x256xf32>
    %461 = math.exp %460 : vector<8x256xf32>
    %cst_189 = arith.constant 1.000000e+00 : f32
    %462 = vector.broadcast %cst_189 : f32 to vector<8x256xf32>
    %463 = arith.addf %462, %461 : vector<8x256xf32>
    %464 = arith.divf %462, %463 : vector<8x256xf32>
    %465 = arith.mulf %457, %464 : vector<8x256xf32>
    %466 = arith.truncf %465 : vector<8x256xf32> to vector<8x256xbf16>
    %c3_190 = arith.constant 3 : index
    %c0_191 = arith.constant 0 : index
    %c0_192 = arith.constant 0 : index
    %467 = vector.load %arg13[%c3_190, %c0_191, %c0_192] : memref<6x256x64xbf16, #tpu.memory_space<vmem>>, vector<1x256x64xbf16>
    %468 = vector.shape_cast %467 : vector<1x256x64xbf16> to vector<256x64xbf16>
    %cst_193 = arith.constant dense<0.000000e+00> : vector<8x64xf32>
    %469 = tpu.matmul %466, %468, %cst_193 {dimension_numbers = #tpu.dot_dimension_numbers<[1], [0], [0], [1], [0, 0, 1, 1], [], []>} : vector<8x256xbf16>, vector<256x64xbf16>, vector<8x64xf32> -> vector<8x64xf32>
    %470 = arith.addf %422, %469 : vector<8x64xf32>
    %c3_194 = arith.constant 3 : index
    %c0_195 = arith.constant 0 : index
    %471 = vector.load %arg14[%c3_194, %c0_195] : memref<6x64xf32, #tpu.memory_space<vmem>>, vector<1x64xf32>
    %472 = vector.shape_cast %471 : vector<1x64xf32> to vector<64xf32>
    %473 = vector.shape_cast %472 : vector<64xf32> to vector<1x64xf32>
    %474 = vector.broadcast %473 : vector<1x64xf32> to vector<8x64xf32>
    %475 = arith.addf %470, %474 : vector<8x64xf32>
    %c4 = arith.constant 4 : index
    %c0_196 = arith.constant 0 : index
    %476 = vector.load %arg3[%c4, %c0_196] : memref<6x64xf32, #tpu.memory_space<vmem>>, vector<1x64xf32>
    %477 = vector.shape_cast %476 : vector<1x64xf32> to vector<64xf32>
    %c4_197 = arith.constant 4 : index
    %c0_198 = arith.constant 0 : index
    %478 = vector.load %arg4[%c4_197, %c0_198] : memref<6x64xf32, #tpu.memory_space<vmem>>, vector<1x64xf32>
    %479 = vector.shape_cast %478 : vector<1x64xf32> to vector<64xf32>
    %cst_199 = arith.constant dense<0.000000e+00> : vector<8xf32>
    %480 = vector.multi_reduction <add>, %475, %cst_199 [1] : vector<8x64xf32> to vector<8xf32>
    %481 = vector.shape_cast %480 : vector<8xf32> to vector<8x1xf32>
    %cst_200 = arith.constant 6.400000e+01 : f32
    %482 = vector.broadcast %cst_200 : f32 to vector<8x1xf32>
    %483 = arith.divf %481, %482 : vector<8x1xf32>
    %484 = vector.broadcast %483 : vector<8x1xf32> to vector<8x64xf32>
    %485 = arith.subf %475, %484 : vector<8x64xf32>
    %486 = arith.mulf %485, %485 : vector<8x64xf32>
    %cst_201 = arith.constant dense<0.000000e+00> : vector<8xf32>
    %487 = vector.multi_reduction <add>, %486, %cst_201 [1] : vector<8x64xf32> to vector<8xf32>
    %488 = vector.shape_cast %487 : vector<8xf32> to vector<8x1xf32>
    %cst_202 = arith.constant 6.400000e+01 : f32
    %489 = vector.broadcast %cst_202 : f32 to vector<8x1xf32>
    %490 = arith.divf %488, %489 : vector<8x1xf32>
    %cst_203 = arith.constant 9.99999996E-13 : f32
    %491 = vector.broadcast %cst_203 : f32 to vector<8x1xf32>
    %492 = arith.addf %490, %491 : vector<8x1xf32>
    %493 = math.rsqrt %492 : vector<8x1xf32>
    %494 = vector.broadcast %493 : vector<8x1xf32> to vector<8x64xf32>
    %495 = arith.mulf %485, %494 : vector<8x64xf32>
    %496 = vector.shape_cast %477 : vector<64xf32> to vector<1x64xf32>
    %497 = vector.broadcast %496 : vector<1x64xf32> to vector<8x64xf32>
    %498 = arith.mulf %497, %495 : vector<8x64xf32>
    %499 = vector.shape_cast %479 : vector<64xf32> to vector<1x64xf32>
    %500 = vector.broadcast %499 : vector<1x64xf32> to vector<8x64xf32>
    %501 = arith.addf %498, %500 : vector<8x64xf32>
    %502 = arith.truncf %501 : vector<8x64xf32> to vector<8x64xbf16>
    %c4_204 = arith.constant 4 : index
    %c0_205 = arith.constant 0 : index
    %c0_206 = arith.constant 0 : index
    %503 = vector.load %arg5[%c4_204, %c0_205, %c0_206] : memref<6x64x384xbf16, #tpu.memory_space<vmem>>, vector<1x64x384xbf16>
    %504 = vector.shape_cast %503 : vector<1x64x384xbf16> to vector<64x384xbf16>
    %cst_207 = arith.constant dense<0.000000e+00> : vector<8x384xf32>
    %505 = tpu.matmul %502, %504, %cst_207 {dimension_numbers = #tpu.dot_dimension_numbers<[1], [0], [0], [1], [0, 0, 1, 1], [], []>} : vector<8x64xbf16>, vector<64x384xbf16>, vector<8x384xf32> -> vector<8x384xf32>
    %c4_208 = arith.constant 4 : index
    %c0_209 = arith.constant 0 : index
    %506 = vector.load %arg6[%c4_208, %c0_209] : memref<6x384xf32, #tpu.memory_space<vmem>>, vector<1x384xf32>
    %507 = vector.shape_cast %506 : vector<1x384xf32> to vector<384xf32>
    %508 = vector.shape_cast %507 : vector<384xf32> to vector<1x384xf32>
    %509 = vector.broadcast %508 : vector<1x384xf32> to vector<8x384xf32>
    %510 = arith.addf %505, %509 : vector<8x384xf32>
    %511 = vector.extract_strided_slice %510 {offsets = [0, 0], sizes = [8, 64], strides = [1, 1]} : vector<8x384xf32> to vector<8x64xf32>
    %cst_210 = arith.constant 1.250000e-01 : f32
    %512 = vector.broadcast %cst_210 : f32 to vector<8x64xf32>
    %513 = arith.mulf %511, %512 : vector<8x64xf32>
    %514 = vector.extract_strided_slice %510 {offsets = [0, 128], sizes = [8, 64], strides = [1, 1]} : vector<8x384xf32> to vector<8x64xf32>
    %515 = vector.extract_strided_slice %510 {offsets = [0, 256], sizes = [8, 64], strides = [1, 1]} : vector<8x384xf32> to vector<8x64xf32>
    %516 = arith.truncf %513 : vector<8x64xf32> to vector<8x64xbf16>
    %517 = arith.truncf %514 : vector<8x64xf32> to vector<8x64xbf16>
    "tpu.trace_start"() <{level = 10 : i32, message = "qe,ke->qk"}> : () -> ()
    %cst_211 = arith.constant dense<0.000000e+00> : vector<8x8xf32>
    %518 = tpu.matmul %516, %517, %cst_211 {dimension_numbers = #tpu.dot_dimension_numbers<[1], [1], [0], [0], [0, 0, 1, 0], [], []>} : vector<8x64xbf16>, vector<8x64xbf16>, vector<8x8xf32> -> vector<8x8xf32>
    "tpu.trace_stop"() : () -> ()
    %cst_212 = arith.constant dense<0xFF800000> : vector<8xf32>
    %519 = vector.multi_reduction <maximumf>, %518, %cst_212 [1] : vector<8x8xf32> to vector<8xf32>
    %520 = vector.shape_cast %519 : vector<8xf32> to vector<8x1xf32>
    %521 = vector.broadcast %520 : vector<8x1xf32> to vector<8x8xf32>
    %522 = arith.subf %518, %521 : vector<8x8xf32>
    %523 = math.exp %522 : vector<8x8xf32>
    %cst_213 = arith.constant dense<0.000000e+00> : vector<8xf32>
    %524 = vector.multi_reduction <add>, %523, %cst_213 [1] : vector<8x8xf32> to vector<8xf32>
    %525 = vector.shape_cast %524 : vector<8xf32> to vector<8x1xf32>
    %526 = vector.broadcast %525 : vector<8x1xf32> to vector<8x8xf32>
    %527 = arith.divf %523, %526 : vector<8x8xf32>
    %528 = arith.truncf %527 : vector<8x8xf32> to vector<8x8xbf16>
    %529 = arith.truncf %515 : vector<8x64xf32> to vector<8x64xbf16>
    %cst_214 = arith.constant dense<0.000000e+00> : vector<8x64xf32>
    %530 = tpu.matmul %528, %529, %cst_214 {dimension_numbers = #tpu.dot_dimension_numbers<[1], [0], [0], [1], [0, 0, 1, 1], [], []>} : vector<8x8xbf16>, vector<8x64xbf16>, vector<8x64xf32> -> vector<8x64xf32>
    %531 = arith.truncf %530 : vector<8x64xf32> to vector<8x64xbf16>
    %c4_215 = arith.constant 4 : index
    %c0_216 = arith.constant 0 : index
    %c0_217 = arith.constant 0 : index
    %532 = vector.load %arg7[%c4_215, %c0_216, %c0_217] : memref<6x64x64xbf16, #tpu.memory_space<vmem>>, vector<1x64x64xbf16>
    %533 = vector.shape_cast %532 : vector<1x64x64xbf16> to vector<64x64xbf16>
    %cst_218 = arith.constant dense<0.000000e+00> : vector<8x64xf32>
    %534 = tpu.matmul %531, %533, %cst_218 {dimension_numbers = #tpu.dot_dimension_numbers<[1], [0], [0], [1], [0, 0, 1, 1], [], []>} : vector<8x64xbf16>, vector<64x64xbf16>, vector<8x64xf32> -> vector<8x64xf32>
    %535 = arith.addf %475, %534 : vector<8x64xf32>
    %c4_219 = arith.constant 4 : index
    %c0_220 = arith.constant 0 : index
    %536 = vector.load %arg8[%c4_219, %c0_220] : memref<6x64xf32, #tpu.memory_space<vmem>>, vector<1x64xf32>
    %537 = vector.shape_cast %536 : vector<1x64xf32> to vector<64xf32>
    %538 = vector.shape_cast %537 : vector<64xf32> to vector<1x64xf32>
    %539 = vector.broadcast %538 : vector<1x64xf32> to vector<8x64xf32>
    %540 = arith.addf %535, %539 : vector<8x64xf32>
    %c4_221 = arith.constant 4 : index
    %c0_222 = arith.constant 0 : index
    %541 = vector.load %arg9[%c4_221, %c0_222] : memref<6x64xf32, #tpu.memory_space<vmem>>, vector<1x64xf32>
    %542 = vector.shape_cast %541 : vector<1x64xf32> to vector<64xf32>
    %c4_223 = arith.constant 4 : index
    %c0_224 = arith.constant 0 : index
    %543 = vector.load %arg10[%c4_223, %c0_224] : memref<6x64xf32, #tpu.memory_space<vmem>>, vector<1x64xf32>
    %544 = vector.shape_cast %543 : vector<1x64xf32> to vector<64xf32>
    %cst_225 = arith.constant dense<0.000000e+00> : vector<8xf32>
    %545 = vector.multi_reduction <add>, %540, %cst_225 [1] : vector<8x64xf32> to vector<8xf32>
    %546 = vector.shape_cast %545 : vector<8xf32> to vector<8x1xf32>
    %cst_226 = arith.constant 6.400000e+01 : f32
    %547 = vector.broadcast %cst_226 : f32 to vector<8x1xf32>
    %548 = arith.divf %546, %547 : vector<8x1xf32>
    %549 = vector.broadcast %548 : vector<8x1xf32> to vector<8x64xf32>
    %550 = arith.subf %540, %549 : vector<8x64xf32>
    %551 = arith.mulf %550, %550 : vector<8x64xf32>
    %cst_227 = arith.constant dense<0.000000e+00> : vector<8xf32>
    %552 = vector.multi_reduction <add>, %551, %cst_227 [1] : vector<8x64xf32> to vector<8xf32>
    %553 = vector.shape_cast %552 : vector<8xf32> to vector<8x1xf32>
    %cst_228 = arith.constant 6.400000e+01 : f32
    %554 = vector.broadcast %cst_228 : f32 to vector<8x1xf32>
    %555 = arith.divf %553, %554 : vector<8x1xf32>
    %cst_229 = arith.constant 9.99999996E-13 : f32
    %556 = vector.broadcast %cst_229 : f32 to vector<8x1xf32>
    %557 = arith.addf %555, %556 : vector<8x1xf32>
    %558 = math.rsqrt %557 : vector<8x1xf32>
    %559 = vector.broadcast %558 : vector<8x1xf32> to vector<8x64xf32>
    %560 = arith.mulf %550, %559 : vector<8x64xf32>
    %561 = vector.shape_cast %542 : vector<64xf32> to vector<1x64xf32>
    %562 = vector.broadcast %561 : vector<1x64xf32> to vector<8x64xf32>
    %563 = arith.mulf %562, %560 : vector<8x64xf32>
    %564 = vector.shape_cast %544 : vector<64xf32> to vector<1x64xf32>
    %565 = vector.broadcast %564 : vector<1x64xf32> to vector<8x64xf32>
    %566 = arith.addf %563, %565 : vector<8x64xf32>
    %567 = arith.truncf %566 : vector<8x64xf32> to vector<8x64xbf16>
    %c4_230 = arith.constant 4 : index
    %c0_231 = arith.constant 0 : index
    %c0_232 = arith.constant 0 : index
    %568 = vector.load %arg11[%c4_230, %c0_231, %c0_232] : memref<6x64x256xbf16, #tpu.memory_space<vmem>>, vector<1x64x256xbf16>
    %569 = vector.shape_cast %568 : vector<1x64x256xbf16> to vector<64x256xbf16>
    %cst_233 = arith.constant dense<0.000000e+00> : vector<8x256xf32>
    %570 = tpu.matmul %567, %569, %cst_233 {dimension_numbers = #tpu.dot_dimension_numbers<[1], [0], [0], [1], [0, 0, 1, 1], [], []>} : vector<8x64xbf16>, vector<64x256xbf16>, vector<8x256xf32> -> vector<8x256xf32>
    %c4_234 = arith.constant 4 : index
    %c0_235 = arith.constant 0 : index
    %571 = vector.load %arg12[%c4_234, %c0_235] : memref<6x256xf32, #tpu.memory_space<vmem>>, vector<1x256xf32>
    %572 = vector.shape_cast %571 : vector<1x256xf32> to vector<256xf32>
    %573 = vector.shape_cast %572 : vector<256xf32> to vector<1x256xf32>
    %574 = vector.broadcast %573 : vector<1x256xf32> to vector<8x256xf32>
    %575 = arith.addf %570, %574 : vector<8x256xf32>
    %cst_236 = arith.constant 1.702000e+00 : f32
    %576 = vector.broadcast %cst_236 : f32 to vector<8x256xf32>
    %577 = arith.mulf %576, %575 : vector<8x256xf32>
    %578 = arith.negf %577 : vector<8x256xf32>
    %579 = math.exp %578 : vector<8x256xf32>
    %cst_237 = arith.constant 1.000000e+00 : f32
    %580 = vector.broadcast %cst_237 : f32 to vector<8x256xf32>
    %581 = arith.addf %580, %579 : vector<8x256xf32>
    %582 = arith.divf %580, %581 : vector<8x256xf32>
    %583 = arith.mulf %575, %582 : vector<8x256xf32>
    %584 = arith.truncf %583 : vector<8x256xf32> to vector<8x256xbf16>
    %c4_238 = arith.constant 4 : index
    %c0_239 = arith.constant 0 : index
    %c0_240 = arith.constant 0 : index
    %585 = vector.load %arg13[%c4_238, %c0_239, %c0_240] : memref<6x256x64xbf16, #tpu.memory_space<vmem>>, vector<1x256x64xbf16>
    %586 = vector.shape_cast %585 : vector<1x256x64xbf16> to vector<256x64xbf16>
    %cst_241 = arith.constant dense<0.000000e+00> : vector<8x64xf32>
    %587 = tpu.matmul %584, %586, %cst_241 {dimension_numbers = #tpu.dot_dimension_numbers<[1], [0], [0], [1], [0, 0, 1, 1], [], []>} : vector<8x256xbf16>, vector<256x64xbf16>, vector<8x64xf32> -> vector<8x64xf32>
    %588 = arith.addf %540, %587 : vector<8x64xf32>
    %c4_242 = arith.constant 4 : index
    %c0_243 = arith.constant 0 : index
    %589 = vector.load %arg14[%c4_242, %c0_243] : memref<6x64xf32, #tpu.memory_space<vmem>>, vector<1x64xf32>
    %590 = vector.shape_cast %589 : vector<1x64xf32> to vector<64xf32>
    %591 = vector.shape_cast %590 : vector<64xf32> to vector<1x64xf32>
    %592 = vector.broadcast %591 : vector<1x64xf32> to vector<8x64xf32>
    %593 = arith.addf %588, %592 : vector<8x64xf32>
    %c5 = arith.constant 5 : index
    %c0_244 = arith.constant 0 : index
    %594 = vector.load %arg3[%c5, %c0_244] : memref<6x64xf32, #tpu.memory_space<vmem>>, vector<1x64xf32>
    %595 = vector.shape_cast %594 : vector<1x64xf32> to vector<64xf32>
    %c5_245 = arith.constant 5 : index
    %c0_246 = arith.constant 0 : index
    %596 = vector.load %arg4[%c5_245, %c0_246] : memref<6x64xf32, #tpu.memory_space<vmem>>, vector<1x64xf32>
    %597 = vector.shape_cast %596 : vector<1x64xf32> to vector<64xf32>
    %cst_247 = arith.constant dense<0.000000e+00> : vector<8xf32>
    %598 = vector.multi_reduction <add>, %593, %cst_247 [1] : vector<8x64xf32> to vector<8xf32>
    %599 = vector.shape_cast %598 : vector<8xf32> to vector<8x1xf32>
    %cst_248 = arith.constant 6.400000e+01 : f32
    %600 = vector.broadcast %cst_248 : f32 to vector<8x1xf32>
    %601 = arith.divf %599, %600 : vector<8x1xf32>
    %602 = vector.broadcast %601 : vector<8x1xf32> to vector<8x64xf32>
    %603 = arith.subf %593, %602 : vector<8x64xf32>
    %604 = arith.mulf %603, %603 : vector<8x64xf32>
    %cst_249 = arith.constant dense<0.000000e+00> : vector<8xf32>
    %605 = vector.multi_reduction <add>, %604, %cst_249 [1] : vector<8x64xf32> to vector<8xf32>
    %606 = vector.shape_cast %605 : vector<8xf32> to vector<8x1xf32>
    %cst_250 = arith.constant 6.400000e+01 : f32
    %607 = vector.broadcast %cst_250 : f32 to vector<8x1xf32>
    %608 = arith.divf %606, %607 : vector<8x1xf32>
    %cst_251 = arith.constant 9.99999996E-13 : f32
    %609 = vector.broadcast %cst_251 : f32 to vector<8x1xf32>
    %610 = arith.addf %608, %609 : vector<8x1xf32>
    %611 = math.rsqrt %610 : vector<8x1xf32>
    %612 = vector.broadcast %611 : vector<8x1xf32> to vector<8x64xf32>
    %613 = arith.mulf %603, %612 : vector<8x64xf32>
    %614 = vector.shape_cast %595 : vector<64xf32> to vector<1x64xf32>
    %615 = vector.broadcast %614 : vector<1x64xf32> to vector<8x64xf32>
    %616 = arith.mulf %615, %613 : vector<8x64xf32>
    %617 = vector.shape_cast %597 : vector<64xf32> to vector<1x64xf32>
    %618 = vector.broadcast %617 : vector<1x64xf32> to vector<8x64xf32>
    %619 = arith.addf %616, %618 : vector<8x64xf32>
    %620 = arith.truncf %619 : vector<8x64xf32> to vector<8x64xbf16>
    %c5_252 = arith.constant 5 : index
    %c0_253 = arith.constant 0 : index
    %c0_254 = arith.constant 0 : index
    %621 = vector.load %arg5[%c5_252, %c0_253, %c0_254] : memref<6x64x384xbf16, #tpu.memory_space<vmem>>, vector<1x64x384xbf16>
    %622 = vector.shape_cast %621 : vector<1x64x384xbf16> to vector<64x384xbf16>
    %cst_255 = arith.constant dense<0.000000e+00> : vector<8x384xf32>
    %623 = tpu.matmul %620, %622, %cst_255 {dimension_numbers = #tpu.dot_dimension_numbers<[1], [0], [0], [1], [0, 0, 1, 1], [], []>} : vector<8x64xbf16>, vector<64x384xbf16>, vector<8x384xf32> -> vector<8x384xf32>
    %c5_256 = arith.constant 5 : index
    %c0_257 = arith.constant 0 : index
    %624 = vector.load %arg6[%c5_256, %c0_257] : memref<6x384xf32, #tpu.memory_space<vmem>>, vector<1x384xf32>
    %625 = vector.shape_cast %624 : vector<1x384xf32> to vector<384xf32>
    %626 = vector.shape_cast %625 : vector<384xf32> to vector<1x384xf32>
    %627 = vector.broadcast %626 : vector<1x384xf32> to vector<8x384xf32>
    %628 = arith.addf %623, %627 : vector<8x384xf32>
    %629 = vector.extract_strided_slice %628 {offsets = [0, 0], sizes = [8, 64], strides = [1, 1]} : vector<8x384xf32> to vector<8x64xf32>
    %cst_258 = arith.constant 1.250000e-01 : f32
    %630 = vector.broadcast %cst_258 : f32 to vector<8x64xf32>
    %631 = arith.mulf %629, %630 : vector<8x64xf32>
    %632 = vector.extract_strided_slice %628 {offsets = [0, 128], sizes = [8, 64], strides = [1, 1]} : vector<8x384xf32> to vector<8x64xf32>
    %633 = vector.extract_strided_slice %628 {offsets = [0, 256], sizes = [8, 64], strides = [1, 1]} : vector<8x384xf32> to vector<8x64xf32>
    %634 = arith.truncf %631 : vector<8x64xf32> to vector<8x64xbf16>
    %635 = arith.truncf %632 : vector<8x64xf32> to vector<8x64xbf16>
    "tpu.trace_start"() <{level = 10 : i32, message = "qe,ke->qk"}> : () -> ()
    %cst_259 = arith.constant dense<0.000000e+00> : vector<8x8xf32>
    %636 = tpu.matmul %634, %635, %cst_259 {dimension_numbers = #tpu.dot_dimension_numbers<[1], [1], [0], [0], [0, 0, 1, 0], [], []>} : vector<8x64xbf16>, vector<8x64xbf16>, vector<8x8xf32> -> vector<8x8xf32>
    "tpu.trace_stop"() : () -> ()
    %cst_260 = arith.constant dense<0xFF800000> : vector<8xf32>
    %637 = vector.multi_reduction <maximumf>, %636, %cst_260 [1] : vector<8x8xf32> to vector<8xf32>
    %638 = vector.shape_cast %637 : vector<8xf32> to vector<8x1xf32>
    %639 = vector.broadcast %638 : vector<8x1xf32> to vector<8x8xf32>
    %640 = arith.subf %636, %639 : vector<8x8xf32>
    %641 = math.exp %640 : vector<8x8xf32>
    %cst_261 = arith.constant dense<0.000000e+00> : vector<8xf32>
    %642 = vector.multi_reduction <add>, %641, %cst_261 [1] : vector<8x8xf32> to vector<8xf32>
    %643 = vector.shape_cast %642 : vector<8xf32> to vector<8x1xf32>
    %644 = vector.broadcast %643 : vector<8x1xf32> to vector<8x8xf32>
    %645 = arith.divf %641, %644 : vector<8x8xf32>
    %646 = arith.truncf %645 : vector<8x8xf32> to vector<8x8xbf16>
    %647 = arith.truncf %633 : vector<8x64xf32> to vector<8x64xbf16>
    %cst_262 = arith.constant dense<0.000000e+00> : vector<8x64xf32>
    %648 = tpu.matmul %646, %647, %cst_262 {dimension_numbers = #tpu.dot_dimension_numbers<[1], [0], [0], [1], [0, 0, 1, 1], [], []>} : vector<8x8xbf16>, vector<8x64xbf16>, vector<8x64xf32> -> vector<8x64xf32>
    %649 = arith.truncf %648 : vector<8x64xf32> to vector<8x64xbf16>
    %c5_263 = arith.constant 5 : index
    %c0_264 = arith.constant 0 : index
    %c0_265 = arith.constant 0 : index
    %650 = vector.load %arg7[%c5_263, %c0_264, %c0_265] : memref<6x64x64xbf16, #tpu.memory_space<vmem>>, vector<1x64x64xbf16>
    %651 = vector.shape_cast %650 : vector<1x64x64xbf16> to vector<64x64xbf16>
    %cst_266 = arith.constant dense<0.000000e+00> : vector<8x64xf32>
    %652 = tpu.matmul %649, %651, %cst_266 {dimension_numbers = #tpu.dot_dimension_numbers<[1], [0], [0], [1], [0, 0, 1, 1], [], []>} : vector<8x64xbf16>, vector<64x64xbf16>, vector<8x64xf32> -> vector<8x64xf32>
    %653 = arith.addf %593, %652 : vector<8x64xf32>
    %c5_267 = arith.constant 5 : index
    %c0_268 = arith.constant 0 : index
    %654 = vector.load %arg8[%c5_267, %c0_268] : memref<6x64xf32, #tpu.memory_space<vmem>>, vector<1x64xf32>
    %655 = vector.shape_cast %654 : vector<1x64xf32> to vector<64xf32>
    %656 = vector.shape_cast %655 : vector<64xf32> to vector<1x64xf32>
    %657 = vector.broadcast %656 : vector<1x64xf32> to vector<8x64xf32>
    %658 = arith.addf %653, %657 : vector<8x64xf32>
    %c5_269 = arith.constant 5 : index
    %c0_270 = arith.constant 0 : index
    %659 = vector.load %arg9[%c5_269, %c0_270] : memref<6x64xf32, #tpu.memory_space<vmem>>, vector<1x64xf32>
    %660 = vector.shape_cast %659 : vector<1x64xf32> to vector<64xf32>
    %c5_271 = arith.constant 5 : index
    %c0_272 = arith.constant 0 : index
    %661 = vector.load %arg10[%c5_271, %c0_272] : memref<6x64xf32, #tpu.memory_space<vmem>>, vector<1x64xf32>
    %662 = vector.shape_cast %661 : vector<1x64xf32> to vector<64xf32>
    %cst_273 = arith.constant dense<0.000000e+00> : vector<8xf32>
    %663 = vector.multi_reduction <add>, %658, %cst_273 [1] : vector<8x64xf32> to vector<8xf32>
    %664 = vector.shape_cast %663 : vector<8xf32> to vector<8x1xf32>
    %cst_274 = arith.constant 6.400000e+01 : f32
    %665 = vector.broadcast %cst_274 : f32 to vector<8x1xf32>
    %666 = arith.divf %664, %665 : vector<8x1xf32>
    %667 = vector.broadcast %666 : vector<8x1xf32> to vector<8x64xf32>
    %668 = arith.subf %658, %667 : vector<8x64xf32>
    %669 = arith.mulf %668, %668 : vector<8x64xf32>
    %cst_275 = arith.constant dense<0.000000e+00> : vector<8xf32>
    %670 = vector.multi_reduction <add>, %669, %cst_275 [1] : vector<8x64xf32> to vector<8xf32>
    %671 = vector.shape_cast %670 : vector<8xf32> to vector<8x1xf32>
    %cst_276 = arith.constant 6.400000e+01 : f32
    %672 = vector.broadcast %cst_276 : f32 to vector<8x1xf32>
    %673 = arith.divf %671, %672 : vector<8x1xf32>
    %cst_277 = arith.constant 9.99999996E-13 : f32
    %674 = vector.broadcast %cst_277 : f32 to vector<8x1xf32>
    %675 = arith.addf %673, %674 : vector<8x1xf32>
    %676 = math.rsqrt %675 : vector<8x1xf32>
    %677 = vector.broadcast %676 : vector<8x1xf32> to vector<8x64xf32>
    %678 = arith.mulf %668, %677 : vector<8x64xf32>
    %679 = vector.shape_cast %660 : vector<64xf32> to vector<1x64xf32>
    %680 = vector.broadcast %679 : vector<1x64xf32> to vector<8x64xf32>
    %681 = arith.mulf %680, %678 : vector<8x64xf32>
    %682 = vector.shape_cast %662 : vector<64xf32> to vector<1x64xf32>
    %683 = vector.broadcast %682 : vector<1x64xf32> to vector<8x64xf32>
    %684 = arith.addf %681, %683 : vector<8x64xf32>
    %685 = arith.truncf %684 : vector<8x64xf32> to vector<8x64xbf16>
    %c5_278 = arith.constant 5 : index
    %c0_279 = arith.constant 0 : index
    %c0_280 = arith.constant 0 : index
    %686 = vector.load %arg11[%c5_278, %c0_279, %c0_280] : memref<6x64x256xbf16, #tpu.memory_space<vmem>>, vector<1x64x256xbf16>
    %687 = vector.shape_cast %686 : vector<1x64x256xbf16> to vector<64x256xbf16>
    %cst_281 = arith.constant dense<0.000000e+00> : vector<8x256xf32>
    %688 = tpu.matmul %685, %687, %cst_281 {dimension_numbers = #tpu.dot_dimension_numbers<[1], [0], [0], [1], [0, 0, 1, 1], [], []>} : vector<8x64xbf16>, vector<64x256xbf16>, vector<8x256xf32> -> vector<8x256xf32>
    %c5_282 = arith.constant 5 : index
    %c0_283 = arith.constant 0 : index
    %689 = vector.load %arg12[%c5_282, %c0_283] : memref<6x256xf32, #tpu.memory_space<vmem>>, vector<1x256xf32>
    %690 = vector.shape_cast %689 : vector<1x256xf32> to vector<256xf32>
    %691 = vector.shape_cast %690 : vector<256xf32> to vector<1x256xf32>
    %692 = vector.broadcast %691 : vector<1x256xf32> to vector<8x256xf32>
    %693 = arith.addf %688, %692 : vector<8x256xf32>
    %cst_284 = arith.constant 1.702000e+00 : f32
    %694 = vector.broadcast %cst_284 : f32 to vector<8x256xf32>
    %695 = arith.mulf %694, %693 : vector<8x256xf32>
    %696 = arith.negf %695 : vector<8x256xf32>
    %697 = math.exp %696 : vector<8x256xf32>
    %cst_285 = arith.constant 1.000000e+00 : f32
    %698 = vector.broadcast %cst_285 : f32 to vector<8x256xf32>
    %699 = arith.addf %698, %697 : vector<8x256xf32>
    %700 = arith.divf %698, %699 : vector<8x256xf32>
    %701 = arith.mulf %693, %700 : vector<8x256xf32>
    %702 = arith.truncf %701 : vector<8x256xf32> to vector<8x256xbf16>
    %c5_286 = arith.constant 5 : index
    %c0_287 = arith.constant 0 : index
    %c0_288 = arith.constant 0 : index
    %703 = vector.load %arg13[%c5_286, %c0_287, %c0_288] : memref<6x256x64xbf16, #tpu.memory_space<vmem>>, vector<1x256x64xbf16>
    %704 = vector.shape_cast %703 : vector<1x256x64xbf16> to vector<256x64xbf16>
    %cst_289 = arith.constant dense<0.000000e+00> : vector<8x64xf32>
    %705 = tpu.matmul %702, %704, %cst_289 {dimension_numbers = #tpu.dot_dimension_numbers<[1], [0], [0], [1], [0, 0, 1, 1], [], []>} : vector<8x256xbf16>, vector<256x64xbf16>, vector<8x64xf32> -> vector<8x64xf32>
    %706 = arith.addf %658, %705 : vector<8x64xf32>
    %c5_290 = arith.constant 5 : index
    %c0_291 = arith.constant 0 : index
    %707 = vector.load %arg14[%c5_290, %c0_291] : memref<6x64xf32, #tpu.memory_space<vmem>>, vector<1x64xf32>
    %708 = vector.shape_cast %707 : vector<1x64xf32> to vector<64xf32>
    %709 = vector.shape_cast %708 : vector<64xf32> to vector<1x64xf32>
    %710 = vector.broadcast %709 : vector<1x64xf32> to vector<8x64xf32>
    %711 = arith.addf %706, %710 : vector<8x64xf32>
    %712 = arith.addf %711, %1 : vector<8x64xf32>
    %cst_292 = arith.constant dense<0.000000e+00> : vector<64xf32>
    %713 = vector.multi_reduction <add>, %712, %cst_292 [0] : vector<8x64xf32> to vector<64xf32>
    %714 = vector.shape_cast %713 : vector<64xf32> to vector<1x64xf32>
    %cst_293 = arith.constant 1.250000e-01 : f32
    %715 = vector.broadcast %cst_293 : f32 to vector<1x64xf32>
    %716 = arith.mulf %714, %715 : vector<1x64xf32>
    %c0_294 = arith.constant 0 : index
    %c0_295 = arith.constant 0 : index
    %c0_296 = arith.constant 0 : index
    %717 = vector.load %arg15[%c0_294, %c0_295, %c0_296] : memref<1x1x64xf32, #tpu.memory_space<vmem>>, vector<1x1x64xf32>
    %718 = vector.shape_cast %717 : vector<1x1x64xf32> to vector<1x64xf32>
    %719 = vector.shape_cast %716 : vector<1x64xf32> to vector<1x1x64xf32>
    tpu.vector_store %arg15[%c0_294, %c0_295, %c0_296], %719 {strides = array<i32>} : memref<1x1x64xf32, #tpu.memory_space<vmem>>, vector<1x1x64xf32>,
    return
  }
  func.func @transform_0(%arg0: i32) -> (i32, i32, i32) {
    %c0_i32 = arith.constant 0 : i32
    %c0_i32_0 = arith.constant 0 : i32
    %c0_i32_1 = arith.constant 0 : i32
    return %arg0, %c0_i32, %c0_i32_0 : i32, i32, i32
  }
  func.func @transform_1(%arg0: i32) -> (i32, i32) {
    %c0_i32 = arith.constant 0 : i32
    %c0_i32_0 = arith.constant 0 : i32
    %c0_i32_1 = arith.constant 0 : i32
    return %c0_i32, %c0_i32_0 : i32, i32
  }
  func.func @transform_2(%arg0: i32) -> (i32, i32) {
    %c0_i32 = arith.constant 0 : i32
    %c0_i32_0 = arith.constant 0 : i32
    %c0_i32_1 = arith.constant 0 : i32
    return %c0_i32, %c0_i32_0 : i32, i32
  }
  func.func @transform_3(%arg0: i32) -> (i32, i32) {
    %c0_i32 = arith.constant 0 : i32
    %c0_i32_0 = arith.constant 0 : i32
    %c0_i32_1 = arith.constant 0 : i32
    return %c0_i32, %c0_i32_0 : i32, i32
  }
  func.func @transform_4(%arg0: i32) -> (i32, i32, i32) {
    %c0_i32 = arith.constant 0 : i32
    %c0_i32_0 = arith.constant 0 : i32
    %c0_i32_1 = arith.constant 0 : i32
    %c0_i32_2 = arith.constant 0 : i32
    return %c0_i32, %c0_i32_0, %c0_i32_1 : i32, i32, i32
  }
  func.func @transform_5(%arg0: i32) -> (i32, i32) {
    %c0_i32 = arith.constant 0 : i32
    %c0_i32_0 = arith.constant 0 : i32
    %c0_i32_1 = arith.constant 0 : i32
    return %c0_i32, %c0_i32_0 : i32, i32
  }
  func.func @transform_6(%arg0: i32) -> (i32, i32, i32) {
    %c0_i32 = arith.constant 0 : i32
    %c0_i32_0 = arith.constant 0 : i32
    %c0_i32_1 = arith.constant 0 : i32
    %c0_i32_2 = arith.constant 0 : i32
    return %c0_i32, %c0_i32_0, %c0_i32_1 : i32, i32, i32
  }
  func.func @transform_7(%arg0: i32) -> (i32, i32) {
    %c0_i32 = arith.constant 0 : i32
    %c0_i32_0 = arith.constant 0 : i32
    %c0_i32_1 = arith.constant 0 : i32
    return %c0_i32, %c0_i32_0 : i32, i32
  }
  func.func @transform_8(%arg0: i32) -> (i32, i32) {
    %c0_i32 = arith.constant 0 : i32
    %c0_i32_0 = arith.constant 0 : i32
    %c0_i32_1 = arith.constant 0 : i32
    return %c0_i32, %c0_i32_0 : i32, i32
  }
  func.func @transform_9(%arg0: i32) -> (i32, i32) {
    %c0_i32 = arith.constant 0 : i32
    %c0_i32_0 = arith.constant 0 : i32
    %c0_i32_1 = arith.constant 0 : i32
    return %c0_i32, %c0_i32_0 : i32, i32
  }
  func.func @transform_10(%arg0: i32) -> (i32, i32, i32) {
    %c0_i32 = arith.constant 0 : i32
    %c0_i32_0 = arith.constant 0 : i32
    %c0_i32_1 = arith.constant 0 : i32
    %c0_i32_2 = arith.constant 0 : i32
    return %c0_i32, %c0_i32_0, %c0_i32_1 : i32, i32, i32
  }
  func.func @transform_11(%arg0: i32) -> (i32, i32) {
    %c0_i32 = arith.constant 0 : i32
    %c0_i32_0 = arith.constant 0 : i32
    %c0_i32_1 = arith.constant 0 : i32
    return %c0_i32, %c0_i32_0 : i32, i32
  }
  func.func @transform_12(%arg0: i32) -> (i32, i32, i32) {
    %c0_i32 = arith.constant 0 : i32
    %c0_i32_0 = arith.constant 0 : i32
    %c0_i32_1 = arith.constant 0 : i32
    %c0_i32_2 = arith.constant 0 : i32
    return %c0_i32, %c0_i32_0, %c0_i32_1 : i32, i32, i32
  }
  func.func @transform_13(%arg0: i32) -> (i32, i32) {
    %c0_i32 = arith.constant 0 : i32
    %c0_i32_0 = arith.constant 0 : i32
    %c0_i32_1 = arith.constant 0 : i32
    return %c0_i32, %c0_i32_0 : i32, i32
  }
  func.func @transform_14(%arg0: i32) -> (i32, i32, i32) {
    %c0_i32 = arith.constant 0 : i32
    %c0_i32_0 = arith.constant 0 : i32
    %c0_i32_1 = arith.constant 0 : i32
    return %arg0, %c0_i32, %c0_i32_0 : i32, i32, i32
  }
}

</mosaic_0001>

<llo_original>
// kernel: tpu_custom_call.1
$region0: #{tpu_custom_call.1}
  #allocation0 [shape = 'u32[]', space=smem, size = 0x4, offset = 0x4, fixed_abs, tag = 'smem constant byte address 0x4 - core index']
  #allocation1 [shape = 'u32[72,128]{1,0:T(1,128)}', space=vmem, size = 0x9000, scoped, tag = 'internal scratch']
  %s0 = inlined_call_operand.hbm [shape: f32[2,8,64], index: 0, kind: input, shape index: {}]
  %s1 = inlined_call_operand.hbm [shape: f32[8,64], index: 1, kind: input, shape index: {}]
  %s2 = inlined_call_operand.hbm [shape: f32[6,64], index: 2, kind: input, shape index: {}]
  %s3 = inlined_call_operand.hbm [shape: f32[6,64], index: 3, kind: input, shape index: {}]
  %s4 = inlined_call_operand.vmem [shape: bf16[6,64,384], index: 4, kind: input, shape index: {}]
  %s5 = inlined_call_operand.hbm [shape: f32[6,384], index: 5, kind: input, shape index: {}]
  %s6 = inlined_call_operand.vmem [shape: bf16[6,64,64], index: 6, kind: input, shape index: {}]
  %s7 = inlined_call_operand.hbm [shape: f32[6,64], index: 7, kind: input, shape index: {}]
  %s8 = inlined_call_operand.hbm [shape: f32[6,64], index: 8, kind: input, shape index: {}]
  %s9 = inlined_call_operand.hbm [shape: f32[6,64], index: 9, kind: input, shape index: {}]
  %s10 = inlined_call_operand.vmem [shape: bf16[6,64,256], index: 10, kind: input, shape index: {}]
  %s11 = inlined_call_operand.hbm [shape: f32[6,256], index: 11, kind: input, shape index: {}]
  %s12 = inlined_call_operand.vmem [shape: bf16[6,256,64], index: 12, kind: input, shape index: {}]
  %s13 = inlined_call_operand.vmem [shape: f32[6,64], index: 13, kind: input, shape index: {}]
  %s14 = inlined_call_operand.hbm [shape: f32[2,1,64], index: 14, kind: output, shape index: {}]
  %s15 = sld [smem:[#allocation0]]
  $region125: #{tpu_custom_call.1} parent=0
    _
  %s17 = ssub.s32 1, %s15
  %s18 = scalar_select 0, %s17, %s15
  $region1: #{tpu_custom_call.1} parent=0
    #allocation2 [shape = 'u8[8192]{0}', space=vmem, size = 0x2000, scoped, tag = 'input window, operand 0']
    #allocation3 [shape = 's32[2]{0}', space=sflag, size = 0x8, scoped, tag = 'scoped memory for tpu_custom_call.1']
    #allocation4 [shape = 's32[2]{0}', space=sflag, size = 0x8, scoped, tag = 'scoped memory for tpu_custom_call.1']
    #allocation5 [shape = 'u8[4096]{0}', space=vmem, size = 0x1000, scoped, tag = 'input window, operand 1, single buffered']
    #allocation6 [shape = 's32[1]{0}', space=sflag, size = 0x4, scoped, tag = 'scoped memory for tpu_custom_call.1']
    #allocation7 [shape = 'u8[4096]{0}', space=vmem, size = 0x1000, scoped, tag = 'input window, operand 2, single buffered']
    #allocation8 [shape = 'u8[4096]{0}', space=vmem, size = 0x1000, scoped, tag = 'input window, operand 3, single buffered']
    #allocation9 [shape = 's32[1]{0}', space=sflag, size = 0x4, scoped, tag = 'scoped memory for tpu_custom_call.1']
    #allocation10 [shape = 'u8[12288]{0}', space=vmem, size = 0x3000, scoped, tag = 'input window, operand 5, single buffered']
    #allocation11 [shape = 'u8[4096]{0}', space=vmem, size = 0x1000, scoped, tag = 'input window, operand 7, single buffered']
    #allocation12 [shape = 's32[1]{0}', space=sflag, size = 0x4, scoped, tag = 'scoped memory for tpu_custom_call.1']
    #allocation13 [shape = 'u8[4096]{0}', space=vmem, size = 0x1000, scoped, tag = 'input window, operand 8, single buffered']
    #allocation14 [shape = 'u8[4096]{0}', space=vmem, size = 0x1000, scoped, tag = 'input window, operand 9, single buffered']
    #allocation15 [shape = 's32[1]{0}', space=sflag, size = 0x4, scoped, tag = 'scoped memory for tpu_custom_call.1']
    #allocation16 [shape = 'u8[8192]{0}', space=vmem, size = 0x2000, scoped, tag = 'input window, operand 11, single buffered']
    #allocation17 [shape = 'u8[1024]{0}', space=vmem, size = 0x400, scoped, tag = 'output window, operand 0']
    %19 = vsyncpa [#allocation3], 0
    %s20 = scalar_lea.sflag [#allocation3], 1
    %21 = vsyncpa %s20, 0
    %22 = vsyncpa [#allocation6], 0
    %23 = vsyncpa [#allocation9], 0
    %24 = vsyncpa [#allocation12], 0
    %25 = vsyncpa [#allocation15], 0
    %26 = vsyncpa [#allocation4], 0
    %s27 = scalar_lea.sflag [#allocation4], 1
    %28 = vsyncpa %s27, 0
    loop: start=0, step=1, limit=4
    $region2: #{tpu_custom_call.1} parent=1 // loop_pre_header
      _
    $region3: #{tpu_custom_call.1} parent=1 // loop_header
      %s30 = sphi 0, %s34
      %p31 = scmp.ge.s32.totalorder %s30, 4
      %s40 = sphi 0, %s42
      %s43 = sphi 0, %s40
      %s44 = sphi 0, %s43
      %s60 = sphi 0, %s44
      %s64 = sphi 0, %s64
      %s66 = sphi 0, %s64
      %s67 = sphi 0, %s66
      %s81 = sphi 0, %s67
      %s85 = sphi 0, %s85
      %s87 = sphi 0, %s85
      %s88 = sphi 0, %s87
      %s102 = sphi 0, %s88
      %s106 = sphi 0, %s106
      %s108 = sphi 0, %s106
      %s109 = sphi 0, %s108
      %s123 = sphi 0, %s109
      %s127 = sphi 0, %s127
      %s129 = sphi 0, %s127
      %s130 = sphi 0, %s129
      %s144 = sphi 0, %s130
      %s148 = sphi 0, %s148
      %s150 = sphi 0, %s148
      %s151 = sphi 0, %s150
      %s165 = sphi 0, %s151
      %s169 = sphi 0, %s169
      %s171 = sphi 0, %s169
      %s172 = sphi 0, %s171
      %s186 = sphi 0, %s172
      %s190 = sphi 0, %s190
      %s192 = sphi 0, %s190
      %s193 = sphi 0, %s192
      %s207 = sphi 0, %s193
      %s211 = sphi 0, %s211
      %s213 = sphi 0, %s211
      %s214 = sphi 0, %s213
      %s228 = sphi 0, %s214
      %s232 = sphi 0, %s232
      %s234 = sphi 0, %s232
      %s235 = sphi 0, %s234
      %s249 = sphi 0, %s235
      %s253 = sphi 0, %s253
      %s255 = sphi 0, %s253
      %s256 = sphi 0, %s255
      %s270 = sphi 0, %s256
      %s274 = sphi 0, %s274
      %s276 = sphi 0, %s274
      %s277 = sphi 0, %s276
      %s291 = sphi 0, %s277
      %s295 = sphi 0, %s295
      %s297 = sphi 0, %s295
      %s298 = sphi 0, %s297
      %s312 = sphi 0, %s298
      %s316 = sphi 0, %s316
      %s318 = sphi 0, %s316
      %s319 = sphi 0, %s318
      %s333 = sphi 0, %s319
      %s339 = sphi 0, %s341
      %s342 = sphi 0, %s339
      %s343 = sphi 0, %s342
      %s359 = sphi 0, %s343
    $region4: #{tpu_custom_call.1} parent=1 // loop_header_branch
      %33 = sbr.rel (%p31) target = $region8
    $region5: #{tpu_custom_call.1} parent=1 // loop_body
      %s35 = ssub.s32 %s30, 1
      %s36 = ssub.s32 %s30, 2
      %s37 = sadd.s32 %s30, 1
      %s38 = ssub.s32 %s30, %s37
      %p39 = scmp.eq.s32.totalorder %s38, 0
      %s41 = sadd.s32 %s40, 1
      %s42 = scalar_select %p39, %s40, %s41
      %p45 = pneg %p39
      %p46 = scmp.eq.s32.totalorder %s30, 1
      %p47 = por %p45, %p46
      %p48 = scmp.ne.s32.totalorder %s40, %s43
      %p49 = scmp.eq.s32.totalorder %s30, 0
      %p50 = por %p48, %p49
      %p51 = scmp.ne.s32.totalorder %s40, %s43
      %p52 = scmp.eq.s32.totalorder %s35, 1
      %p53 = por %p51, %p52
      %p54 = scmp.ne.s32.totalorder %s43, %s44
      %p55 = scmp.eq.s32.totalorder %s35, 0
      %p56 = por %p54, %p55
      %p57 = scmp.ne.s32.totalorder %s43, %s44
      %p58 = scmp.eq.s32.totalorder %s36, 1
      %p59 = por %p57, %p58
      %p61 = scmp.ne.s32.totalorder %s44, %s60
      %p62 = scmp.eq.s32.totalorder %s36, 0
      %p63 = por %p61, %p62
      %s65 = sadd.s32 %s64, 1
      %p68 = scmp.eq.s32.totalorder %s30, 1
      %p69 = scmp.ne.s32.totalorder %s64, %s66
      %p70 = scmp.eq.s32.totalorder %s30, 0
      %p71 = por %p69, %p70
      %p72 = scmp.ne.s32.totalorder %s64, %s66
      %p73 = scmp.eq.s32.totalorder %s35, 1
      %p74 = por %p72, %p73
      %p75 = scmp.ne.s32.totalorder %s66, %s67
      %p76 = scmp.eq.s32.totalorder %s35, 0
      %p77 = por %p75, %p76
      %p78 = scmp.ne.s32.totalorder %s66, %s67
      %p79 = scmp.eq.s32.totalorder %s36, 1
      %p80 = por %p78, %p79
      %p82 = scmp.ne.s32.totalorder %s67, %s81
      %p83 = scmp.eq.s32.totalorder %s36, 0
      %p84 = por %p82, %p83
      %s86 = sadd.s32 %s85, 1
      %p89 = scmp.eq.s32.totalorder %s30, 1
      %p90 = scmp.ne.s32.totalorder %s85, %s87
      %p91 = scmp.eq.s32.totalorder %s30, 0
      %p92 = por %p90, %p91
      %p93 = scmp.ne.s32.totalorder %s85, %s87
      %p94 = scmp.eq.s32.totalorder %s35, 1
      %p95 = por %p93, %p94
      %p96 = scmp.ne.s32.totalorder %s87, %s88
      %p97 = scmp.eq.s32.totalorder %s35, 0
      %p98 = por %p96, %p97
      %p99 = scmp.ne.s32.totalorder %s87, %s88
      %p100 = scmp.eq.s32.totalorder %s36, 1
      %p101 = por %p99, %p100
      %p103 = scmp.ne.s32.totalorder %s88, %s102
      %p104 = scmp.eq.s32.totalorder %s36, 0
      %p105 = por %p103, %p104
      %s107 = sadd.s32 %s106, 1
      %p110 = scmp.eq.s32.totalorder %s30, 1
      %p111 = scmp.ne.s32.totalorder %s106, %s108
      %p112 = scmp.eq.s32.totalorder %s30, 0
      %p113 = por %p111, %p112
      %p114 = scmp.ne.s32.totalorder %s106, %s108
      %p115 = scmp.eq.s32.totalorder %s35, 1
      %p116 = por %p114, %p115
      %p117 = scmp.ne.s32.totalorder %s108, %s109
      %p118 = scmp.eq.s32.totalorder %s35, 0
      %p119 = por %p117, %p118
      %p120 = scmp.ne.s32.totalorder %s108, %s109
      %p121 = scmp.eq.s32.totalorder %s36, 1
      %p122 = por %p120, %p121
      %p124 = scmp.ne.s32.totalorder %s109, %s123
      %p125 = scmp.eq.s32.totalorder %s36, 0
      %p126 = por %p124, %p125
      %s128 = sadd.s32 %s127, 1
      %p131 = scmp.eq.s32.totalorder %s30, 1
      %p132 = scmp.ne.s32.totalorder %s127, %s129
      %p133 = scmp.eq.s32.totalorder %s30, 0
      %p134 = por %p132, %p133
      %p135 = scmp.ne.s32.totalorder %s127, %s129
      %p136 = scmp.eq.s32.totalorder %s35, 1
      %p137 = por %p135, %p136
      %p138 = scmp.ne.s32.totalorder %s129, %s130
      %p139 = scmp.eq.s32.totalorder %s35, 0
      %p140 = por %p138, %p139
      %p141 = scmp.ne.s32.totalorder %s129, %s130
      %p142 = scmp.eq.s32.totalorder %s36, 1
      %p143 = por %p141, %p142
      %p145 = scmp.ne.s32.totalorder %s130, %s144
      %p146 = scmp.eq.s32.totalorder %s36, 0
      %p147 = por %p145, %p146
      %s149 = sadd.s32 %s148, 1
      %p152 = scmp.eq.s32.totalorder %s30, 1
      %p153 = scmp.ne.s32.totalorder %s148, %s150
      %p154 = scmp.eq.s32.totalorder %s30, 0
      %p155 = por %p153, %p154
      %p156 = scmp.ne.s32.totalorder %s148, %s150
      %p157 = scmp.eq.s32.totalorder %s35, 1
      %p158 = por %p156, %p157
      %p159 = scmp.ne.s32.totalorder %s150, %s151
      %p160 = scmp.eq.s32.totalorder %s35, 0
      %p161 = por %p159, %p160
      %p162 = scmp.ne.s32.totalorder %s150, %s151
      %p163 = scmp.eq.s32.totalorder %s36, 1
      %p164 = por %p162, %p163
      %p166 = scmp.ne.s32.totalorder %s151, %s165
      %p167 = scmp.eq.s32.totalorder %s36, 0
      %p168 = por %p166, %p167
      %s170 = sadd.s32 %s169, 1
      %p173 = scmp.eq.s32.totalorder %s30, 1
      %p174 = scmp.ne.s32.totalorder %s169, %s171
      %p175 = scmp.eq.s32.totalorder %s30, 0
      %p176 = por %p174, %p175
      %p177 = scmp.ne.s32.totalorder %s169, %s171
      %p178 = scmp.eq.s32.totalorder %s35, 1
      %p179 = por %p177, %p178
      %p180 = scmp.ne.s32.totalorder %s171, %s172
      %p181 = scmp.eq.s32.totalorder %s35, 0
      %p182 = por %p180, %p181
      %p183 = scmp.ne.s32.totalorder %s171, %s172
      %p184 = scmp.eq.s32.totalorder %s36, 1
      %p185 = por %p183, %p184
      %p187 = scmp.ne.s32.totalorder %s172, %s186
      %p188 = scmp.eq.s32.totalorder %s36, 0
      %p189 = por %p187, %p188
      %s191 = sadd.s32 %s190, 1
      %p194 = scmp.eq.s32.totalorder %s30, 1
      %p195 = scmp.ne.s32.totalorder %s190, %s192
      %p196 = scmp.eq.s32.totalorder %s30, 0
      %p197 = por %p195, %p196
      %p198 = scmp.ne.s32.totalorder %s190, %s192
      %p199 = scmp.eq.s32.totalorder %s35, 1
      %p200 = por %p198, %p199
      %p201 = scmp.ne.s32.totalorder %s192, %s193
      %p202 = scmp.eq.s32.totalorder %s35, 0
      %p203 = por %p201, %p202
      %p204 = scmp.ne.s32.totalorder %s192, %s193
      %p205 = scmp.eq.s32.totalorder %s36, 1
      %p206 = por %p204, %p205
      %p208 = scmp.ne.s32.totalorder %s193, %s207
      %p209 = scmp.eq.s32.totalorder %s36, 0
      %p210 = por %p208, %p209
      %s212 = sadd.s32 %s211, 1
      %p215 = scmp.eq.s32.totalorder %s30, 1
      %p216 = scmp.ne.s32.totalorder %s211, %s213
      %p217 = scmp.eq.s32.totalorder %s30, 0
      %p218 = por %p216, %p217
      %p219 = scmp.ne.s32.totalorder %s211, %s213
      %p220 = scmp.eq.s32.totalorder %s35, 1
      %p221 = por %p219, %p220
      %p222 = scmp.ne.s32.totalorder %s213, %s214
      %p223 = scmp.eq.s32.totalorder %s35, 0
      %p224 = por %p222, %p223
      %p225 = scmp.ne.s32.totalorder %s213, %s214
      %p226 = scmp.eq.s32.totalorder %s36, 1
      %p227 = por %p225, %p226
      %p229 = scmp.ne.s32.totalorder %s214, %s228
      %p230 = scmp.eq.s32.totalorder %s36, 0
      %p231 = por %p229, %p230
      %s233 = sadd.s32 %s232, 1
      %p236 = scmp.eq.s32.totalorder %s30, 1
      %p237 = scmp.ne.s32.totalorder %s232, %s234
      %p238 = scmp.eq.s32.totalorder %s30, 0
      %p239 = por %p237, %p238
      %p240 = scmp.ne.s32.totalorder %s232, %s234
      %p241 = scmp.eq.s32.totalorder %s35, 1
      %p242 = por %p240, %p241
      %p243 = scmp.ne.s32.totalorder %s234, %s235
      %p244 = scmp.eq.s32.totalorder %s35, 0
      %p245 = por %p243, %p244
      %p246 = scmp.ne.s32.totalorder %s234, %s235
      %p247 = scmp.eq.s32.totalorder %s36, 1
      %p248 = por %p246, %p247
      %p250 = scmp.ne.s32.totalorder %s235, %s249
      %p251 = scmp.eq.s32.totalorder %s36, 0
      %p252 = por %p250, %p251
      %s254 = sadd.s32 %s253, 1
      %p257 = scmp.eq.s32.totalorder %s30, 1
      %p258 = scmp.ne.s32.totalorder %s253, %s255
      %p259 = scmp.eq.s32.totalorder %s30, 0
      %p260 = por %p258, %p259
      %p261 = scmp.ne.s32.totalorder %s253, %s255
      %p262 = scmp.eq.s32.totalorder %s35, 1
      %p263 = por %p261, %p262
      %p264 = scmp.ne.s32.totalorder %s255, %s256
      %p265 = scmp.eq.s32.totalorder %s35, 0
      %p266 = por %p264, %p265
      %p267 = scmp.ne.s32.totalorder %s255, %s256
      %p268 = scmp.eq.s32.totalorder %s36, 1
      %p269 = por %p267, %p268
      %p271 = scmp.ne.s32.totalorder %s256, %s270
      %p272 = scmp.eq.s32.totalorder %s36, 0
      %p273 = por %p271, %p272
      %s275 = sadd.s32 %s274, 1
      %p278 = scmp.eq.s32.totalorder %s30, 1
      %p279 = scmp.ne.s32.totalorder %s274, %s276
      %p280 = scmp.eq.s32.totalorder %s30, 0
      %p281 = por %p279, %p280
      %p282 = scmp.ne.s32.totalorder %s274, %s276
      %p283 = scmp.eq.s32.totalorder %s35, 1
      %p284 = por %p282, %p283
      %p285 = scmp.ne.s32.totalorder %s276, %s277
      %p286 = scmp.eq.s32.totalorder %s35, 0
      %p287 = por %p285, %p286
      %p288 = scmp.ne.s32.totalorder %s276, %s277
      %p289 = scmp.eq.s32.totalorder %s36, 1
      %p290 = por %p288, %p289
      %p292 = scmp.ne.s32.totalorder %s277, %s291
      %p293 = scmp.eq.s32.totalorder %s36, 0
      %p294 = por %p292, %p293
      %s296 = sadd.s32 %s295, 1
      %p299 = scmp.eq.s32.totalorder %s30, 1
      %p300 = scmp.ne.s32.totalorder %s295, %s297
      %p301 = scmp.eq.s32.totalorder %s30, 0
      %p302 = por %p300, %p301
      %p303 = scmp.ne.s32.totalorder %s295, %s297
      %p304 = scmp.eq.s32.totalorder %s35, 1
      %p305 = por %p303, %p304
      %p306 = scmp.ne.s32.totalorder %s297, %s298
      %p307 = scmp.eq.s32.totalorder %s35, 0
      %p308 = por %p306, %p307
      %p309 = scmp.ne.s32.totalorder %s297, %s298
      %p310 = scmp.eq.s32.totalorder %s36, 1
      %p311 = por %p309, %p310
      %p313 = scmp.ne.s32.totalorder %s298, %s312
      %p314 = scmp.eq.s32.totalorder %s36, 0
      %p315 = por %p313, %p314
      %s317 = sadd.s32 %s316, 1
      %p320 = scmp.eq.s32.totalorder %s30, 1
      %p321 = scmp.ne.s32.totalorder %s316, %s318
      %p322 = scmp.eq.s32.totalorder %s30, 0
      %p323 = por %p321, %p322
      %p324 = scmp.ne.s32.totalorder %s316, %s318
      %p325 = scmp.eq.s32.totalorder %s35, 1
      %p326 = por %p324, %p325
      %p327 = scmp.ne.s32.totalorder %s318, %s319
      %p328 = scmp.eq.s32.totalorder %s35, 0
      %p329 = por %p327, %p328
      %p330 = scmp.ne.s32.totalorder %s318, %s319
      %p331 = scmp.eq.s32.totalorder %s36, 1
      %p332 = por %p330, %p331
      %p334 = scmp.ne.s32.totalorder %s319, %s333
      %p335 = scmp.eq.s32.totalorder %s36, 0
      %p336 = por %p334, %p335
      %s337 = ssub.s32 %s30, %s37
      %p338 = scmp.eq.s32.totalorder %s337, 0
      %s340 = sadd.s32 %s339, 1
      %s341 = scalar_select %p338, %s339, %s340
      %p344 = pneg %p338
      %p345 = scmp.eq.s32.totalorder %s30, 1
      %p346 = por %p344, %p345
      %p347 = scmp.ne.s32.totalorder %s339, %s342
      %p348 = scmp.eq.s32.totalorder %s30, 0
      %p349 = por %p347, %p348
      %p350 = scmp.ne.s32.totalorder %s339, %s342
      %p351 = scmp.eq.s32.totalorder %s35, 1
      %p352 = por %p350, %p351
      %p353 = scmp.ne.s32.totalorder %s342, %s343
      %p354 = scmp.eq.s32.totalorder %s35, 0
      %p355 = por %p353, %p354
      %p356 = scmp.ne.s32.totalorder %s342, %s343
      %p357 = scmp.eq.s32.totalorder %s36, 1
      %p358 = por %p356, %p357
      %p360 = scmp.ne.s32.totalorder %s343, %s359
      %p361 = scmp.eq.s32.totalorder %s36, 0
      %p362 = por %p360, %p361
      %p363 = scmp.le.s32.totalorder 1, %s30
      %p364 = scmp.lt.s32.totalorder %s30, 3
      %p365 = pnand %p363, %p364
      %p366 = pneg %p365
      // Predicated region
      $region9: #{tpu_custom_call.1} parent=5 // pred_check
        _
      $region10: #{tpu_custom_call.1} parent=5 // pred_check_branch
        %368 = sbr.rel (%p365) target = $region12
      $region11: #{tpu_custom_call.1} parent=5 // pred_region
        %s369 = ssub.s32 %s30, 1
        // Predicated region
        $region13: #{tpu_custom_call.1} parent=11 // pred_check
          %p370 = pneg %p77
        $region14: #{tpu_custom_call.1} parent=11 // pred_check_branch
          %372 = sbr.rel (%p370) target = $region16
        $region15: #{tpu_custom_call.1} parent=11 // pred_region
          %374 = vsyncadd [#allocation6], 0
          %s376 = sshll.u32 %s1, 4
          %s377 = int_to_ptr.hbm [resolvable:$true] %s376
          %s378 = sshll.u32 [#allocation5], 4
          %s379 = int_to_ptr.vmem [resolvable:$true] %s378
          %381 = dma.hbm_to_vmem [thread:$0]  %s377, 128, %s379, [#allocation6]
        $region16: #{tpu_custom_call.1} parent=11 // pred_fallthru
          _
        // Predicated region
        $region17: #{tpu_custom_call.1} parent=11 // pred_check
          %p382 = pneg %p98
        $region18: #{tpu_custom_call.1} parent=11 // pred_check_branch
          %384 = sbr.rel (%p382) target = $region20
        $region19: #{tpu_custom_call.1} parent=11 // pred_region
          %386 = vsyncadd [#allocation6], 0
          %s388 = sshll.u32 %s2, 4
          %s389 = int_to_ptr.hbm [resolvable:$true] %s388
          %s390 = sshll.u32 [#allocation7], 4
          %s391 = int_to_ptr.vmem [resolvable:$true] %s390
          %393 = dma.hbm_to_vmem [thread:$0]  %s389, 128, %s391, [#allocation6]
        $region20: #{tpu_custom_call.1} parent=11 // pred_fallthru
          _
        // Predicated region
        $region21: #{tpu_custom_call.1} parent=11 // pred_check
          %p394 = pneg %p119
        $region22: #{tpu_custom_call.1} parent=11 // pred_check_branch
          %396 = sbr.rel (%p394) target = $region24
        $region23: #{tpu_custom_call.1} parent=11 // pred_region
          %398 = vsyncadd [#allocation9], 0
          %s400 = sshll.u32 %s3, 4
          %s401 = int_to_ptr.hbm [resolvable:$true] %s400
          %s402 = sshll.u32 [#allocation8], 4
          %s403 = int_to_ptr.vmem [resolvable:$true] %s402
          %405 = dma.hbm_to_vmem [thread:$0]  %s401, 128, %s403, [#allocation9]
        $region24: #{tpu_custom_call.1} parent=11 // pred_fallthru
          _
        // Predicated region
        $region25: #{tpu_custom_call.1} parent=11 // pred_check
          %p406 = pneg %p140
        $region26: #{tpu_custom_call.1} parent=11 // pred_check_branch
          %408 = sbr.rel (%p406) target = $region28
        $region27: #{tpu_custom_call.1} parent=11 // pred_region
          _
        $region28: #{tpu_custom_call.1} parent=11 // pred_fallthru
          _
        // Predicated region
        $region29: #{tpu_custom_call.1} parent=11 // pred_check
          %p409 = pneg %p161
        $region30: #{tpu_custom_call.1} parent=11 // pred_check_branch
          %411 = sbr.rel (%p409) target = $region32
        $region31: #{tpu_custom_call.1} parent=11 // pred_region
          %413 = vsyncadd [#allocation9], 0
          %s415 = sshll.u32 %s5, 4
          %s416 = int_to_ptr.hbm [resolvable:$true] %s415
          %s417 = sshll.u32 [#allocation10], 4
          %s418 = int_to_ptr.vmem [resolvable:$true] %s417
          %420 = dma.hbm_to_vmem [thread:$0]  %s416, 384, %s418, [#allocation9]
        $region32: #{tpu_custom_call.1} parent=11 // pred_fallthru
          _
        // Predicated region
        $region33: #{tpu_custom_call.1} parent=11 // pred_check
          %p421 = pneg %p182
        $region34: #{tpu_custom_call.1} parent=11 // pred_check_branch
          %423 = sbr.rel (%p421) target = $region36
        $region35: #{tpu_custom_call.1} parent=11 // pred_region
          _
        $region36: #{tpu_custom_call.1} parent=11 // pred_fallthru
          _
        // Predicated region
        $region37: #{tpu_custom_call.1} parent=11 // pred_check
          %p424 = pneg %p203
        $region38: #{tpu_custom_call.1} parent=11 // pred_check_branch
          %426 = sbr.rel (%p424) target = $region40
        $region39: #{tpu_custom_call.1} parent=11 // pred_region
          %428 = vsyncadd [#allocation12], 0
          %s430 = sshll.u32 %s7, 4
          %s431 = int_to_ptr.hbm [resolvable:$true] %s430
          %s432 = sshll.u32 [#allocation11], 4
          %s433 = int_to_ptr.vmem [resolvable:$true] %s432
          %435 = dma.hbm_to_vmem [thread:$0]  %s431, 128, %s433, [#allocation12]
        $region40: #{tpu_custom_call.1} parent=11 // pred_fallthru
          _
        // Predicated region
        $region41: #{tpu_custom_call.1} parent=11 // pred_check
          %p436 = pneg %p224
        $region42: #{tpu_custom_call.1} parent=11 // pred_check_branch
          %438 = sbr.rel (%p436) target = $region44
        $region43: #{tpu_custom_call.1} parent=11 // pred_region
          %440 = vsyncadd [#allocation12], 0
          %s442 = sshll.u32 %s8, 4
          %s443 = int_to_ptr.hbm [resolvable:$true] %s442
          %s444 = sshll.u32 [#allocation13], 4
          %s445 = int_to_ptr.vmem [resolvable:$true] %s444
          %447 = dma.hbm_to_vmem [thread:$0]  %s443, 128, %s445, [#allocation12]
        $region44: #{tpu_custom_call.1} parent=11 // pred_fallthru
          _
        // Predicated region
        $region45: #{tpu_custom_call.1} parent=11 // pred_check
          %p448 = pneg %p245
        $region46: #{tpu_custom_call.1} parent=11 // pred_check_branch
          %450 = sbr.rel (%p448) target = $region48
        $region47: #{tpu_custom_call.1} parent=11 // pred_region
          %452 = vsyncadd [#allocation15], 0
          %s454 = sshll.u32 %s9, 4
          %s455 = int_to_ptr.hbm [resolvable:$true] %s454
          %s456 = sshll.u32 [#allocation14], 4
          %s457 = int_to_ptr.vmem [resolvable:$true] %s456
          %459 = dma.hbm_to_vmem [thread:$0]  %s455, 128, %s457, [#allocation15]
        $region48: #{tpu_custom_call.1} parent=11 // pred_fallthru
          _
        // Predicated region
        $region49: #{tpu_custom_call.1} parent=11 // pred_check
          %p460 = pneg %p266
        $region50: #{tpu_custom_call.1} parent=11 // pred_check_branch
          %462 = sbr.rel (%p460) target = $region52
        $region51: #{tpu_custom_call.1} parent=11 // pred_region
          _
        $region52: #{tpu_custom_call.1} parent=11 // pred_fallthru
          _
        // Predicated region
        $region53: #{tpu_custom_call.1} parent=11 // pred_check
          %p463 = pneg %p287
        $region54: #{tpu_custom_call.1} parent=11 // pred_check_branch
          %465 = sbr.rel (%p463) target = $region56
        $region55: #{tpu_custom_call.1} parent=11 // pred_region
          %467 = vsyncadd [#allocation15], 0
          %s469 = sshll.u32 %s11, 4
          %s470 = int_to_ptr.hbm [resolvable:$true] %s469
          %s471 = sshll.u32 [#allocation16], 4
          %s472 = int_to_ptr.vmem [resolvable:$true] %s471
          %474 = dma.hbm_to_vmem [thread:$0]  %s470, 256, %s472, [#allocation15]
        $region56: #{tpu_custom_call.1} parent=11 // pred_fallthru
          _
        // Predicated region
        $region57: #{tpu_custom_call.1} parent=11 // pred_check
          %p475 = pneg %p308
        $region58: #{tpu_custom_call.1} parent=11 // pred_check_branch
          %477 = sbr.rel (%p475) target = $region60
        $region59: #{tpu_custom_call.1} parent=11 // pred_region
          _
        $region60: #{tpu_custom_call.1} parent=11 // pred_fallthru
          _
        // Predicated region
        $region61: #{tpu_custom_call.1} parent=11 // pred_check
          %p478 = pneg %p329
        $region62: #{tpu_custom_call.1} parent=11 // pred_check_branch
          %480 = sbr.rel (%p478) target = $region64
        $region63: #{tpu_custom_call.1} parent=11 // pred_region
          _
        $region64: #{tpu_custom_call.1} parent=11 // pred_fallthru
          _
      $region12: #{tpu_custom_call.1} parent=5 // pred_fallthru
        _
      %p481 = scmp.lt.s32.totalorder %s30, 2
      // Predicated region
      $region65: #{tpu_custom_call.1} parent=5 // pred_check
        %p482 = pneg %p481
      $region66: #{tpu_custom_call.1} parent=5 // pred_check_branch
        %484 = sbr.rel (%p482) target = $region68
      $region67: #{tpu_custom_call.1} parent=5 // pred_region
        // Predicated region
        $region69: #{tpu_custom_call.1} parent=67 // pred_check
          %p485 = pneg %p50
        $region70: #{tpu_custom_call.1} parent=67 // pred_check_branch
          %487 = sbr.rel (%p485) target = $region72
        $region71: #{tpu_custom_call.1} parent=67 // pred_region
          %s488 = sand.u32 %s40, 1
          %s489 = scalar_lea.sflag [#allocation3], %s488
          %s490 = sand.u32 %s40, 1
          %s491 = smul.addr %s490, 8
          %s492 = scalar_lea.vmem [#allocation2], %s491
          %494 = vsyncadd %s489, 0
          %s495 = smul.addr %s30, 8
          %s496 = scalar_lea.hbm %s0, %s495
          %s498 = sshll.u32 %s496, 4
          %s499 = int_to_ptr.hbm [resolvable:$true] %s498
          %s500 = sshll.u32 %s492, 4
          %s501 = int_to_ptr.vmem [resolvable:$true] %s500
          %503 = dma.hbm_to_vmem [thread:$0]  %s499, 128, %s501, %s489
        $region72: #{tpu_custom_call.1} parent=67 // pred_fallthru
          _
      $region68: #{tpu_custom_call.1} parent=5 // pred_fallthru
        _
      %p504 = scmp.le.s32.totalorder 1, %s30
      %p505 = scmp.lt.s32.totalorder %s30, 3
      %p506 = pnand %p504, %p505
      %p507 = pneg %p506
      // Predicated region
      $region73: #{tpu_custom_call.1} parent=5 // pred_check
        _
      $region74: #{tpu_custom_call.1} parent=5 // pred_check_branch
        %509 = sbr.rel (%p506) target = $region76
      $region75: #{tpu_custom_call.1} parent=5 // pred_region
        %s510 = ssub.s32 %s30, 1
        %s511 = sand.u32 %s43, 1
        %s512 = scalar_lea.sflag [#allocation3], %s511
        %s513 = sand.u32 %s43, 1
        %s514 = smul.addr %s513, 8
        %s515 = scalar_lea.vmem [#allocation2], %s514
        // Predicated region
        $region77: #{tpu_custom_call.1} parent=75 // pred_check
          %p516 = pneg %p56
        $region78: #{tpu_custom_call.1} parent=75 // pred_check_branch
          %518 = sbr.rel (%p516) target = $region80
        $region79: #{tpu_custom_call.1} parent=75 // pred_region
          %520 = dma.done %s512, 128
        $region80: #{tpu_custom_call.1} parent=75 // pred_fallthru
          _
        // Predicated region
        $region81: #{tpu_custom_call.1} parent=75 // pred_check
          %p521 = pneg %p77
        $region82: #{tpu_custom_call.1} parent=75 // pred_check_branch
          %523 = sbr.rel (%p521) target = $region84
        $region83: #{tpu_custom_call.1} parent=75 // pred_region
          %525 = dma.done [#allocation6], 128
        $region84: #{tpu_custom_call.1} parent=75 // pred_fallthru
          _
        // Predicated region
        $region85: #{tpu_custom_call.1} parent=75 // pred_check
          %p526 = pneg %p98
        $region86: #{tpu_custom_call.1} parent=75 // pred_check_branch
          %528 = sbr.rel (%p526) target = $region88
        $region87: #{tpu_custom_call.1} parent=75 // pred_region
          %530 = dma.done [#allocation6], 128
        $region88: #{tpu_custom_call.1} parent=75 // pred_fallthru
          _
        // Predicated region
        $region89: #{tpu_custom_call.1} parent=75 // pred_check
          %p531 = pneg %p119
        $region90: #{tpu_custom_call.1} parent=75 // pred_check_branch
          %533 = sbr.rel (%p531) target = $region92
        $region91: #{tpu_custom_call.1} parent=75 // pred_region
          %535 = dma.done [#allocation9], 128
        $region92: #{tpu_custom_call.1} parent=75 // pred_fallthru
          _
        // Predicated region
        $region93: #{tpu_custom_call.1} parent=75 // pred_check
          %p536 = pneg %p161
        $region94: #{tpu_custom_call.1} parent=75 // pred_check_branch
          %538 = sbr.rel (%p536) target = $region96
        $region95: #{tpu_custom_call.1} parent=75 // pred_region
          %540 = dma.done [#allocation9], 384
        $region96: #{tpu_custom_call.1} parent=75 // pred_fallthru
          _
        // Predicated region
        $region97: #{tpu_custom_call.1} parent=75 // pred_check
          %p541 = pneg %p203
        $region98: #{tpu_custom_call.1} parent=75 // pred_check_branch
          %543 = sbr.rel (%p541) target = $region100
        $region99: #{tpu_custom_call.1} parent=75 // pred_region
          %545 = dma.done [#allocation12], 128
        $region100: #{tpu_custom_call.1} parent=75 // pred_fallthru
          _
        // Predicated region
        $region101: #{tpu_custom_call.1} parent=75 // pred_check
          %p546 = pneg %p224
        $region102: #{tpu_custom_call.1} parent=75 // pred_check_branch
          %548 = sbr.rel (%p546) target = $region104
        $region103: #{tpu_custom_call.1} parent=75 // pred_region
          %550 = dma.done [#allocation12], 128
        $region104: #{tpu_custom_call.1} parent=75 // pred_fallthru
          _
        // Predicated region
        $region105: #{tpu_custom_call.1} parent=75 // pred_check
          %p551 = pneg %p245
        $region106: #{tpu_custom_call.1} parent=75 // pred_check_branch
          %553 = sbr.rel (%p551) target = $region108
        $region107: #{tpu_custom_call.1} parent=75 // pred_region
          %555 = dma.done [#allocation15], 128
        $region108: #{tpu_custom_call.1} parent=75 // pred_fallthru
          _
        // Predicated region
        $region109: #{tpu_custom_call.1} parent=75 // pred_check
          %p556 = pneg %p287
        $region110: #{tpu_custom_call.1} parent=75 // pred_check_branch
          %558 = sbr.rel (%p556) target = $region112
        $region111: #{tpu_custom_call.1} parent=75 // pred_region
          %560 = dma.done [#allocation15], 256
        $region112: #{tpu_custom_call.1} parent=75 // pred_fallthru
          _
        %s561 = sand.u32 %s43, 1
        %s562 = scalar_lea.sflag [#allocation3], %s561
        %s563 = sand.u32 %s43, 1
        %s564 = smul.addr %s563, 8
        %s565 = scalar_lea.vmem [#allocation2], %s564
        %p566 = pneg %p56
        %p567 = pneg %p53
        %p568 = pneg %p77
        %p569 = pneg %p74
        %p570 = pneg %p98
        %p571 = pneg %p95
        %p572 = pneg %p119
        %p573 = pneg %p116
        %p574 = pneg %p140
        %p575 = pneg %p137
        %p576 = pneg %p161
        %p577 = pneg %p158
        %p578 = pneg %p182
        %p579 = pneg %p179
        %p580 = pneg %p203
        %p581 = pneg %p200
        %p582 = pneg %p224
        %p583 = pneg %p221
        %p584 = pneg %p245
        %p585 = pneg %p242
        %p586 = pneg %p266
        %p587 = pneg %p263
        %p588 = pneg %p287
        %p589 = pneg %p284
        %p590 = pneg %p308
        %p591 = pneg %p305
        %p592 = pneg %p329
        %p593 = pneg %p326
        %p594 = pneg %p355
        %p595 = pneg %p352
        %s596 = sand.u32 %s342, 1
        %s597 = scalar_lea.sflag [#allocation4], %s596
        %s598 = sand.u32 %s342, 1
        %s599 = scalar_lea.vmem [#allocation17], %s598
        %v601 = vld [vmem:[%s515] sm:$0xff]
        %v602 = vld [vmem:[#allocation5] sm:$0xff]
        %v603 = vadd.f32 %v601, %v602
        %v604 = vld [vmem:[#allocation7] sm:$0x1]
        %v605 = vld [vmem:[#allocation8] sm:$0x1]
        %vm606 = vcmask 523264
        %v607 = vsel %vm606, %v603, 0.0
        %608 = vadd.xlane.f32.xlu0 %v607
        %v609 = vpop.xlane.xlu0 %608
        %v610 = vrcp.pop 64.0
        %v611 = vmul.f32 64.0, %v610
        %v612 = vsub.f32 1.0, %v611
        %v613 = vmul.f32 %v610, %v612
        %v614 = vadd.f32 %v610, %v613
        %vm615 = vweird.f32 %v610
        %v616 = vsel %vm615, %v610, %v614
        %v617 = vmul.f32 %v609, %v616
        %v618 = vsub.f32 %v603, %v617
        %v619 = vmul.f32 %v618, %v618
        %v620 = vsel %vm606, %v619, 0.0
        %621 = vadd.xlane.f32.xlu0 %v620
        %v622 = vpop.xlane.xlu0 %621
        %v623 = vmul.f32 %v622, %v616
        %v624 = vadd.f32 %v623, 1e-12
        %v625 = vrsqrt.pop %v624
        %v626 = vmul.f32 %v625, %v624
        %v627 = vmul.f32 %v626, %v625
        %v628 = vmul.f32 0.5, %v627
        %v629 = vsub.f32 1.5, %v628
        %v630 = vmul.f32 %v625, %v629
        %vm631 = vweird.f32 %v624
        %vm632 = vweird.f32 %v625
        %vm633 = vmor %vm631, %vm632
        %v634 = vsel %vm633, %v625, %v630
        %v635 = vmul.f32 %v618, %v634
        %v636 = vperm.slane %v604, 0
        %v637 = vmul.f32 %v636, %v635
        %v638 = vperm.slane %v605, 0
        %v639 = vadd.f32 %v637, %v638
        %v640 = vpack.c.bf16 %v639, %v639
        %v641 = vld [vmem:[%s4] sm:$0xff]
        %v642 = vld [vmem:[%s4 + $0x8] sm:$0xf]
        %v643 = vld [vmem:[%s4 + $0xc] sm:$0xff]
        %v644 = vld [vmem:[%s4 + $0x14] sm:$0xf]
        %v645 = vld [vmem:[%s4 + $0x18] sm:$0xff]
        %v646 = vld [vmem:[%s4 + $0x20] sm:$0xf]
        %v647 = vld [vmem:[%s4 + $0x24] sm:$0xff]
        %v648 = vld [vmem:[%s4 + $0x2c] sm:$0xf]
        %v649 = vld [vmem:[%s4 + $0x30] sm:$0xff]
        %v650 = vld [vmem:[%s4 + $0x38] sm:$0xf]
        %v651 = vld [vmem:[%s4 + $0x3c] sm:$0xff]
        %v652 = vld [vmem:[%s4 + $0x44] sm:$0xf]
        %v653 = vld [vmem:[%s4 + $0x48] sm:$0xff]
        %v654 = vld [vmem:[%s4 + $0x50] sm:$0xf]
        %v655 = vld [vmem:[%s4 + $0x54] sm:$0xff]
        %v656 = vld [vmem:[%s4 + $0x5c] sm:$0xf]
        %v657 = vld [vmem:[#allocation10] ss:$8 sm:$0x7]
        %v659 = vperm.slane %v657, 0
        %v660 = vperm.slane %v657, 1
        %v661 = vperm.slane %v657, 2
        %v681 = vunpack.c.l.b16 %v641
        %v682 = vunpack.c.h.b16 %v641
        %v683 = vunpack.c.l.b16 %v642
        %v684 = vunpack.c.l.b16 %v643
        %v685 = vunpack.c.h.b16 %v643
        %v686 = vunpack.c.l.b16 %v644
        %v687 = vunpack.c.l.b16 %v645
        %v688 = vunpack.c.h.b16 %v645
        %v689 = vunpack.c.l.b16 %v646
        %v690 = vunpack.c.l.b16 %v647
        %v691 = vunpack.c.h.b16 %v647
        %v692 = vunpack.c.l.b16 %v648
        %v693 = vunpack.c.l.b16 %v649
        %v694 = vunpack.c.h.b16 %v649
        %v695 = vunpack.c.l.b16 %v650
        %v696 = vunpack.c.l.b16 %v651
        %v697 = vunpack.c.h.b16 %v651
        %v698 = vunpack.c.l.b16 %v652
        %v699 = vunpack.c.l.b16 %v653
        %v700 = vunpack.c.h.b16 %v653
        %v701 = vunpack.c.l.b16 %v654
        %v702 = vunpack.c.l.b16 %v655
        %v703 = vunpack.c.h.b16 %v655
        %v704 = vunpack.c.l.b16 %v656
        %v705 = vpack.c.b16 %v684, %v681
        %v706 = vpack.c.b16 %v685, %v682
        %v707 = vpack.c.b16 %v686, %v683
        %v708 = vpack.c.b16 %v690, %v687
        %v709 = vpack.c.b16 %v691, %v688
        %v710 = vpack.c.b16 %v692, %v689
        %v711 = vpack.c.b16 %v696, %v693
        %v712 = vpack.c.b16 %v697, %v694
        %v713 = vpack.c.b16 %v698, %v695
        %v714 = vpack.c.b16 %v702, %v699
        %v715 = vpack.c.b16 %v703, %v700
        %v716 = vpack.c.b16 %v704, %v701
        %v730 = vsel %vm606, %v640, 0
        %732 = vmatpush.bf16.msra.mxu0 0
        %733 = vmatpush.bf16.msra.mxu0 0
        %734 = vmatpush.bf16.msra.mxu0 0
        %735 = vmatpush.bf16.msra.mxu0 0
        %736 = vmatpush.bf16.msra.mxu0 %v714
        %737 = vmatpush.bf16.msra.mxu0 %v711
        %738 = vmatpush.bf16.msra.mxu0 %v708
        %739 = vmatpush.bf16.msra.mxu0 %v705
        %740 = vmatmul.bf16.gmra.mxu0 %v730
        %v741 = vpop.f32.mrf.mxu0
        %v742 = vadd.f32 %v659, %v741
        %v743 = vpop.f32.mrf.mxu0
        %744 = vdwg.mxu0
        %745 = vmatpush.bf16.msra.mxu0 0
        %746 = vmatpush.bf16.msra.mxu0 0
        %747 = vmatpush.bf16.msra.mxu0 0
        %748 = vmatpush.bf16.msra.mxu0 0
        %749 = vmatpush.bf16.msra.mxu0 %v715
        %750 = vmatpush.bf16.msra.mxu0 %v712
        %751 = vmatpush.bf16.msra.mxu0 %v709
        %752 = vmatpush.bf16.msra.mxu0 %v706
        %753 = vmatmul.bf16.gmra.mxu0 %v730
        %v754 = vpop.f32.mrf.mxu0
        %v755 = vadd.f32 %v660, %v754
        %v756 = vpop.f32.mrf.mxu0
        %757 = vdwg.mxu0
        %758 = vmatpush.bf16.msra.mxu0 0
        %759 = vmatpush.bf16.msra.mxu0 0
        %760 = vmatpush.bf16.msra.mxu0 0
        %761 = vmatpush.bf16.msra.mxu0 0
        %762 = vmatpush.bf16.msra.mxu0 %v716
        %763 = vmatpush.bf16.msra.mxu0 %v713
        %764 = vmatpush.bf16.msra.mxu0 %v710
        %765 = vmatpush.bf16.msra.mxu0 %v707
        %766 = vmatmul.bf16.gmra.mxu0 %v730
        %v767 = vpop.f32.mrf.mxu0
        %v768 = vadd.f32 %v661, %v767
        %v769 = vpop.f32.mrf.mxu0
        %770 = vdwg.mxu0
        %v771 = vmul.f32 %v742, 0.125
        %v772 = vpack.c.bf16 %v771, %v771
        %v773 = vpack.c.bf16 %v755, %v755
        %v775 = vsel %vm606, %v772, 0
        %v778 = vsel %vm606, %v773, 0
        %780 = vmatpush.bf16.xpose.msra.mxu0 0
        %781 = vmatpush.bf16.xpose.msra.mxu0 0
        %782 = vmatpush.bf16.xpose.msra.mxu0 0
        %783 = vmatpush.bf16.xpose.msra.mxu0 0
        %784 = vmatpush.bf16.xpose.msra.mxu0 0
        %785 = vmatpush.bf16.xpose.msra.mxu0 0
        %786 = vmatpush.bf16.xpose.msra.mxu0 0
        %787 = vmatpush.bf16.xpose.msra.mxu0 %v778
        %788 = vmatmul.bf16.gmra.mxu0 %v775
        %v789 = vpop.f32.mrf.mxu0
        %v790 = vadd.f32 0.0, %v789
        %v791 = vpop.f32.mrf.mxu0
        %792 = vdwg.mxu0
        %vm793 = vcmask 64512
        %v794 = vsel %vm793, %v790, -inf
        %795 = vmax.xlane.f32.xlu0 %v794
        %v796 = vpop.xlane.xlu0 %795
        %v797 = vsub.f32 %v790, %v796
        %v798 = vmul.f32 %v797, 1.442695
        %v799 = vpow.pop %v798
        %v800 = vsel %vm793, %v799, 0.0
        %801 = vadd.xlane.f32.xlu0 %v800
        %v802 = vpop.xlane.xlu0 %801
        %v803 = vrcp.pop %v802
        %v804 = vmul.f32 %v802, %v803
        %v805 = vsub.f32 1.0, %v804
        %v806 = vmul.f32 %v803, %v805
        %v807 = vadd.f32 %v803, %v806
        %vm808 = vweird.f32 %v802
        %vm809 = vweird.f32 %v803
        %vm810 = vmor %vm808, %vm809
        %v811 = vsel %vm810, %v803, %v807
        %v812 = vand.u32 2147483647, %v802
        %vm813 = vcmp.eq.f32.partialorder %v812, 8.507059e+37
        %v814 = vand.u32 %v802, 2147483648
        %v815 = vor.u32 1.1754944e-38, %v814
        %v816 = vsel %vm813, %v815, %v811
        %v817 = vmul.f32 %v799, %v816
        %v818 = vpack.c.bf16 %v817, %v817
        %v819 = vpack.c.bf16 %v768, %v768
        %v821 = vsel %vm793, %v818, 0
        %vm823 = vcmask 1043456
        %v825 = vsel %vm823, %v819, 0
        %827 = vmatpush.bf16.msra.mxu0 0
        %828 = vmatpush.bf16.msra.mxu0 0
        %829 = vmatpush.bf16.msra.mxu0 0
        %830 = vmatpush.bf16.msra.mxu0 0
        %831 = vmatpush.bf16.msra.mxu0 0
        %832 = vmatpush.bf16.msra.mxu0 0
        %833 = vmatpush.bf16.msra.mxu0 0
        %834 = vmatpush.bf16.msra.mxu0 %v825
        %835 = vmatmul.bf16.gmra.mxu0 %v821
        %v836 = vpop.f32.mrf.mxu0
        %v837 = vadd.f32 0.0, %v836
        %v838 = vpop.f32.mrf.mxu0
        %839 = vdwg.mxu0
        %v840 = vpack.c.bf16 %v837, %v837
        %v841 = vld [vmem:[%s6] sm:$0xf]
        %v842 = vld [vmem:[%s6 + $0x4] sm:$0xf]
        %v843 = vld [vmem:[%s6 + $0x8] sm:$0xf]
        %v844 = vld [vmem:[%s6 + $0xc] sm:$0xf]
        %v845 = vld [vmem:[%s6 + $0x10] sm:$0xf]
        %v846 = vld [vmem:[%s6 + $0x14] sm:$0xf]
        %v847 = vld [vmem:[%s6 + $0x18] sm:$0xf]
        %v848 = vld [vmem:[%s6 + $0x1c] sm:$0xf]
        %v857 = vunpack.c.l.b16 %v841
        %v858 = vunpack.c.l.b16 %v842
        %v859 = vunpack.c.l.b16 %v843
        %v860 = vunpack.c.l.b16 %v844
        %v861 = vunpack.c.l.b16 %v845
        %v862 = vunpack.c.l.b16 %v846
        %v863 = vunpack.c.l.b16 %v847
        %v864 = vunpack.c.l.b16 %v848
        %v865 = vpack.c.b16 %v858, %v857
        %v866 = vpack.c.b16 %v860, %v859
        %v867 = vpack.c.b16 %v862, %v861
        %v868 = vpack.c.b16 %v864, %v863
        %v874 = vsel %vm606, %v840, 0
        %876 = vmatpush.bf16.msra.mxu0 0
        %877 = vmatpush.bf16.msra.mxu0 0
        %878 = vmatpush.bf16.msra.mxu0 0
        %879 = vmatpush.bf16.msra.mxu0 0
        %880 = vmatpush.bf16.msra.mxu0 %v868
        %881 = vmatpush.bf16.msra.mxu0 %v867
        %882 = vmatpush.bf16.msra.mxu0 %v866
        %883 = vmatpush.bf16.msra.mxu0 %v865
        %884 = vmatmul.bf16.gmra.mxu0 %v874
        %v885 = vpop.f32.mrf.mxu0
        %v886 = vadd.f32 0.0, %v885
        %v887 = vpop.f32.mrf.mxu0
        %888 = vdwg.mxu0
        %v889 = vadd.f32 %v603, %v886
        %v890 = vld [vmem:[#allocation11] sm:$0x1]
        %v891 = vperm.slane %v890, 0
        %v892 = vadd.f32 %v889, %v891
        %v893 = vld [vmem:[#allocation13] sm:$0x1]
        %v894 = vld [vmem:[#allocation14] sm:$0x1]
        %v895 = vsel %vm606, %v892, 0.0
        %896 = vadd.xlane.f32.xlu0 %v895
        %v897 = vpop.xlane.xlu0 %896
        %v898 = vmul.f32 %v897, %v616
        %v899 = vsub.f32 %v892, %v898
        %v900 = vmul.f32 %v899, %v899
        %v901 = vsel %vm606, %v900, 0.0
        %902 = vadd.xlane.f32.xlu0 %v901
        %v903 = vpop.xlane.xlu0 %902
        %v904 = vmul.f32 %v903, %v616
        %v905 = vadd.f32 %v904, 1e-12
        %v906 = vrsqrt.pop %v905
        %v907 = vmul.f32 %v906, %v905
        %v908 = vmul.f32 %v907, %v906
        %v909 = vmul.f32 0.5, %v908
        %v910 = vsub.f32 1.5, %v909
        %v911 = vmul.f32 %v906, %v910
        %vm912 = vweird.f32 %v905
        %vm913 = vweird.f32 %v906
        %vm914 = vmor %vm912, %vm913
        %v915 = vsel %vm914, %v906, %v911
        %v916 = vmul.f32 %v899, %v915
        %v917 = vperm.slane %v893, 0
        %v918 = vmul.f32 %v917, %v916
        %v919 = vperm.slane %v894, 0
        %v920 = vadd.f32 %v918, %v919
        %v921 = vpack.c.bf16 %v920, %v920
        %v922 = vld [vmem:[%s10] sm:$0xff]
        %v923 = vld [vmem:[%s10 + $0x8] sm:$0xff]
        %v924 = vld [vmem:[%s10 + $0x10] sm:$0xff]
        %v925 = vld [vmem:[%s10 + $0x18] sm:$0xff]
        %v926 = vld [vmem:[%s10 + $0x20] sm:$0xff]
        %v927 = vld [vmem:[%s10 + $0x28] sm:$0xff]
        %v928 = vld [vmem:[%s10 + $0x30] sm:$0xff]
        %v929 = vld [vmem:[%s10 + $0x38] sm:$0xff]
        %v930 = vld [vmem:[#allocation16] ss:$8 sm:$0x3]
        %v932 = vperm.slane %v930, 0
        %v933 = vperm.slane %v930, 1
        %v944 = vunpack.c.l.b16 %v922
        %v945 = vunpack.c.h.b16 %v922
        %v946 = vunpack.c.l.b16 %v923
        %v947 = vunpack.c.h.b16 %v923
        %v948 = vunpack.c.l.b16 %v924
        %v949 = vunpack.c.h.b16 %v924
        %v950 = vunpack.c.l.b16 %v925
        %v951 = vunpack.c.h.b16 %v925
        %v952 = vunpack.c.l.b16 %v926
        %v953 = vunpack.c.h.b16 %v926
        %v954 = vunpack.c.l.b16 %v927
        %v955 = vunpack.c.h.b16 %v927
        %v956 = vunpack.c.l.b16 %v928
        %v957 = vunpack.c.h.b16 %v928
        %v958 = vunpack.c.l.b16 %v929
        %v959 = vunpack.c.h.b16 %v929
        %v960 = vpack.c.b16 %v946, %v944
        %v961 = vpack.c.b16 %v947, %v945
        %v962 = vpack.c.b16 %v950, %v948
        %v963 = vpack.c.b16 %v951, %v949
        %v964 = vpack.c.b16 %v954, %v952
        %v965 = vpack.c.b16 %v955, %v953
        %v966 = vpack.c.b16 %v958, %v956
        %v967 = vpack.c.b16 %v959, %v957
        %v977 = vsel %vm606, %v921, 0
        %979 = vmatpush.bf16.msra.mxu0 0
        %980 = vmatpush.bf16.msra.mxu0 0
        %981 = vmatpush.bf16.msra.mxu0 0
        %982 = vmatpush.bf16.msra.mxu0 0
        %983 = vmatpush.bf16.msra.mxu0 %v966
        %984 = vmatpush.bf16.msra.mxu0 %v964
        %985 = vmatpush.bf16.msra.mxu0 %v962
        %986 = vmatpush.bf16.msra.mxu0 %v960
        %987 = vmatmul.bf16.gmra.mxu0 %v977
        %v988 = vpop.f32.mrf.mxu0
        %v989 = vadd.f32 %v932, %v988
        %v990 = vpop.f32.mrf.mxu0
        %991 = vdwg.mxu0
        %992 = vmatpush.bf16.msra.mxu0 0
        %993 = vmatpush.bf16.msra.mxu0 0
        %994 = vmatpush.bf16.msra.mxu0 0
        %995 = vmatpush.bf16.msra.mxu0 0
        %996 = vmatpush.bf16.msra.mxu0 %v967
        %997 = vmatpush.bf16.msra.mxu0 %v965
        %998 = vmatpush.bf16.msra.mxu0 %v963
        %999 = vmatpush.bf16.msra.mxu0 %v961
        %1000 = vmatmul.bf16.gmra.mxu0 %v977
        %v1001 = vpop.f32.mrf.mxu0
        %v1002 = vadd.f32 %v933, %v1001
        %v1003 = vpop.f32.mrf.mxu0
        %1004 = vdwg.mxu0
        %v1005 = vmul.f32 %v989, 1.702
        %v1006 = vmul.f32 %v1002, 1.702
        %v1007 = vxor.u32 %v1005, 2147483648
        %v1008 = vxor.u32 %v1006, 2147483648
        %v1009 = vmul.f32 %v1007, 1.442695
        %v1010 = vpow.pop %v1009
        %v1011 = vmul.f32 %v1008, 1.442695
        %v1012 = vpow.pop %v1011
        %v1013 = vadd.f32 %v1010, 1.0
        %v1014 = vadd.f32 %v1012, 1.0
        %v1015 = vrcp.pop %v1013
        %v1016 = vmul.f32 %v1013, %v1015
        %v1017 = vsub.f32 1.0, %v1016
        %v1018 = vmul.f32 %v1015, %v1017
        %v1019 = vadd.f32 %v1015, %v1018
        %vm1020 = vweird.f32 %v1013
        %vm1021 = vweird.f32 %v1015
        %vm1022 = vmor %vm1020, %vm1021
        %v1023 = vsel %vm1022, %v1015, %v1019
        %v1024 = vand.u32 2147483647, %v1013
        %vm1025 = vcmp.eq.f32.partialorder %v1024, 8.507059e+37
        %v1026 = vand.u32 %v1013, 2147483648
        %v1027 = vor.u32 1.1754944e-38, %v1026
        %v1028 = vsel %vm1025, %v1027, %v1023
        %v1029 = vmul.f32 1.0, %v1028
        %v1030 = vrcp.pop %v1014
        %v1031 = vmul.f32 %v1014, %v1030
        %v1032 = vsub.f32 1.0, %v1031
        %v1033 = vmul.f32 %v1030, %v1032
        %v1034 = vadd.f32 %v1030, %v1033
        %vm1035 = vweird.f32 %v1014
        %vm1036 = vweird.f32 %v1030
        %vm1037 = vmor %vm1035, %vm1036
        %v1038 = vsel %vm1037, %v1030, %v1034
        %v1039 = vand.u32 2147483647, %v1014
        %vm1040 = vcmp.eq.f32.partialorder %v1039, 8.507059e+37
        %v1041 = vand.u32 %v1014, 2147483648
        %v1042 = vor.u32 1.1754944e-38, %v1041
        %v1043 = vsel %vm1040, %v1042, %v1038
        %v1044 = vmul.f32 1.0, %v1043
        %v1045 = vmul.f32 %v989, %v1029
        %v1046 = vmul.f32 %v1002, %v1044
        %v1047 = vpack.c.bf16 %v1045, %v1045
        %v1048 = vpack.c.bf16 %v1046, %v1046
        %v1049 = vld [vmem:[%s12] sm:$0xf]
        %v1050 = vld [vmem:[%s12 + $0x4] sm:$0xf]
        %v1051 = vld [vmem:[%s12 + $0x8] sm:$0xf]
        %v1052 = vld [vmem:[%s12 + $0xc] sm:$0xf]
        %v1053 = vld [vmem:[%s12 + $0x10] sm:$0xf]
        %v1054 = vld [vmem:[%s12 + $0x14] sm:$0xf]
        %v1055 = vld [vmem:[%s12 + $0x18] sm:$0xf]
        %v1056 = vld [vmem:[%s12 + $0x1c] sm:$0xf]
        %v1057 = vld [vmem:[%s12 + $0x20] sm:$0xf]
        %v1058 = vld [vmem:[%s12 + $0x24] sm:$0xf]
        %v1059 = vld [vmem:[%s12 + $0x28] sm:$0xf]
        %v1060 = vld [vmem:[%s12 + $0x2c] sm:$0xf]
        %v1061 = vld [vmem:[%s12 + $0x30] sm:$0xf]
        %v1062 = vld [vmem:[%s12 + $0x34] sm:$0xf]
        %v1063 = vld [vmem:[%s12 + $0x38] sm:$0xf]
        %v1064 = vld [vmem:[%s12 + $0x3c] sm:$0xf]
        %v1065 = vld [vmem:[%s12 + $0x40] sm:$0xf]
        %v1066 = vld [vmem:[%s12 + $0x44] sm:$0xf]
        %v1067 = vld [vmem:[%s12 + $0x48] sm:$0xf]
        %v1068 = vld [vmem:[%s12 + $0x4c] sm:$0xf]
        %v1069 = vld [vmem:[%s12 + $0x50] sm:$0xf]
        %v1070 = vld [vmem:[%s12 + $0x54] sm:$0xf]
        %v1071 = vld [vmem:[%s12 + $0x58] sm:$0xf]
        %v1072 = vld [vmem:[%s12 + $0x5c] sm:$0xf]
        %v1073 = vld [vmem:[%s12 + $0x60] sm:$0xf]
        %v1074 = vld [vmem:[%s12 + $0x64] sm:$0xf]
        %v1075 = vld [vmem:[%s12 + $0x68] sm:$0xf]
        %v1076 = vld [vmem:[%s12 + $0x6c] sm:$0xf]
        %v1077 = vld [vmem:[%s12 + $0x70] sm:$0xf]
        %v1078 = vld [vmem:[%s12 + $0x74] sm:$0xf]
        %v1079 = vld [vmem:[%s12 + $0x78] sm:$0xf]
        %v1080 = vld [vmem:[%s12 + $0x7c] sm:$0xf]
        %v1113 = vunpack.c.l.b16 %v1049
        %v1114 = vunpack.c.l.b16 %v1050
        %v1115 = vunpack.c.l.b16 %v1051
        %v1116 = vunpack.c.l.b16 %v1052
        %v1117 = vunpack.c.l.b16 %v1053
        %v1118 = vunpack.c.l.b16 %v1054
        %v1119 = vunpack.c.l.b16 %v1055
        %v1120 = vunpack.c.l.b16 %v1056
        %v1121 = vunpack.c.l.b16 %v1057
        %v1122 = vunpack.c.l.b16 %v1058
        %v1123 = vunpack.c.l.b16 %v1059
        %v1124 = vunpack.c.l.b16 %v1060
        %v1125 = vunpack.c.l.b16 %v1061
        %v1126 = vunpack.c.l.b16 %v1062
        %v1127 = vunpack.c.l.b16 %v1063
        %v1128 = vunpack.c.l.b16 %v1064
        %v1129 = vunpack.c.l.b16 %v1065
        %v1130 = vunpack.c.l.b16 %v1066
        %v1131 = vunpack.c.l.b16 %v1067
        %v1132 = vunpack.c.l.b16 %v1068
        %v1133 = vunpack.c.l.b16 %v1069
        %v1134 = vunpack.c.l.b16 %v1070
        %v1135 = vunpack.c.l.b16 %v1071
        %v1136 = vunpack.c.l.b16 %v1072
        %v1137 = vunpack.c.l.b16 %v1073
        %v1138 = vunpack.c.l.b16 %v1074
        %v1139 = vunpack.c.l.b16 %v1075
        %v1140 = vunpack.c.l.b16 %v1076
        %v1141 = vunpack.c.l.b16 %v1077
        %v1142 = vunpack.c.l.b16 %v1078
        %v1143 = vunpack.c.l.b16 %v1079
        %v1144 = vunpack.c.l.b16 %v1080
        %v1145 = vpack.c.b16 %v1114, %v1113
        %v1146 = vpack.c.b16 %v1116, %v1115
        %v1147 = vpack.c.b16 %v1118, %v1117
        %v1148 = vpack.c.b16 %v1120, %v1119
        %v1149 = vpack.c.b16 %v1122, %v1121
        %v1150 = vpack.c.b16 %v1124, %v1123
        %v1151 = vpack.c.b16 %v1126, %v1125
        %v1152 = vpack.c.b16 %v1128, %v1127
        %v1153 = vpack.c.b16 %v1130, %v1129
        %v1154 = vpack.c.b16 %v1132, %v1131
        %v1155 = vpack.c.b16 %v1134, %v1133
        %v1156 = vpack.c.b16 %v1136, %v1135
        %v1157 = vpack.c.b16 %v1138, %v1137
        %v1158 = vpack.c.b16 %v1140, %v1139
        %v1159 = vpack.c.b16 %v1142, %v1141
        %v1160 = vpack.c.b16 %v1144, %v1143
        %1177 = vmatpush.bf16.msra.mxu0 %v1152
        %1178 = vmatpush.bf16.msra.mxu0 %v1151
        %1179 = vmatpush.bf16.msra.mxu0 %v1150
        %1180 = vmatpush.bf16.msra.mxu0 %v1149
        %1181 = vmatpush.bf16.msra.mxu0 %v1148
        %1182 = vmatpush.bf16.msra.mxu0 %v1147
        %1183 = vmatpush.bf16.msra.mxu0 %v1146
        %1184 = vmatpush.bf16.msra.mxu0 %v1145
        %1185 = vmatmul.bf16.gmra.mxu0 %v1047
        %v1186 = vpop.f32.mrf.mxu0
        %v1187 = vadd.f32 0.0, %v1186
        %v1188 = vpop.f32.mrf.mxu0
        %1189 = vdwg.mxu0
        %1190 = vmatpush.bf16.msra.mxu0 %v1160
        %1191 = vmatpush.bf16.msra.mxu0 %v1159
        %1192 = vmatpush.bf16.msra.mxu0 %v1158
        %1193 = vmatpush.bf16.msra.mxu0 %v1157
        %1194 = vmatpush.bf16.msra.mxu0 %v1156
        %1195 = vmatpush.bf16.msra.mxu0 %v1155
        %1196 = vmatpush.bf16.msra.mxu0 %v1154
        %1197 = vmatpush.bf16.msra.mxu0 %v1153
        %1198 = vmatmul.bf16.gmra.mxu0 %v1048
        %v1199 = vpop.f32.mrf.mxu0
        %v1200 = vadd.f32 %v1187, %v1199
        %v1201 = vpop.f32.mrf.mxu0
        %1202 = vdwg.mxu0
        %v1203 = vadd.f32 %v892, %v1200
        %v1204 = vld [vmem:[%s13] sm:$0x1]
        %v1205 = vperm.slane %v1204, 0
        %v1206 = vadd.f32 %v1203, %v1205
        %v1207 = vld [vmem:[#allocation7 + $0x1] sm:$0x1]
        %v1208 = vld [vmem:[#allocation8 + $0x1] sm:$0x1]
        %v1209 = vsel %vm606, %v1206, 0.0
        %1210 = vadd.xlane.f32.xlu0 %v1209
        %v1211 = vpop.xlane.xlu0 %1210
        %v1212 = vmul.f32 %v1211, %v616
        %v1213 = vsub.f32 %v1206, %v1212
        %v1214 = vmul.f32 %v1213, %v1213
        %v1215 = vsel %vm606, %v1214, 0.0
        %1216 = vadd.xlane.f32.xlu0 %v1215
        %v1217 = vpop.xlane.xlu0 %1216
        %v1218 = vmul.f32 %v1217, %v616
        %v1219 = vadd.f32 %v1218, 1e-12
        %v1220 = vrsqrt.pop %v1219
        %v1221 = vmul.f32 %v1220, %v1219
        %v1222 = vmul.f32 %v1221, %v1220
        %v1223 = vmul.f32 0.5, %v1222
        %v1224 = vsub.f32 1.5, %v1223
        %v1225 = vmul.f32 %v1220, %v1224
        %vm1226 = vweird.f32 %v1219
        %vm1227 = vweird.f32 %v1220
        %vm1228 = vmor %vm1226, %vm1227
        %v1229 = vsel %vm1228, %v1220, %v1225
        %v1230 = vmul.f32 %v1213, %v1229
        %v1231 = vperm.slane %v1207, 0
        %v1232 = vmul.f32 %v1231, %v1230
        %v1233 = vperm.slane %v1208, 0
        %v1234 = vadd.f32 %v1232, %v1233
        %v1235 = vpack.c.bf16 %v1234, %v1234
        %s1236 = scalar_lea.vmem %s4, 96
        %v1237 = vld [vmem:[%s1236] sm:$0xff]
        %v1238 = vld [vmem:[%s1236 + $0x8] sm:$0xf]
        %v1239 = vld [vmem:[%s1236 + $0xc] sm:$0xff]
        %v1240 = vld [vmem:[%s1236 + $0x14] sm:$0xf]
        %v1241 = vld [vmem:[%s1236 + $0x18] sm:$0xff]
        %v1242 = vld [vmem:[%s1236 + $0x20] sm:$0xf]
        %v1243 = vld [vmem:[%s1236 + $0x24] sm:$0xff]
        %v1244 = vld [vmem:[%s1236 + $0x2c] sm:$0xf]
        %v1245 = vld [vmem:[%s1236 + $0x30] sm:$0xff]
        %v1246 = vld [vmem:[%s1236 + $0x38] sm:$0xf]
        %v1247 = vld [vmem:[%s1236 + $0x3c] sm:$0xff]
        %v1248 = vld [vmem:[%s1236 + $0x44] sm:$0xf]
        %v1249 = vld [vmem:[%s1236 + $0x48] sm:$0xff]
        %v1250 = vld [vmem:[%s1236 + $0x50] sm:$0xf]
        %v1251 = vld [vmem:[%s1236 + $0x54] sm:$0xff]
        %v1252 = vld [vmem:[%s1236 + $0x5c] sm:$0xf]
        %s1253 = scalar_lea.vmem [#allocation10], 1
        %v1254 = vld [vmem:[%s1253] ss:$8 sm:$0x7]
        %v1256 = vperm.slane %v1254, 0
        %v1257 = vperm.slane %v1254, 1
        %v1258 = vperm.slane %v1254, 2
        %v1278 = vunpack.c.l.b16 %v1237
        %v1279 = vunpack.c.h.b16 %v1237
        %v1280 = vunpack.c.l.b16 %v1238
        %v1281 = vunpack.c.l.b16 %v1239
        %v1282 = vunpack.c.h.b16 %v1239
        %v1283 = vunpack.c.l.b16 %v1240
        %v1284 = vunpack.c.l.b16 %v1241
        %v1285 = vunpack.c.h.b16 %v1241
        %v1286 = vunpack.c.l.b16 %v1242
        %v1287 = vunpack.c.l.b16 %v1243
        %v1288 = vunpack.c.h.b16 %v1243
        %v1289 = vunpack.c.l.b16 %v1244
        %v1290 = vunpack.c.l.b16 %v1245
        %v1291 = vunpack.c.h.b16 %v1245
        %v1292 = vunpack.c.l.b16 %v1246
        %v1293 = vunpack.c.l.b16 %v1247
        %v1294 = vunpack.c.h.b16 %v1247
        %v1295 = vunpack.c.l.b16 %v1248
        %v1296 = vunpack.c.l.b16 %v1249
        %v1297 = vunpack.c.h.b16 %v1249
        %v1298 = vunpack.c.l.b16 %v1250
        %v1299 = vunpack.c.l.b16 %v1251
        %v1300 = vunpack.c.h.b16 %v1251
        %v1301 = vunpack.c.l.b16 %v1252
        %v1302 = vpack.c.b16 %v1281, %v1278
        %v1303 = vpack.c.b16 %v1282, %v1279
        %v1304 = vpack.c.b16 %v1283, %v1280
        %v1305 = vpack.c.b16 %v1287, %v1284
        %v1306 = vpack.c.b16 %v1288, %v1285
        %v1307 = vpack.c.b16 %v1289, %v1286
        %v1308 = vpack.c.b16 %v1293, %v1290
        %v1309 = vpack.c.b16 %v1294, %v1291
        %v1310 = vpack.c.b16 %v1295, %v1292
        %v1311 = vpack.c.b16 %v1299, %v1296
        %v1312 = vpack.c.b16 %v1300, %v1297
        %v1313 = vpack.c.b16 %v1301, %v1298
        %v1327 = vsel %vm606, %v1235, 0
        %1329 = vmatpush.bf16.msra.mxu0 0
        %1330 = vmatpush.bf16.msra.mxu0 0
        %1331 = vmatpush.bf16.msra.mxu0 0
        %1332 = vmatpush.bf16.msra.mxu0 0
        %1333 = vmatpush.bf16.msra.mxu0 %v1311
        %1334 = vmatpush.bf16.msra.mxu0 %v1308
        %1335 = vmatpush.bf16.msra.mxu0 %v1305
        %1336 = vmatpush.bf16.msra.mxu0 %v1302
        %1337 = vmatmul.bf16.gmra.mxu0 %v1327
        %v1338 = vpop.f32.mrf.mxu0
        %v1339 = vadd.f32 %v1256, %v1338
        %v1340 = vpop.f32.mrf.mxu0
        %1341 = vdwg.mxu0
        %1342 = vmatpush.bf16.msra.mxu0 0
        %1343 = vmatpush.bf16.msra.mxu0 0
        %1344 = vmatpush.bf16.msra.mxu0 0
        %1345 = vmatpush.bf16.msra.mxu0 0
        %1346 = vmatpush.bf16.msra.mxu0 %v1312
        %1347 = vmatpush.bf16.msra.mxu0 %v1309
        %1348 = vmatpush.bf16.msra.mxu0 %v1306
        %1349 = vmatpush.bf16.msra.mxu0 %v1303
        %1350 = vmatmul.bf16.gmra.mxu0 %v1327
        %v1351 = vpop.f32.mrf.mxu0
        %v1352 = vadd.f32 %v1257, %v1351
        %v1353 = vpop.f32.mrf.mxu0
        %1354 = vdwg.mxu0
        %1355 = vmatpush.bf16.msra.mxu0 0
        %1356 = vmatpush.bf16.msra.mxu0 0
        %1357 = vmatpush.bf16.msra.mxu0 0
        %1358 = vmatpush.bf16.msra.mxu0 0
        %1359 = vmatpush.bf16.msra.mxu0 %v1313
        %1360 = vmatpush.bf16.msra.mxu0 %v1310
        %1361 = vmatpush.bf16.msra.mxu0 %v1307
        %1362 = vmatpush.bf16.msra.mxu0 %v1304
        %1363 = vmatmul.bf16.gmra.mxu0 %v1327
        %v1364 = vpop.f32.mrf.mxu0
        %v1365 = vadd.f32 %v1258, %v1364
        %v1366 = vpop.f32.mrf.mxu0
        %1367 = vdwg.mxu0
        %v1368 = vmul.f32 %v1339, 0.125
        %v1369 = vpack.c.bf16 %v1368, %v1368
        %v1370 = vpack.c.bf16 %v1352, %v1352
        %v1372 = vsel %vm606, %v1369, 0
        %v1375 = vsel %vm606, %v1370, 0
        %1377 = vmatpush.bf16.xpose.msra.mxu0 0
        %1378 = vmatpush.bf16.xpose.msra.mxu0 0
        %1379 = vmatpush.bf16.xpose.msra.mxu0 0
        %1380 = vmatpush.bf16.xpose.msra.mxu0 0
        %1381 = vmatpush.bf16.xpose.msra.mxu0 0
        %1382 = vmatpush.bf16.xpose.msra.mxu0 0
        %1383 = vmatpush.bf16.xpose.msra.mxu0 0
        %1384 = vmatpush.bf16.xpose.msra.mxu0 %v1375
        %1385 = vmatmul.bf16.gmra.mxu0 %v1372
        %v1386 = vpop.f32.mrf.mxu0
        %v1387 = vadd.f32 0.0, %v1386
        %v1388 = vpop.f32.mrf.mxu0
        %1389 = vdwg.mxu0
        %v1390 = vsel %vm793, %v1387, -inf
        %1391 = vmax.xlane.f32.xlu0 %v1390
        %v1392 = vpop.xlane.xlu0 %1391
        %v1393 = vsub.f32 %v1387, %v1392
        %v1394 = vmul.f32 %v1393, 1.442695
        %v1395 = vpow.pop %v1394
        %v1396 = vsel %vm793, %v1395, 0.0
        %1397 = vadd.xlane.f32.xlu0 %v1396
        %v1398 = vpop.xlane.xlu0 %1397
        %v1399 = vrcp.pop %v1398
        %v1400 = vmul.f32 %v1398, %v1399
        %v1401 = vsub.f32 1.0, %v1400
        %v1402 = vmul.f32 %v1399, %v1401
        %v1403 = vadd.f32 %v1399, %v1402
        %vm1404 = vweird.f32 %v1398
        %vm1405 = vweird.f32 %v1399
        %vm1406 = vmor %vm1404, %vm1405
        %v1407 = vsel %vm1406, %v1399, %v1403
        %v1408 = vand.u32 2147483647, %v1398
        %vm1409 = vcmp.eq.f32.partialorder %v1408, 8.507059e+37
        %v1410 = vand.u32 %v1398, 2147483648
        %v1411 = vor.u32 1.1754944e-38, %v1410
        %v1412 = vsel %vm1409, %v1411, %v1407
        %v1413 = vmul.f32 %v1395, %v1412
        %v1414 = vpack.c.bf16 %v1413, %v1413
        %v1415 = vpack.c.bf16 %v1365, %v1365
        %v1417 = vsel %vm793, %v1414, 0
        %v1420 = vsel %vm823, %v1415, 0
        %1422 = vmatpush.bf16.msra.mxu0 0
        %1423 = vmatpush.bf16.msra.mxu0 0
        %1424 = vmatpush.bf16.msra.mxu0 0
        %1425 = vmatpush.bf16.msra.mxu0 0
        %1426 = vmatpush.bf16.msra.mxu0 0
        %1427 = vmatpush.bf16.msra.mxu0 0
        %1428 = vmatpush.bf16.msra.mxu0 0
        %1429 = vmatpush.bf16.msra.mxu0 %v1420
        %1430 = vmatmul.bf16.gmra.mxu0 %v1417
        %v1431 = vpop.f32.mrf.mxu0
        %v1432 = vadd.f32 0.0, %v1431
        %v1433 = vpop.f32.mrf.mxu0
        %1434 = vdwg.mxu0
        %v1435 = vpack.c.bf16 %v1432, %v1432
        %s1436 = scalar_lea.vmem %s6, 32
        %v1437 = vld [vmem:[%s1436] sm:$0xf]
        %v1438 = vld [vmem:[%s1436 + $0x4] sm:$0xf]
        %v1439 = vld [vmem:[%s1436 + $0x8] sm:$0xf]
        %v1440 = vld [vmem:[%s1436 + $0xc] sm:$0xf]
        %v1441 = vld [vmem:[%s1436 + $0x10] sm:$0xf]
        %v1442 = vld [vmem:[%s1436 + $0x14] sm:$0xf]
        %v1443 = vld [vmem:[%s1436 + $0x18] sm:$0xf]
        %v1444 = vld [vmem:[%s1436 + $0x1c] sm:$0xf]
        %v1453 = vunpack.c.l.b16 %v1437
        %v1454 = vunpack.c.l.b16 %v1438
        %v1455 = vunpack.c.l.b16 %v1439
        %v1456 = vunpack.c.l.b16 %v1440
        %v1457 = vunpack.c.l.b16 %v1441
        %v1458 = vunpack.c.l.b16 %v1442
        %v1459 = vunpack.c.l.b16 %v1443
        %v1460 = vunpack.c.l.b16 %v1444
        %v1461 = vpack.c.b16 %v1454, %v1453
        %v1462 = vpack.c.b16 %v1456, %v1455
        %v1463 = vpack.c.b16 %v1458, %v1457
        %v1464 = vpack.c.b16 %v1460, %v1459
        %v1470 = vsel %vm606, %v1435, 0
        %1472 = vmatpush.bf16.msra.mxu0 0
        %1473 = vmatpush.bf16.msra.mxu0 0
        %1474 = vmatpush.bf16.msra.mxu0 0
        %1475 = vmatpush.bf16.msra.mxu0 0
        %1476 = vmatpush.bf16.msra.mxu0 %v1464
        %1477 = vmatpush.bf16.msra.mxu0 %v1463
        %1478 = vmatpush.bf16.msra.mxu0 %v1462
        %1479 = vmatpush.bf16.msra.mxu0 %v1461
        %1480 = vmatmul.bf16.gmra.mxu0 %v1470
        %v1481 = vpop.f32.mrf.mxu0
        %v1482 = vadd.f32 0.0, %v1481
        %v1483 = vpop.f32.mrf.mxu0
        %1484 = vdwg.mxu0
        %v1485 = vadd.f32 %v1206, %v1482
        %v1486 = vld [vmem:[#allocation11 + $0x1] sm:$0x1]
        %v1487 = vperm.slane %v1486, 0
        %v1488 = vadd.f32 %v1485, %v1487
        %v1489 = vld [vmem:[#allocation13 + $0x1] sm:$0x1]
        %v1490 = vld [vmem:[#allocation14 + $0x1] sm:$0x1]
        %v1491 = vsel %vm606, %v1488, 0.0
        %1492 = vadd.xlane.f32.xlu0 %v1491
        %v1493 = vpop.xlane.xlu0 %1492
        %v1494 = vmul.f32 %v1493, %v616
        %v1495 = vsub.f32 %v1488, %v1494
        %v1496 = vmul.f32 %v1495, %v1495
        %v1497 = vsel %vm606, %v1496, 0.0
        %1498 = vadd.xlane.f32.xlu0 %v1497
        %v1499 = vpop.xlane.xlu0 %1498
        %v1500 = vmul.f32 %v1499, %v616
        %v1501 = vadd.f32 %v1500, 1e-12
        %v1502 = vrsqrt.pop %v1501
        %v1503 = vmul.f32 %v1502, %v1501
        %v1504 = vmul.f32 %v1503, %v1502
        %v1505 = vmul.f32 0.5, %v1504
        %v1506 = vsub.f32 1.5, %v1505
        %v1507 = vmul.f32 %v1502, %v1506
        %vm1508 = vweird.f32 %v1501
        %vm1509 = vweird.f32 %v1502
        %vm1510 = vmor %vm1508, %vm1509
        %v1511 = vsel %vm1510, %v1502, %v1507
        %v1512 = vmul.f32 %v1495, %v1511
        %v1513 = vperm.slane %v1489, 0
        %v1514 = vmul.f32 %v1513, %v1512
        %v1515 = vperm.slane %v1490, 0
        %v1516 = vadd.f32 %v1514, %v1515
        %v1517 = vpack.c.bf16 %v1516, %v1516
        %s1518 = scalar_lea.vmem %s10, 64
        %v1519 = vld [vmem:[%s1518] sm:$0xff]
        %v1520 = vld [vmem:[%s1518 + $0x8] sm:$0xff]
        %v1521 = vld [vmem:[%s1518 + $0x10] sm:$0xff]
        %v1522 = vld [vmem:[%s1518 + $0x18] sm:$0xff]
        %v1523 = vld [vmem:[%s1518 + $0x20] sm:$0xff]
        %v1524 = vld [vmem:[%s1518 + $0x28] sm:$0xff]
        %v1525 = vld [vmem:[%s1518 + $0x30] sm:$0xff]
        %v1526 = vld [vmem:[%s1518 + $0x38] sm:$0xff]
        %s1527 = scalar_lea.vmem [#allocation16], 1
        %v1528 = vld [vmem:[%s1527] ss:$8 sm:$0x3]
        %v1530 = vperm.slane %v1528, 0
        %v1531 = vperm.slane %v1528, 1
        %v1542 = vunpack.c.l.b16 %v1519
        %v1543 = vunpack.c.h.b16 %v1519
        %v1544 = vunpack.c.l.b16 %v1520
        %v1545 = vunpack.c.h.b16 %v1520
        %v1546 = vunpack.c.l.b16 %v1521
        %v1547 = vunpack.c.h.b16 %v1521
        %v1548 = vunpack.c.l.b16 %v1522
        %v1549 = vunpack.c.h.b16 %v1522
        %v1550 = vunpack.c.l.b16 %v1523
        %v1551 = vunpack.c.h.b16 %v1523
        %v1552 = vunpack.c.l.b16 %v1524
        %v1553 = vunpack.c.h.b16 %v1524
        %v1554 = vunpack.c.l.b16 %v1525
        %v1555 = vunpack.c.h.b16 %v1525
        %v1556 = vunpack.c.l.b16 %v1526
        %v1557 = vunpack.c.h.b16 %v1526
        %v1558 = vpack.c.b16 %v1544, %v1542
        %v1559 = vpack.c.b16 %v1545, %v1543
        %v1560 = vpack.c.b16 %v1548, %v1546
        %v1561 = vpack.c.b16 %v1549, %v1547
        %v1562 = vpack.c.b16 %v1552, %v1550
        %v1563 = vpack.c.b16 %v1553, %v1551
        %v1564 = vpack.c.b16 %v1556, %v1554
        %v1565 = vpack.c.b16 %v1557, %v1555
        %v1575 = vsel %vm606, %v1517, 0
        %1577 = vmatpush.bf16.msra.mxu0 0
        %1578 = vmatpush.bf16.msra.mxu0 0
        %1579 = vmatpush.bf16.msra.mxu0 0
        %1580 = vmatpush.bf16.msra.mxu0 0
        %1581 = vmatpush.bf16.msra.mxu0 %v1564
        %1582 = vmatpush.bf16.msra.mxu0 %v1562
        %1583 = vmatpush.bf16.msra.mxu0 %v1560
        %1584 = vmatpush.bf16.msra.mxu0 %v1558
        %1585 = vmatmul.bf16.gmra.mxu0 %v1575
        %v1586 = vpop.f32.mrf.mxu0
        %v1587 = vadd.f32 %v1530, %v1586
        %v1588 = vpop.f32.mrf.mxu0
        %1589 = vdwg.mxu0
        %1590 = vmatpush.bf16.msra.mxu0 0
        %1591 = vmatpush.bf16.msra.mxu0 0
        %1592 = vmatpush.bf16.msra.mxu0 0
        %1593 = vmatpush.bf16.msra.mxu0 0
        %1594 = vmatpush.bf16.msra.mxu0 %v1565
        %1595 = vmatpush.bf16.msra.mxu0 %v1563
        %1596 = vmatpush.bf16.msra.mxu0 %v1561
        %1597 = vmatpush.bf16.msra.mxu0 %v1559
        %1598 = vmatmul.bf16.gmra.mxu0 %v1575
        %v1599 = vpop.f32.mrf.mxu0
        %v1600 = vadd.f32 %v1531, %v1599
        %v1601 = vpop.f32.mrf.mxu0
        %1602 = vdwg.mxu0
        %v1603 = vmul.f32 %v1587, 1.702
        %v1604 = vmul.f32 %v1600, 1.702
        %v1605 = vxor.u32 %v1603, 2147483648
        %v1606 = vxor.u32 %v1604, 2147483648
        %v1607 = vmul.f32 %v1605, 1.442695
        %v1608 = vpow.pop %v1607
        %v1609 = vmul.f32 %v1606, 1.442695
        %v1610 = vpow.pop %v1609
        %v1611 = vadd.f32 %v1608, 1.0
        %v1612 = vadd.f32 %v1610, 1.0
        %v1613 = vrcp.pop %v1611
        %v1614 = vmul.f32 %v1611, %v1613
        %v1615 = vsub.f32 1.0, %v1614
        %v1616 = vmul.f32 %v1613, %v1615
        %v1617 = vadd.f32 %v1613, %v1616
        %vm1618 = vweird.f32 %v1611
        %vm1619 = vweird.f32 %v1613
        %vm1620 = vmor %vm1618, %vm1619
        %v1621 = vsel %vm1620, %v1613, %v1617
        %v1622 = vand.u32 2147483647, %v1611
        %vm1623 = vcmp.eq.f32.partialorder %v1622, 8.507059e+37
        %v1624 = vand.u32 %v1611, 2147483648
        %v1625 = vor.u32 1.1754944e-38, %v1624
        %v1626 = vsel %vm1623, %v1625, %v1621
        %v1627 = vmul.f32 1.0, %v1626
        %v1628 = vrcp.pop %v1612
        %v1629 = vmul.f32 %v1612, %v1628
        %v1630 = vsub.f32 1.0, %v1629
        %v1631 = vmul.f32 %v1628, %v1630
        %v1632 = vadd.f32 %v1628, %v1631
        %vm1633 = vweird.f32 %v1612
        %vm1634 = vweird.f32 %v1628
        %vm1635 = vmor %vm1633, %vm1634
        %v1636 = vsel %vm1635, %v1628, %v1632
        %v1637 = vand.u32 2147483647, %v1612
        %vm1638 = vcmp.eq.f32.partialorder %v1637, 8.507059e+37
        %v1639 = vand.u32 %v1612, 2147483648
        %v1640 = vor.u32 1.1754944e-38, %v1639
        %v1641 = vsel %vm1638, %v1640, %v1636
        %v1642 = vmul.f32 1.0, %v1641
        %v1643 = vmul.f32 %v1587, %v1627
        %v1644 = vmul.f32 %v1600, %v1642
        %v1645 = vpack.c.bf16 %v1643, %v1643
        %v1646 = vpack.c.bf16 %v1644, %v1644
        %s1647 = scalar_lea.vmem %s12, 128
        %v1648 = vld [vmem:[%s1647] sm:$0xf]
        %v1649 = vld [vmem:[%s1647 + $0x4] sm:$0xf]
        %v1650 = vld [vmem:[%s1647 + $0x8] sm:$0xf]
        %v1651 = vld [vmem:[%s1647 + $0xc] sm:$0xf]
        %v1652 = vld [vmem:[%s1647 + $0x10] sm:$0xf]
        %v1653 = vld [vmem:[%s1647 + $0x14] sm:$0xf]
        %v1654 = vld [vmem:[%s1647 + $0x18] sm:$0xf]
        %v1655 = vld [vmem:[%s1647 + $0x1c] sm:$0xf]
        %v1656 = vld [vmem:[%s1647 + $0x20] sm:$0xf]
        %v1657 = vld [vmem:[%s1647 + $0x24] sm:$0xf]
        %v1658 = vld [vmem:[%s1647 + $0x28] sm:$0xf]
        %v1659 = vld [vmem:[%s1647 + $0x2c] sm:$0xf]
        %v1660 = vld [vmem:[%s1647 + $0x30] sm:$0xf]
        %v1661 = vld [vmem:[%s1647 + $0x34] sm:$0xf]
        %v1662 = vld [vmem:[%s1647 + $0x38] sm:$0xf]
        %v1663 = vld [vmem:[%s1647 + $0x3c] sm:$0xf]
        %v1664 = vld [vmem:[%s1647 + $0x40] sm:$0xf]
        %v1665 = vld [vmem:[%s1647 + $0x44] sm:$0xf]
        %v1666 = vld [vmem:[%s1647 + $0x48] sm:$0xf]
        %v1667 = vld [vmem:[%s1647 + $0x4c] sm:$0xf]
        %v1668 = vld [vmem:[%s1647 + $0x50] sm:$0xf]
        %v1669 = vld [vmem:[%s1647 + $0x54] sm:$0xf]
        %v1670 = vld [vmem:[%s1647 + $0x58] sm:$0xf]
        %v1671 = vld [vmem:[%s1647 + $0x5c] sm:$0xf]
        %v1672 = vld [vmem:[%s1647 + $0x60] sm:$0xf]
        %v1673 = vld [vmem:[%s1647 + $0x64] sm:$0xf]
        %v1674 = vld [vmem:[%s1647 + $0x68] sm:$0xf]
        %v1675 = vld [vmem:[%s1647 + $0x6c] sm:$0xf]
        %v1676 = vld [vmem:[%s1647 + $0x70] sm:$0xf]
        %v1677 = vld [vmem:[%s1647 + $0x74] sm:$0xf]
        %v1678 = vld [vmem:[%s1647 + $0x78] sm:$0xf]
        %v1679 = vld [vmem:[%s1647 + $0x7c] sm:$0xf]
        %v1712 = vunpack.c.l.b16 %v1648
        %v1713 = vunpack.c.l.b16 %v1649
        %v1714 = vunpack.c.l.b16 %v1650
        %v1715 = vunpack.c.l.b16 %v1651
        %v1716 = vunpack.c.l.b16 %v1652
        %v1717 = vunpack.c.l.b16 %v1653
        %v1718 = vunpack.c.l.b16 %v1654
        %v1719 = vunpack.c.l.b16 %v1655
        %v1720 = vunpack.c.l.b16 %v1656
        %v1721 = vunpack.c.l.b16 %v1657
        %v1722 = vunpack.c.l.b16 %v1658
        %v1723 = vunpack.c.l.b16 %v1659
        %v1724 = vunpack.c.l.b16 %v1660
        %v1725 = vunpack.c.l.b16 %v1661
        %v1726 = vunpack.c.l.b16 %v1662
        %v1727 = vunpack.c.l.b16 %v1663
        %v1728 = vunpack.c.l.b16 %v1664
        %v1729 = vunpack.c.l.b16 %v1665
        %v1730 = vunpack.c.l.b16 %v1666
        %v1731 = vunpack.c.l.b16 %v1667
        %v1732 = vunpack.c.l.b16 %v1668
        %v1733 = vunpack.c.l.b16 %v1669
        %v1734 = vunpack.c.l.b16 %v1670
        %v1735 = vunpack.c.l.b16 %v1671
        %v1736 = vunpack.c.l.b16 %v1672
        %v1737 = vunpack.c.l.b16 %v1673
        %v1738 = vunpack.c.l.b16 %v1674
        %v1739 = vunpack.c.l.b16 %v1675
        %v1740 = vunpack.c.l.b16 %v1676
        %v1741 = vunpack.c.l.b16 %v1677
        %v1742 = vunpack.c.l.b16 %v1678
        %v1743 = vunpack.c.l.b16 %v1679
        %v1744 = vpack.c.b16 %v1713, %v1712
        %v1745 = vpack.c.b16 %v1715, %v1714
        %v1746 = vpack.c.b16 %v1717, %v1716
        %v1747 = vpack.c.b16 %v1719, %v1718
        %v1748 = vpack.c.b16 %v1721, %v1720
        %v1749 = vpack.c.b16 %v1723, %v1722
        %v1750 = vpack.c.b16 %v1725, %v1724
        %v1751 = vpack.c.b16 %v1727, %v1726
        %v1752 = vpack.c.b16 %v1729, %v1728
        %v1753 = vpack.c.b16 %v1731, %v1730
        %v1754 = vpack.c.b16 %v1733, %v1732
        %v1755 = vpack.c.b16 %v1735, %v1734
        %v1756 = vpack.c.b16 %v1737, %v1736
        %v1757 = vpack.c.b16 %v1739, %v1738
        %v1758 = vpack.c.b16 %v1741, %v1740
        %v1759 = vpack.c.b16 %v1743, %v1742
        %1776 = vmatpush.bf16.msra.mxu0 %v1751
        %1777 = vmatpush.bf16.msra.mxu0 %v1750
        %1778 = vmatpush.bf16.msra.mxu0 %v1749
        %1779 = vmatpush.bf16.msra.mxu0 %v1748
        %1780 = vmatpush.bf16.msra.mxu0 %v1747
        %1781 = vmatpush.bf16.msra.mxu0 %v1746
        %1782 = vmatpush.bf16.msra.mxu0 %v1745
        %1783 = vmatpush.bf16.msra.mxu0 %v1744
        %1784 = vmatmul.bf16.gmra.mxu0 %v1645
        %v1785 = vpop.f32.mrf.mxu0
        %v1786 = vadd.f32 0.0, %v1785
        %v1787 = vpop.f32.mrf.mxu0
        %1788 = vdwg.mxu0
        %1789 = vmatpush.bf16.msra.mxu0 %v1759
        %1790 = vmatpush.bf16.msra.mxu0 %v1758
        %1791 = vmatpush.bf16.msra.mxu0 %v1757
        %1792 = vmatpush.bf16.msra.mxu0 %v1756
        %1793 = vmatpush.bf16.msra.mxu0 %v1755
        %1794 = vmatpush.bf16.msra.mxu0 %v1754
        %1795 = vmatpush.bf16.msra.mxu0 %v1753
        %1796 = vmatpush.bf16.msra.mxu0 %v1752
        %1797 = vmatmul.bf16.gmra.mxu0 %v1646
        %v1798 = vpop.f32.mrf.mxu0
        %v1799 = vadd.f32 %v1786, %v1798
        %v1800 = vpop.f32.mrf.mxu0
        %1801 = vdwg.mxu0
        %v1802 = vadd.f32 %v1488, %v1799
        %v1803 = vld [vmem:[%s13 + $0x1] sm:$0x1]
        %v1804 = vperm.slane %v1803, 0
        %v1805 = vadd.f32 %v1802, %v1804
        %v1806 = vld [vmem:[#allocation7 + $0x2] sm:$0x1]
        %v1807 = vld [vmem:[#allocation8 + $0x2] sm:$0x1]
        %v1808 = vsel %vm606, %v1805, 0.0
        %1809 = vadd.xlane.f32.xlu0 %v1808
        %v1810 = vpop.xlane.xlu0 %1809
        %v1811 = vmul.f32 %v1810, %v616
        %v1812 = vsub.f32 %v1805, %v1811
        %v1813 = vmul.f32 %v1812, %v1812
        %v1814 = vsel %vm606, %v1813, 0.0
        %1815 = vadd.xlane.f32.xlu0 %v1814
        %v1816 = vpop.xlane.xlu0 %1815
        %v1817 = vmul.f32 %v1816, %v616
        %v1818 = vadd.f32 %v1817, 1e-12
        %v1819 = vrsqrt.pop %v1818
        %v1820 = vmul.f32 %v1819, %v1818
        %v1821 = vmul.f32 %v1820, %v1819
        %v1822 = vmul.f32 0.5, %v1821
        %v1823 = vsub.f32 1.5, %v1822
        %v1824 = vmul.f32 %v1819, %v1823
        %vm1825 = vweird.f32 %v1818
        %vm1826 = vweird.f32 %v1819
        %vm1827 = vmor %vm1825, %vm1826
        %v1828 = vsel %vm1827, %v1819, %v1824
        %v1829 = vmul.f32 %v1812, %v1828
        %v1830 = vperm.slane %v1806, 0
        %v1831 = vmul.f32 %v1830, %v1829
        %v1832 = vperm.slane %v1807, 0
        %v1833 = vadd.f32 %v1831, %v1832
        %v1834 = vpack.c.bf16 %v1833, %v1833
        %s1835 = scalar_lea.vmem %s4, 192
        %v1836 = vld [vmem:[%s1835] sm:$0xff]
        %v1837 = vld [vmem:[%s1835 + $0x8] sm:$0xf]
        %v1838 = vld [vmem:[%s1835 + $0xc] sm:$0xff]
        %v1839 = vld [vmem:[%s1835 + $0x14] sm:$0xf]
        %v1840 = vld [vmem:[%s1835 + $0x18] sm:$0xff]
        %v1841 = vld [vmem:[%s1835 + $0x20] sm:$0xf]
        %v1842 = vld [vmem:[%s1835 + $0x24] sm:$0xff]
        %v1843 = vld [vmem:[%s1835 + $0x2c] sm:$0xf]
        %v1844 = vld [vmem:[%s1835 + $0x30] sm:$0xff]
        %v1845 = vld [vmem:[%s1835 + $0x38] sm:$0xf]
        %v1846 = vld [vmem:[%s1835 + $0x3c] sm:$0xff]
        %v1847 = vld [vmem:[%s1835 + $0x44] sm:$0xf]
        %v1848 = vld [vmem:[%s1835 + $0x48] sm:$0xff]
        %v1849 = vld [vmem:[%s1835 + $0x50] sm:$0xf]
        %v1850 = vld [vmem:[%s1835 + $0x54] sm:$0xff]
        %v1851 = vld [vmem:[%s1835 + $0x5c] sm:$0xf]
        %s1852 = scalar_lea.vmem [#allocation10], 2
        %v1853 = vld [vmem:[%s1852] ss:$8 sm:$0x7]
        %v1855 = vperm.slane %v1853, 0
        %v1856 = vperm.slane %v1853, 1
        %v1857 = vperm.slane %v1853, 2
        %v1877 = vunpack.c.l.b16 %v1836
        %v1878 = vunpack.c.h.b16 %v1836
        %v1879 = vunpack.c.l.b16 %v1837
        %v1880 = vunpack.c.l.b16 %v1838
        %v1881 = vunpack.c.h.b16 %v1838
        %v1882 = vunpack.c.l.b16 %v1839
        %v1883 = vunpack.c.l.b16 %v1840
        %v1884 = vunpack.c.h.b16 %v1840
        %v1885 = vunpack.c.l.b16 %v1841
        %v1886 = vunpack.c.l.b16 %v1842
        %v1887 = vunpack.c.h.b16 %v1842
        %v1888 = vunpack.c.l.b16 %v1843
        %v1889 = vunpack.c.l.b16 %v1844
        %v1890 = vunpack.c.h.b16 %v1844
        %v1891 = vunpack.c.l.b16 %v1845
        %v1892 = vunpack.c.l.b16 %v1846
        %v1893 = vunpack.c.h.b16 %v1846
        %v1894 = vunpack.c.l.b16 %v1847
        %v1895 = vunpack.c.l.b16 %v1848
        %v1896 = vunpack.c.h.b16 %v1848
        %v1897 = vunpack.c.l.b16 %v1849
        %v1898 = vunpack.c.l.b16 %v1850
        %v1899 = vunpack.c.h.b16 %v1850
        %v1900 = vunpack.c.l.b16 %v1851
        %v1901 = vpack.c.b16 %v1880, %v1877
        %v1902 = vpack.c.b16 %v1881, %v1878
        %v1903 = vpack.c.b16 %v1882, %v1879
        %v1904 = vpack.c.b16 %v1886, %v1883
        %v1905 = vpack.c.b16 %v1887, %v1884
        %v1906 = vpack.c.b16 %v1888, %v1885
        %v1907 = vpack.c.b16 %v1892, %v1889
        %v1908 = vpack.c.b16 %v1893, %v1890
        %v1909 = vpack.c.b16 %v1894, %v1891
        %v1910 = vpack.c.b16 %v1898, %v1895
        %v1911 = vpack.c.b16 %v1899, %v1896
        %v1912 = vpack.c.b16 %v1900, %v1897
        %v1926 = vsel %vm606, %v1834, 0
        %1928 = vmatpush.bf16.msra.mxu0 0
        %1929 = vmatpush.bf16.msra.mxu0 0
        %1930 = vmatpush.bf16.msra.mxu0 0
        %1931 = vmatpush.bf16.msra.mxu0 0
        %1932 = vmatpush.bf16.msra.mxu0 %v1910
        %1933 = vmatpush.bf16.msra.mxu0 %v1907
        %1934 = vmatpush.bf16.msra.mxu0 %v1904
        %1935 = vmatpush.bf16.msra.mxu0 %v1901
        %1936 = vmatmul.bf16.gmra.mxu0 %v1926
        %v1937 = vpop.f32.mrf.mxu0
        %v1938 = vadd.f32 %v1855, %v1937
        %v1939 = vpop.f32.mrf.mxu0
        %1940 = vdwg.mxu0
        %1941 = vmatpush.bf16.msra.mxu0 0
        %1942 = vmatpush.bf16.msra.mxu0 0
        %1943 = vmatpush.bf16.msra.mxu0 0
        %1944 = vmatpush.bf16.msra.mxu0 0
        %1945 = vmatpush.bf16.msra.mxu0 %v1911
        %1946 = vmatpush.bf16.msra.mxu0 %v1908
        %1947 = vmatpush.bf16.msra.mxu0 %v1905
        %1948 = vmatpush.bf16.msra.mxu0 %v1902
        %1949 = vmatmul.bf16.gmra.mxu0 %v1926
        %v1950 = vpop.f32.mrf.mxu0
        %v1951 = vadd.f32 %v1856, %v1950
        %v1952 = vpop.f32.mrf.mxu0
        %1953 = vdwg.mxu0
        %1954 = vmatpush.bf16.msra.mxu0 0
        %1955 = vmatpush.bf16.msra.mxu0 0
        %1956 = vmatpush.bf16.msra.mxu0 0
        %1957 = vmatpush.bf16.msra.mxu0 0
        %1958 = vmatpush.bf16.msra.mxu0 %v1912
        %1959 = vmatpush.bf16.msra.mxu0 %v1909
        %1960 = vmatpush.bf16.msra.mxu0 %v1906
        %1961 = vmatpush.bf16.msra.mxu0 %v1903
        %1962 = vmatmul.bf16.gmra.mxu0 %v1926
        %v1963 = vpop.f32.mrf.mxu0
        %v1964 = vadd.f32 %v1857, %v1963
        %v1965 = vpop.f32.mrf.mxu0
        %1966 = vdwg.mxu0
        %v1967 = vmul.f32 %v1938, 0.125
        %v1968 = vpack.c.bf16 %v1967, %v1967
        %v1969 = vpack.c.bf16 %v1951, %v1951
        %v1971 = vsel %vm606, %v1968, 0
        %v1974 = vsel %vm606, %v1969, 0
        %1976 = vmatpush.bf16.xpose.msra.mxu0 0
        %1977 = vmatpush.bf16.xpose.msra.mxu0 0
        %1978 = vmatpush.bf16.xpose.msra.mxu0 0
        %1979 = vmatpush.bf16.xpose.msra.mxu0 0
        %1980 = vmatpush.bf16.xpose.msra.mxu0 0
        %1981 = vmatpush.bf16.xpose.msra.mxu0 0
        %1982 = vmatpush.bf16.xpose.msra.mxu0 0
        %1983 = vmatpush.bf16.xpose.msra.mxu0 %v1974
        %1984 = vmatmul.bf16.gmra.mxu0 %v1971
        %v1985 = vpop.f32.mrf.mxu0
        %v1986 = vadd.f32 0.0, %v1985
        %v1987 = vpop.f32.mrf.mxu0
        %1988 = vdwg.mxu0
        %v1989 = vsel %vm793, %v1986, -inf
        %1990 = vmax.xlane.f32.xlu0 %v1989
        %v1991 = vpop.xlane.xlu0 %1990
        %v1992 = vsub.f32 %v1986, %v1991
        %v1993 = vmul.f32 %v1992, 1.442695
        %v1994 = vpow.pop %v1993
        %v1995 = vsel %vm793, %v1994, 0.0
        %1996 = vadd.xlane.f32.xlu0 %v1995
        %v1997 = vpop.xlane.xlu0 %1996
        %v1998 = vrcp.pop %v1997
        %v1999 = vmul.f32 %v1997, %v1998
        %v2000 = vsub.f32 1.0, %v1999
        %v2001 = vmul.f32 %v1998, %v2000
        %v2002 = vadd.f32 %v1998, %v2001
        %vm2003 = vweird.f32 %v1997
        %vm2004 = vweird.f32 %v1998
        %vm2005 = vmor %vm2003, %vm2004
        %v2006 = vsel %vm2005, %v1998, %v2002
        %v2007 = vand.u32 2147483647, %v1997
        %vm2008 = vcmp.eq.f32.partialorder %v2007, 8.507059e+37
        %v2009 = vand.u32 %v1997, 2147483648
        %v2010 = vor.u32 1.1754944e-38, %v2009
        %v2011 = vsel %vm2008, %v2010, %v2006
        %v2012 = vmul.f32 %v1994, %v2011
        %v2013 = vpack.c.bf16 %v2012, %v2012
        %v2014 = vpack.c.bf16 %v1964, %v1964
        %v2016 = vsel %vm793, %v2013, 0
        %v2019 = vsel %vm823, %v2014, 0
        %2021 = vmatpush.bf16.msra.mxu0 0
        %2022 = vmatpush.bf16.msra.mxu0 0
        %2023 = vmatpush.bf16.msra.mxu0 0
        %2024 = vmatpush.bf16.msra.mxu0 0
        %2025 = vmatpush.bf16.msra.mxu0 0
        %2026 = vmatpush.bf16.msra.mxu0 0
        %2027 = vmatpush.bf16.msra.mxu0 0
        %2028 = vmatpush.bf16.msra.mxu0 %v2019
        %2029 = vmatmul.bf16.gmra.mxu0 %v2016
        %v2030 = vpop.f32.mrf.mxu0
        %v2031 = vadd.f32 0.0, %v2030
        %v2032 = vpop.f32.mrf.mxu0
        %2033 = vdwg.mxu0
        %v2034 = vpack.c.bf16 %v2031, %v2031
        %s2035 = scalar_lea.vmem %s6, 64
        %v2036 = vld [vmem:[%s2035] sm:$0xf]
        %v2037 = vld [vmem:[%s2035 + $0x4] sm:$0xf]
        %v2038 = vld [vmem:[%s2035 + $0x8] sm:$0xf]
        %v2039 = vld [vmem:[%s2035 + $0xc] sm:$0xf]
        %v2040 = vld [vmem:[%s2035 + $0x10] sm:$0xf]
        %v2041 = vld [vmem:[%s2035 + $0x14] sm:$0xf]
        %v2042 = vld [vmem:[%s2035 + $0x18] sm:$0xf]
        %v2043 = vld [vmem:[%s2035 + $0x1c] sm:$0xf]
        %v2052 = vunpack.c.l.b16 %v2036
        %v2053 = vunpack.c.l.b16 %v2037
        %v2054 = vunpack.c.l.b16 %v2038
        %v2055 = vunpack.c.l.b16 %v2039
        %v2056 = vunpack.c.l.b16 %v2040
        %v2057 = vunpack.c.l.b16 %v2041
        %v2058 = vunpack.c.l.b16 %v2042
        %v2059 = vunpack.c.l.b16 %v2043
        %v2060 = vpack.c.b16 %v2053, %v2052
        %v2061 = vpack.c.b16 %v2055, %v2054
        %v2062 = vpack.c.b16 %v2057, %v2056
        %v2063 = vpack.c.b16 %v2059, %v2058
        %v2069 = vsel %vm606, %v2034, 0
        %2071 = vmatpush.bf16.msra.mxu0 0
        %2072 = vmatpush.bf16.msra.mxu0 0
        %2073 = vmatpush.bf16.msra.mxu0 0
        %2074 = vmatpush.bf16.msra.mxu0 0
        %2075 = vmatpush.bf16.msra.mxu0 %v2063
        %2076 = vmatpush.bf16.msra.mxu0 %v2062
        %2077 = vmatpush.bf16.msra.mxu0 %v2061
        %2078 = vmatpush.bf16.msra.mxu0 %v2060
        %2079 = vmatmul.bf16.gmra.mxu0 %v2069
        %v2080 = vpop.f32.mrf.mxu0
        %v2081 = vadd.f32 0.0, %v2080
        %v2082 = vpop.f32.mrf.mxu0
        %2083 = vdwg.mxu0
        %v2084 = vadd.f32 %v1805, %v2081
        %v2085 = vld [vmem:[#allocation11 + $0x2] sm:$0x1]
        %v2086 = vperm.slane %v2085, 0
        %v2087 = vadd.f32 %v2084, %v2086
        %v2088 = vld [vmem:[#allocation13 + $0x2] sm:$0x1]
        %v2089 = vld [vmem:[#allocation14 + $0x2] sm:$0x1]
        %v2090 = vsel %vm606, %v2087, 0.0
        %2091 = vadd.xlane.f32.xlu0 %v2090
        %v2092 = vpop.xlane.xlu0 %2091
        %v2093 = vmul.f32 %v2092, %v616
        %v2094 = vsub.f32 %v2087, %v2093
        %v2095 = vmul.f32 %v2094, %v2094
        %v2096 = vsel %vm606, %v2095, 0.0
        %2097 = vadd.xlane.f32.xlu0 %v2096
        %v2098 = vpop.xlane.xlu0 %2097
        %v2099 = vmul.f32 %v2098, %v616
        %v2100 = vadd.f32 %v2099, 1e-12
        %v2101 = vrsqrt.pop %v2100
        %v2102 = vmul.f32 %v2101, %v2100
        %v2103 = vmul.f32 %v2102, %v2101
        %v2104 = vmul.f32 0.5, %v2103
        %v2105 = vsub.f32 1.5, %v2104
        %v2106 = vmul.f32 %v2101, %v2105
        %vm2107 = vweird.f32 %v2100
        %vm2108 = vweird.f32 %v2101
        %vm2109 = vmor %vm2107, %vm2108
        %v2110 = vsel %vm2109, %v2101, %v2106
        %v2111 = vmul.f32 %v2094, %v2110
        %v2112 = vperm.slane %v2088, 0
        %v2113 = vmul.f32 %v2112, %v2111
        %v2114 = vperm.slane %v2089, 0
        %v2115 = vadd.f32 %v2113, %v2114
        %v2116 = vpack.c.bf16 %v2115, %v2115
        %s2117 = scalar_lea.vmem %s10, 128
        %v2118 = vld [vmem:[%s2117] sm:$0xff]
        %v2119 = vld [vmem:[%s2117 + $0x8] sm:$0xff]
        %v2120 = vld [vmem:[%s2117 + $0x10] sm:$0xff]
        %v2121 = vld [vmem:[%s2117 + $0x18] sm:$0xff]
        %v2122 = vld [vmem:[%s2117 + $0x20] sm:$0xff]
        %v2123 = vld [vmem:[%s2117 + $0x28] sm:$0xff]
        %v2124 = vld [vmem:[%s2117 + $0x30] sm:$0xff]
        %v2125 = vld [vmem:[%s2117 + $0x38] sm:$0xff]
        %s2126 = scalar_lea.vmem [#allocation16], 2
        %v2127 = vld [vmem:[%s2126] ss:$8 sm:$0x3]
        %v2129 = vperm.slane %v2127, 0
        %v2130 = vperm.slane %v2127, 1
        %v2141 = vunpack.c.l.b16 %v2118
        %v2142 = vunpack.c.h.b16 %v2118
        %v2143 = vunpack.c.l.b16 %v2119
        %v2144 = vunpack.c.h.b16 %v2119
        %v2145 = vunpack.c.l.b16 %v2120
        %v2146 = vunpack.c.h.b16 %v2120
        %v2147 = vunpack.c.l.b16 %v2121
        %v2148 = vunpack.c.h.b16 %v2121
        %v2149 = vunpack.c.l.b16 %v2122
        %v2150 = vunpack.c.h.b16 %v2122
        %v2151 = vunpack.c.l.b16 %v2123
        %v2152 = vunpack.c.h.b16 %v2123
        %v2153 = vunpack.c.l.b16 %v2124
        %v2154 = vunpack.c.h.b16 %v2124
        %v2155 = vunpack.c.l.b16 %v2125
        %v2156 = vunpack.c.h.b16 %v2125
        %v2157 = vpack.c.b16 %v2143, %v2141
        %v2158 = vpack.c.b16 %v2144, %v2142
        %v2159 = vpack.c.b16 %v2147, %v2145
        %v2160 = vpack.c.b16 %v2148, %v2146
        %v2161 = vpack.c.b16 %v2151, %v2149
        %v2162 = vpack.c.b16 %v2152, %v2150
        %v2163 = vpack.c.b16 %v2155, %v2153
        %v2164 = vpack.c.b16 %v2156, %v2154
        %v2174 = vsel %vm606, %v2116, 0
        %2176 = vmatpush.bf16.msra.mxu0 0
        %2177 = vmatpush.bf16.msra.mxu0 0
        %2178 = vmatpush.bf16.msra.mxu0 0
        %2179 = vmatpush.bf16.msra.mxu0 0
        %2180 = vmatpush.bf16.msra.mxu0 %v2163
        %2181 = vmatpush.bf16.msra.mxu0 %v2161
        %2182 = vmatpush.bf16.msra.mxu0 %v2159
        %2183 = vmatpush.bf16.msra.mxu0 %v2157
        %2184 = vmatmul.bf16.gmra.mxu0 %v2174
        %v2185 = vpop.f32.mrf.mxu0
        %v2186 = vadd.f32 %v2129, %v2185
        %v2187 = vpop.f32.mrf.mxu0
        %2188 = vdwg.mxu0
        %2189 = vmatpush.bf16.msra.mxu0 0
        %2190 = vmatpush.bf16.msra.mxu0 0
        %2191 = vmatpush.bf16.msra.mxu0 0
        %2192 = vmatpush.bf16.msra.mxu0 0
        %2193 = vmatpush.bf16.msra.mxu0 %v2164
        %2194 = vmatpush.bf16.msra.mxu0 %v2162
        %2195 = vmatpush.bf16.msra.mxu0 %v2160
        %2196 = vmatpush.bf16.msra.mxu0 %v2158
        %2197 = vmatmul.bf16.gmra.mxu0 %v2174
        %v2198 = vpop.f32.mrf.mxu0
        %v2199 = vadd.f32 %v2130, %v2198
        %v2200 = vpop.f32.mrf.mxu0
        %2201 = vdwg.mxu0
        %v2202 = vmul.f32 %v2186, 1.702
        %v2203 = vmul.f32 %v2199, 1.702
        %v2204 = vxor.u32 %v2202, 2147483648
        %v2205 = vxor.u32 %v2203, 2147483648
        %v2206 = vmul.f32 %v2204, 1.442695
        %v2207 = vpow.pop %v2206
        %v2208 = vmul.f32 %v2205, 1.442695
        %v2209 = vpow.pop %v2208
        %v2210 = vadd.f32 %v2207, 1.0
        %v2211 = vadd.f32 %v2209, 1.0
        %v2212 = vrcp.pop %v2210
        %v2213 = vmul.f32 %v2210, %v2212
        %v2214 = vsub.f32 1.0, %v2213
        %v2215 = vmul.f32 %v2212, %v2214
        %v2216 = vadd.f32 %v2212, %v2215
        %vm2217 = vweird.f32 %v2210
        %vm2218 = vweird.f32 %v2212
        %vm2219 = vmor %vm2217, %vm2218
        %v2220 = vsel %vm2219, %v2212, %v2216
        %v2221 = vand.u32 2147483647, %v2210
        %vm2222 = vcmp.eq.f32.partialorder %v2221, 8.507059e+37
        %v2223 = vand.u32 %v2210, 2147483648
        %v2224 = vor.u32 1.1754944e-38, %v2223
        %v2225 = vsel %vm2222, %v2224, %v2220
        %v2226 = vmul.f32 1.0, %v2225
        %v2227 = vrcp.pop %v2211
        %v2228 = vmul.f32 %v2211, %v2227
        %v2229 = vsub.f32 1.0, %v2228
        %v2230 = vmul.f32 %v2227, %v2229
        %v2231 = vadd.f32 %v2227, %v2230
        %vm2232 = vweird.f32 %v2211
        %vm2233 = vweird.f32 %v2227
        %vm2234 = vmor %vm2232, %vm2233
        %v2235 = vsel %vm2234, %v2227, %v2231
        %v2236 = vand.u32 2147483647, %v2211
        %vm2237 = vcmp.eq.f32.partialorder %v2236, 8.507059e+37
        %v2238 = vand.u32 %v2211, 2147483648
        %v2239 = vor.u32 1.1754944e-38, %v2238
        %v2240 = vsel %vm2237, %v2239, %v2235
        %v2241 = vmul.f32 1.0, %v2240
        %v2242 = vmul.f32 %v2186, %v2226
        %v2243 = vmul.f32 %v2199, %v2241
        %v2244 = vpack.c.bf16 %v2242, %v2242
        %v2245 = vpack.c.bf16 %v2243, %v2243
        %s2246 = scalar_lea.vmem %s12, 256
        %v2247 = vld [vmem:[%s2246] sm:$0xf]
        %v2248 = vld [vmem:[%s2246 + $0x4] sm:$0xf]
        %v2249 = vld [vmem:[%s2246 + $0x8] sm:$0xf]
        %v2250 = vld [vmem:[%s2246 + $0xc] sm:$0xf]
        %v2251 = vld [vmem:[%s2246 + $0x10] sm:$0xf]
        %v2252 = vld [vmem:[%s2246 + $0x14] sm:$0xf]
        %v2253 = vld [vmem:[%s2246 + $0x18] sm:$0xf]
        %v2254 = vld [vmem:[%s2246 + $0x1c] sm:$0xf]
        %v2255 = vld [vmem:[%s2246 + $0x20] sm:$0xf]
        %v2256 = vld [vmem:[%s2246 + $0x24] sm:$0xf]
        %v2257 = vld [vmem:[%s2246 + $0x28] sm:$0xf]
        %v2258 = vld [vmem:[%s2246 + $0x2c] sm:$0xf]
        %v2259 = vld [vmem:[%s2246 + $0x30] sm:$0xf]
        %v2260 = vld [vmem:[%s2246 + $0x34] sm:$0xf]
        %v2261 = vld [vmem:[%s2246 + $0x38] sm:$0xf]
        %v2262 = vld [vmem:[%s2246 + $0x3c] sm:$0xf]
        %v2263 = vld [vmem:[%s2246 + $0x40] sm:$0xf]
        %v2264 = vld [vmem:[%s2246 + $0x44] sm:$0xf]
        %v2265 = vld [vmem:[%s2246 + $0x48] sm:$0xf]
        %v2266 = vld [vmem:[%s2246 + $0x4c] sm:$0xf]
        %v2267 = vld [vmem:[%s2246 + $0x50] sm:$0xf]
        %v2268 = vld [vmem:[%s2246 + $0x54] sm:$0xf]
        %v2269 = vld [vmem:[%s2246 + $0x58] sm:$0xf]
        %v2270 = vld [vmem:[%s2246 + $0x5c] sm:$0xf]
        %v2271 = vld [vmem:[%s2246 + $0x60] sm:$0xf]
        %v2272 = vld [vmem:[%s2246 + $0x64] sm:$0xf]
        %v2273 = vld [vmem:[%s2246 + $0x68] sm:$0xf]
        %v2274 = vld [vmem:[%s2246 + $0x6c] sm:$0xf]
        %v2275 = vld [vmem:[%s2246 + $0x70] sm:$0xf]
        %v2276 = vld [vmem:[%s2246 + $0x74] sm:$0xf]
        %v2277 = vld [vmem:[%s2246 + $0x78] sm:$0xf]
        %v2278 = vld [vmem:[%s2246 + $0x7c] sm:$0xf]
        %v2311 = vunpack.c.l.b16 %v2247
        %v2312 = vunpack.c.l.b16 %v2248
        %v2313 = vunpack.c.l.b16 %v2249
        %v2314 = vunpack.c.l.b16 %v2250
        %v2315 = vunpack.c.l.b16 %v2251
        %v2316 = vunpack.c.l.b16 %v2252
        %v2317 = vunpack.c.l.b16 %v2253
        %v2318 = vunpack.c.l.b16 %v2254
        %v2319 = vunpack.c.l.b16 %v2255
        %v2320 = vunpack.c.l.b16 %v2256
        %v2321 = vunpack.c.l.b16 %v2257
        %v2322 = vunpack.c.l.b16 %v2258
        %v2323 = vunpack.c.l.b16 %v2259
        %v2324 = vunpack.c.l.b16 %v2260
        %v2325 = vunpack.c.l.b16 %v2261
        %v2326 = vunpack.c.l.b16 %v2262
        %v2327 = vunpack.c.l.b16 %v2263
        %v2328 = vunpack.c.l.b16 %v2264
        %v2329 = vunpack.c.l.b16 %v2265
        %v2330 = vunpack.c.l.b16 %v2266
        %v2331 = vunpack.c.l.b16 %v2267
        %v2332 = vunpack.c.l.b16 %v2268
        %v2333 = vunpack.c.l.b16 %v2269
        %v2334 = vunpack.c.l.b16 %v2270
        %v2335 = vunpack.c.l.b16 %v2271
        %v2336 = vunpack.c.l.b16 %v2272
        %v2337 = vunpack.c.l.b16 %v2273
        %v2338 = vunpack.c.l.b16 %v2274
        %v2339 = vunpack.c.l.b16 %v2275
        %v2340 = vunpack.c.l.b16 %v2276
        %v2341 = vunpack.c.l.b16 %v2277
        %v2342 = vunpack.c.l.b16 %v2278
        %v2343 = vpack.c.b16 %v2312, %v2311
        %v2344 = vpack.c.b16 %v2314, %v2313
        %v2345 = vpack.c.b16 %v2316, %v2315
        %v2346 = vpack.c.b16 %v2318, %v2317
        %v2347 = vpack.c.b16 %v2320, %v2319
        %v2348 = vpack.c.b16 %v2322, %v2321
        %v2349 = vpack.c.b16 %v2324, %v2323
        %v2350 = vpack.c.b16 %v2326, %v2325
        %v2351 = vpack.c.b16 %v2328, %v2327
        %v2352 = vpack.c.b16 %v2330, %v2329
        %v2353 = vpack.c.b16 %v2332, %v2331
        %v2354 = vpack.c.b16 %v2334, %v2333
        %v2355 = vpack.c.b16 %v2336, %v2335
        %v2356 = vpack.c.b16 %v2338, %v2337
        %v2357 = vpack.c.b16 %v2340, %v2339
        %v2358 = vpack.c.b16 %v2342, %v2341
        %2375 = vmatpush.bf16.msra.mxu0 %v2350
        %2376 = vmatpush.bf16.msra.mxu0 %v2349
        %2377 = vmatpush.bf16.msra.mxu0 %v2348
        %2378 = vmatpush.bf16.msra.mxu0 %v2347
        %2379 = vmatpush.bf16.msra.mxu0 %v2346
        %2380 = vmatpush.bf16.msra.mxu0 %v2345
        %2381 = vmatpush.bf16.msra.mxu0 %v2344
        %2382 = vmatpush.bf16.msra.mxu0 %v2343
        %2383 = vmatmul.bf16.gmra.mxu0 %v2244
        %v2384 = vpop.f32.mrf.mxu0
        %v2385 = vadd.f32 0.0, %v2384
        %v2386 = vpop.f32.mrf.mxu0
        %2387 = vdwg.mxu0
        %2388 = vmatpush.bf16.msra.mxu0 %v2358
        %2389 = vmatpush.bf16.msra.mxu0 %v2357
        %2390 = vmatpush.bf16.msra.mxu0 %v2356
        %2391 = vmatpush.bf16.msra.mxu0 %v2355
        %2392 = vmatpush.bf16.msra.mxu0 %v2354
        %2393 = vmatpush.bf16.msra.mxu0 %v2353
        %2394 = vmatpush.bf16.msra.mxu0 %v2352
        %2395 = vmatpush.bf16.msra.mxu0 %v2351
        %2396 = vmatmul.bf16.gmra.mxu0 %v2245
        %v2397 = vpop.f32.mrf.mxu0
        %v2398 = vadd.f32 %v2385, %v2397
        %v2399 = vpop.f32.mrf.mxu0
        %2400 = vdwg.mxu0
        %v2401 = vadd.f32 %v2087, %v2398
        %v2402 = vld [vmem:[%s13 + $0x2] sm:$0x1]
        %v2403 = vperm.slane %v2402, 0
        %v2404 = vadd.f32 %v2401, %v2403
        %v2405 = vld [vmem:[#allocation7 + $0x3] sm:$0x1]
        %v2406 = vld [vmem:[#allocation8 + $0x3] sm:$0x1]
        %v2407 = vsel %vm606, %v2404, 0.0
        %2408 = vadd.xlane.f32.xlu0 %v2407
        %v2409 = vpop.xlane.xlu0 %2408
        %v2410 = vmul.f32 %v2409, %v616
        %v2411 = vsub.f32 %v2404, %v2410
        %v2412 = vmul.f32 %v2411, %v2411
        %v2413 = vsel %vm606, %v2412, 0.0
        %2414 = vadd.xlane.f32.xlu0 %v2413
        %v2415 = vpop.xlane.xlu0 %2414
        %v2416 = vmul.f32 %v2415, %v616
        %v2417 = vadd.f32 %v2416, 1e-12
        %v2418 = vrsqrt.pop %v2417
        %v2419 = vmul.f32 %v2418, %v2417
        %v2420 = vmul.f32 %v2419, %v2418
        %v2421 = vmul.f32 0.5, %v2420
        %v2422 = vsub.f32 1.5, %v2421
        %v2423 = vmul.f32 %v2418, %v2422
        %vm2424 = vweird.f32 %v2417
        %vm2425 = vweird.f32 %v2418
        %vm2426 = vmor %vm2424, %vm2425
        %v2427 = vsel %vm2426, %v2418, %v2423
        %v2428 = vmul.f32 %v2411, %v2427
        %v2429 = vperm.slane %v2405, 0
        %v2430 = vmul.f32 %v2429, %v2428
        %v2431 = vperm.slane %v2406, 0
        %v2432 = vadd.f32 %v2430, %v2431
        %v2433 = vpack.c.bf16 %v2432, %v2432
        %s2434 = scalar_lea.vmem %s4, 288
        %v2435 = vld [vmem:[%s2434] sm:$0xff]
        %v2436 = vld [vmem:[%s2434 + $0x8] sm:$0xf]
        %v2437 = vld [vmem:[%s2434 + $0xc] sm:$0xff]
        %v2438 = vld [vmem:[%s2434 + $0x14] sm:$0xf]
        %v2439 = vld [vmem:[%s2434 + $0x18] sm:$0xff]
        %v2440 = vld [vmem:[%s2434 + $0x20] sm:$0xf]
        %v2441 = vld [vmem:[%s2434 + $0x24] sm:$0xff]
        %v2442 = vld [vmem:[%s2434 + $0x2c] sm:$0xf]
        %v2443 = vld [vmem:[%s2434 + $0x30] sm:$0xff]
        %v2444 = vld [vmem:[%s2434 + $0x38] sm:$0xf]
        %v2445 = vld [vmem:[%s2434 + $0x3c] sm:$0xff]
        %v2446 = vld [vmem:[%s2434 + $0x44] sm:$0xf]
        %v2447 = vld [vmem:[%s2434 + $0x48] sm:$0xff]
        %v2448 = vld [vmem:[%s2434 + $0x50] sm:$0xf]
        %v2449 = vld [vmem:[%s2434 + $0x54] sm:$0xff]
        %v2450 = vld [vmem:[%s2434 + $0x5c] sm:$0xf]
        %s2451 = scalar_lea.vmem [#allocation10], 3
        %v2452 = vld [vmem:[%s2451] ss:$8 sm:$0x7]
        %v2454 = vperm.slane %v2452, 0
        %v2455 = vperm.slane %v2452, 1
        %v2456 = vperm.slane %v2452, 2
        %v2476 = vunpack.c.l.b16 %v2435
        %v2477 = vunpack.c.h.b16 %v2435
        %v2478 = vunpack.c.l.b16 %v2436
        %v2479 = vunpack.c.l.b16 %v2437
        %v2480 = vunpack.c.h.b16 %v2437
        %v2481 = vunpack.c.l.b16 %v2438
        %v2482 = vunpack.c.l.b16 %v2439
        %v2483 = vunpack.c.h.b16 %v2439
        %v2484 = vunpack.c.l.b16 %v2440
        %v2485 = vunpack.c.l.b16 %v2441
        %v2486 = vunpack.c.h.b16 %v2441
        %v2487 = vunpack.c.l.b16 %v2442
        %v2488 = vunpack.c.l.b16 %v2443
        %v2489 = vunpack.c.h.b16 %v2443
        %v2490 = vunpack.c.l.b16 %v2444
        %v2491 = vunpack.c.l.b16 %v2445
        %v2492 = vunpack.c.h.b16 %v2445
        %v2493 = vunpack.c.l.b16 %v2446
        %v2494 = vunpack.c.l.b16 %v2447
        %v2495 = vunpack.c.h.b16 %v2447
        %v2496 = vunpack.c.l.b16 %v2448
        %v2497 = vunpack.c.l.b16 %v2449
        %v2498 = vunpack.c.h.b16 %v2449
        %v2499 = vunpack.c.l.b16 %v2450
        %v2500 = vpack.c.b16 %v2479, %v2476
        %v2501 = vpack.c.b16 %v2480, %v2477
        %v2502 = vpack.c.b16 %v2481, %v2478
        %v2503 = vpack.c.b16 %v2485, %v2482
        %v2504 = vpack.c.b16 %v2486, %v2483
        %v2505 = vpack.c.b16 %v2487, %v2484
        %v2506 = vpack.c.b16 %v2491, %v2488
        %v2507 = vpack.c.b16 %v2492, %v2489
        %v2508 = vpack.c.b16 %v2493, %v2490
        %v2509 = vpack.c.b16 %v2497, %v2494
        %v2510 = vpack.c.b16 %v2498, %v2495
        %v2511 = vpack.c.b16 %v2499, %v2496
        %v2525 = vsel %vm606, %v2433, 0
        %2527 = vmatpush.bf16.msra.mxu0 0
        %2528 = vmatpush.bf16.msra.mxu0 0
        %2529 = vmatpush.bf16.msra.mxu0 0
        %2530 = vmatpush.bf16.msra.mxu0 0
        %2531 = vmatpush.bf16.msra.mxu0 %v2509
        %2532 = vmatpush.bf16.msra.mxu0 %v2506
        %2533 = vmatpush.bf16.msra.mxu0 %v2503
        %2534 = vmatpush.bf16.msra.mxu0 %v2500
        %2535 = vmatmul.bf16.gmra.mxu0 %v2525
        %v2536 = vpop.f32.mrf.mxu0
        %v2537 = vadd.f32 %v2454, %v2536
        %v2538 = vpop.f32.mrf.mxu0
        %2539 = vdwg.mxu0
        %2540 = vmatpush.bf16.msra.mxu0 0
        %2541 = vmatpush.bf16.msra.mxu0 0
        %2542 = vmatpush.bf16.msra.mxu0 0
        %2543 = vmatpush.bf16.msra.mxu0 0
        %2544 = vmatpush.bf16.msra.mxu0 %v2510
        %2545 = vmatpush.bf16.msra.mxu0 %v2507
        %2546 = vmatpush.bf16.msra.mxu0 %v2504
        %2547 = vmatpush.bf16.msra.mxu0 %v2501
        %2548 = vmatmul.bf16.gmra.mxu0 %v2525
        %v2549 = vpop.f32.mrf.mxu0
        %v2550 = vadd.f32 %v2455, %v2549
        %v2551 = vpop.f32.mrf.mxu0
        %2552 = vdwg.mxu0
        %2553 = vmatpush.bf16.msra.mxu0 0
        %2554 = vmatpush.bf16.msra.mxu0 0
        %2555 = vmatpush.bf16.msra.mxu0 0
        %2556 = vmatpush.bf16.msra.mxu0 0
        %2557 = vmatpush.bf16.msra.mxu0 %v2511
        %2558 = vmatpush.bf16.msra.mxu0 %v2508
        %2559 = vmatpush.bf16.msra.mxu0 %v2505
        %2560 = vmatpush.bf16.msra.mxu0 %v2502
        %2561 = vmatmul.bf16.gmra.mxu0 %v2525
        %v2562 = vpop.f32.mrf.mxu0
        %v2563 = vadd.f32 %v2456, %v2562
        %v2564 = vpop.f32.mrf.mxu0
        %2565 = vdwg.mxu0
        %v2566 = vmul.f32 %v2537, 0.125
        %v2567 = vpack.c.bf16 %v2566, %v2566
        %v2568 = vpack.c.bf16 %v2550, %v2550
        %v2570 = vsel %vm606, %v2567, 0
        %v2573 = vsel %vm606, %v2568, 0
        %2575 = vmatpush.bf16.xpose.msra.mxu0 0
        %2576 = vmatpush.bf16.xpose.msra.mxu0 0
        %2577 = vmatpush.bf16.xpose.msra.mxu0 0
        %2578 = vmatpush.bf16.xpose.msra.mxu0 0
        %2579 = vmatpush.bf16.xpose.msra.mxu0 0
        %2580 = vmatpush.bf16.xpose.msra.mxu0 0
        %2581 = vmatpush.bf16.xpose.msra.mxu0 0
        %2582 = vmatpush.bf16.xpose.msra.mxu0 %v2573
        %2583 = vmatmul.bf16.gmra.mxu0 %v2570
        %v2584 = vpop.f32.mrf.mxu0
        %v2585 = vadd.f32 0.0, %v2584
        %v2586 = vpop.f32.mrf.mxu0
        %2587 = vdwg.mxu0
        %v2588 = vsel %vm793, %v2585, -inf
        %2589 = vmax.xlane.f32.xlu0 %v2588
        %v2590 = vpop.xlane.xlu0 %2589
        %v2591 = vsub.f32 %v2585, %v2590
        %v2592 = vmul.f32 %v2591, 1.442695
        %v2593 = vpow.pop %v2592
        %v2594 = vsel %vm793, %v2593, 0.0
        %2595 = vadd.xlane.f32.xlu0 %v2594
        %v2596 = vpop.xlane.xlu0 %2595
        %v2597 = vrcp.pop %v2596
        %v2598 = vmul.f32 %v2596, %v2597
        %v2599 = vsub.f32 1.0, %v2598
        %v2600 = vmul.f32 %v2597, %v2599
        %v2601 = vadd.f32 %v2597, %v2600
        %vm2602 = vweird.f32 %v2596
        %vm2603 = vweird.f32 %v2597
        %vm2604 = vmor %vm2602, %vm2603
        %v2605 = vsel %vm2604, %v2597, %v2601
        %v2606 = vand.u32 2147483647, %v2596
        %vm2607 = vcmp.eq.f32.partialorder %v2606, 8.507059e+37
        %v2608 = vand.u32 %v2596, 2147483648
        %v2609 = vor.u32 1.1754944e-38, %v2608
        %v2610 = vsel %vm2607, %v2609, %v2605
        %v2611 = vmul.f32 %v2593, %v2610
        %v2612 = vpack.c.bf16 %v2611, %v2611
        %v2613 = vpack.c.bf16 %v2563, %v2563
        %v2615 = vsel %vm793, %v2612, 0
        %v2618 = vsel %vm823, %v2613, 0
        %2620 = vmatpush.bf16.msra.mxu0 0
        %2621 = vmatpush.bf16.msra.mxu0 0
        %2622 = vmatpush.bf16.msra.mxu0 0
        %2623 = vmatpush.bf16.msra.mxu0 0
        %2624 = vmatpush.bf16.msra.mxu0 0
        %2625 = vmatpush.bf16.msra.mxu0 0
        %2626 = vmatpush.bf16.msra.mxu0 0
        %2627 = vmatpush.bf16.msra.mxu0 %v2618
        %2628 = vmatmul.bf16.gmra.mxu0 %v2615
        %v2629 = vpop.f32.mrf.mxu0
        %v2630 = vadd.f32 0.0, %v2629
        %v2631 = vpop.f32.mrf.mxu0
        %2632 = vdwg.mxu0
        %v2633 = vpack.c.bf16 %v2630, %v2630
        %s2634 = scalar_lea.vmem %s6, 96
        %v2635 = vld [vmem:[%s2634] sm:$0xf]
        %v2636 = vld [vmem:[%s2634 + $0x4] sm:$0xf]
        %v2637 = vld [vmem:[%s2634 + $0x8] sm:$0xf]
        %v2638 = vld [vmem:[%s2634 + $0xc] sm:$0xf]
        %v2639 = vld [vmem:[%s2634 + $0x10] sm:$0xf]
        %v2640 = vld [vmem:[%s2634 + $0x14] sm:$0xf]
        %v2641 = vld [vmem:[%s2634 + $0x18] sm:$0xf]
        %v2642 = vld [vmem:[%s2634 + $0x1c] sm:$0xf]
        %v2651 = vunpack.c.l.b16 %v2635
        %v2652 = vunpack.c.l.b16 %v2636
        %v2653 = vunpack.c.l.b16 %v2637
        %v2654 = vunpack.c.l.b16 %v2638
        %v2655 = vunpack.c.l.b16 %v2639
        %v2656 = vunpack.c.l.b16 %v2640
        %v2657 = vunpack.c.l.b16 %v2641
        %v2658 = vunpack.c.l.b16 %v2642
        %v2659 = vpack.c.b16 %v2652, %v2651
        %v2660 = vpack.c.b16 %v2654, %v2653
        %v2661 = vpack.c.b16 %v2656, %v2655
        %v2662 = vpack.c.b16 %v2658, %v2657
        %v2668 = vsel %vm606, %v2633, 0
        %2670 = vmatpush.bf16.msra.mxu0 0
        %2671 = vmatpush.bf16.msra.mxu0 0
        %2672 = vmatpush.bf16.msra.mxu0 0
        %2673 = vmatpush.bf16.msra.mxu0 0
        %2674 = vmatpush.bf16.msra.mxu0 %v2662
        %2675 = vmatpush.bf16.msra.mxu0 %v2661
        %2676 = vmatpush.bf16.msra.mxu0 %v2660
        %2677 = vmatpush.bf16.msra.mxu0 %v2659
        %2678 = vmatmul.bf16.gmra.mxu0 %v2668
        %v2679 = vpop.f32.mrf.mxu0
        %v2680 = vadd.f32 0.0, %v2679
        %v2681 = vpop.f32.mrf.mxu0
        %2682 = vdwg.mxu0
        %v2683 = vadd.f32 %v2404, %v2680
        %v2684 = vld [vmem:[#allocation11 + $0x3] sm:$0x1]
        %v2685 = vperm.slane %v2684, 0
        %v2686 = vadd.f32 %v2683, %v2685
        %v2687 = vld [vmem:[#allocation13 + $0x3] sm:$0x1]
        %v2688 = vld [vmem:[#allocation14 + $0x3] sm:$0x1]
        %v2689 = vsel %vm606, %v2686, 0.0
        %2690 = vadd.xlane.f32.xlu0 %v2689
        %v2691 = vpop.xlane.xlu0 %2690
        %v2692 = vmul.f32 %v2691, %v616
        %v2693 = vsub.f32 %v2686, %v2692
        %v2694 = vmul.f32 %v2693, %v2693
        %v2695 = vsel %vm606, %v2694, 0.0
        %2696 = vadd.xlane.f32.xlu0 %v2695
        %v2697 = vpop.xlane.xlu0 %2696
        %v2698 = vmul.f32 %v2697, %v616
        %v2699 = vadd.f32 %v2698, 1e-12
        %v2700 = vrsqrt.pop %v2699
        %v2701 = vmul.f32 %v2700, %v2699
        %v2702 = vmul.f32 %v2701, %v2700
        %v2703 = vmul.f32 0.5, %v2702
        %v2704 = vsub.f32 1.5, %v2703
        %v2705 = vmul.f32 %v2700, %v2704
        %vm2706 = vweird.f32 %v2699
        %vm2707 = vweird.f32 %v2700
        %vm2708 = vmor %vm2706, %vm2707
        %v2709 = vsel %vm2708, %v2700, %v2705
        %v2710 = vmul.f32 %v2693, %v2709
        %v2711 = vperm.slane %v2687, 0
        %v2712 = vmul.f32 %v2711, %v2710
        %v2713 = vperm.slane %v2688, 0
        %v2714 = vadd.f32 %v2712, %v2713
        %v2715 = vpack.c.bf16 %v2714, %v2714
        %s2716 = scalar_lea.vmem %s10, 192
        %v2717 = vld [vmem:[%s2716] sm:$0xff]
        %v2718 = vld [vmem:[%s2716 + $0x8] sm:$0xff]
        %v2719 = vld [vmem:[%s2716 + $0x10] sm:$0xff]
        %v2720 = vld [vmem:[%s2716 + $0x18] sm:$0xff]
        %v2721 = vld [vmem:[%s2716 + $0x20] sm:$0xff]
        %v2722 = vld [vmem:[%s2716 + $0x28] sm:$0xff]
        %v2723 = vld [vmem:[%s2716 + $0x30] sm:$0xff]
        %v2724 = vld [vmem:[%s2716 + $0x38] sm:$0xff]
        %s2725 = scalar_lea.vmem [#allocation16], 3
        %v2726 = vld [vmem:[%s2725] ss:$8 sm:$0x3]
        %v2728 = vperm.slane %v2726, 0
        %v2729 = vperm.slane %v2726, 1
        %v2740 = vunpack.c.l.b16 %v2717
        %v2741 = vunpack.c.h.b16 %v2717
        %v2742 = vunpack.c.l.b16 %v2718
        %v2743 = vunpack.c.h.b16 %v2718
        %v2744 = vunpack.c.l.b16 %v2719
        %v2745 = vunpack.c.h.b16 %v2719
        %v2746 = vunpack.c.l.b16 %v2720
        %v2747 = vunpack.c.h.b16 %v2720
        %v2748 = vunpack.c.l.b16 %v2721
        %v2749 = vunpack.c.h.b16 %v2721
        %v2750 = vunpack.c.l.b16 %v2722
        %v2751 = vunpack.c.h.b16 %v2722
        %v2752 = vunpack.c.l.b16 %v2723
        %v2753 = vunpack.c.h.b16 %v2723
        %v2754 = vunpack.c.l.b16 %v2724
        %v2755 = vunpack.c.h.b16 %v2724
        %v2756 = vpack.c.b16 %v2742, %v2740
        %v2757 = vpack.c.b16 %v2743, %v2741
        %v2758 = vpack.c.b16 %v2746, %v2744
        %v2759 = vpack.c.b16 %v2747, %v2745
        %v2760 = vpack.c.b16 %v2750, %v2748
        %v2761 = vpack.c.b16 %v2751, %v2749
        %v2762 = vpack.c.b16 %v2754, %v2752
        %v2763 = vpack.c.b16 %v2755, %v2753
        %v2773 = vsel %vm606, %v2715, 0
        %2775 = vmatpush.bf16.msra.mxu0 0
        %2776 = vmatpush.bf16.msra.mxu0 0
        %2777 = vmatpush.bf16.msra.mxu0 0
        %2778 = vmatpush.bf16.msra.mxu0 0
        %2779 = vmatpush.bf16.msra.mxu0 %v2762
        %2780 = vmatpush.bf16.msra.mxu0 %v2760
        %2781 = vmatpush.bf16.msra.mxu0 %v2758
        %2782 = vmatpush.bf16.msra.mxu0 %v2756
        %2783 = vmatmul.bf16.gmra.mxu0 %v2773
        %v2784 = vpop.f32.mrf.mxu0
        %v2785 = vadd.f32 %v2728, %v2784
        %v2786 = vpop.f32.mrf.mxu0
        %2787 = vdwg.mxu0
        %2788 = vmatpush.bf16.msra.mxu0 0
        %2789 = vmatpush.bf16.msra.mxu0 0
        %2790 = vmatpush.bf16.msra.mxu0 0
        %2791 = vmatpush.bf16.msra.mxu0 0
        %2792 = vmatpush.bf16.msra.mxu0 %v2763
        %2793 = vmatpush.bf16.msra.mxu0 %v2761
        %2794 = vmatpush.bf16.msra.mxu0 %v2759
        %2795 = vmatpush.bf16.msra.mxu0 %v2757
        %2796 = vmatmul.bf16.gmra.mxu0 %v2773
        %v2797 = vpop.f32.mrf.mxu0
        %v2798 = vadd.f32 %v2729, %v2797
        %v2799 = vpop.f32.mrf.mxu0
        %2800 = vdwg.mxu0
        %v2801 = vmul.f32 %v2785, 1.702
        %v2802 = vmul.f32 %v2798, 1.702
        %v2803 = vxor.u32 %v2801, 2147483648
        %v2804 = vxor.u32 %v2802, 2147483648
        %v2805 = vmul.f32 %v2803, 1.442695
        %v2806 = vpow.pop %v2805
        %v2807 = vmul.f32 %v2804, 1.442695
        %v2808 = vpow.pop %v2807
        %v2809 = vadd.f32 %v2806, 1.0
        %v2810 = vadd.f32 %v2808, 1.0
        %v2811 = vrcp.pop %v2809
        %v2812 = vmul.f32 %v2809, %v2811
        %v2813 = vsub.f32 1.0, %v2812
        %v2814 = vmul.f32 %v2811, %v2813
        %v2815 = vadd.f32 %v2811, %v2814
        %vm2816 = vweird.f32 %v2809
        %vm2817 = vweird.f32 %v2811
        %vm2818 = vmor %vm2816, %vm2817
        %v2819 = vsel %vm2818, %v2811, %v2815
        %v2820 = vand.u32 2147483647, %v2809
        %vm2821 = vcmp.eq.f32.partialorder %v2820, 8.507059e+37
        %v2822 = vand.u32 %v2809, 2147483648
        %v2823 = vor.u32 1.1754944e-38, %v2822
        %v2824 = vsel %vm2821, %v2823, %v2819
        %v2825 = vmul.f32 1.0, %v2824
        %v2826 = vrcp.pop %v2810
        %v2827 = vmul.f32 %v2810, %v2826
        %v2828 = vsub.f32 1.0, %v2827
        %v2829 = vmul.f32 %v2826, %v2828
        %v2830 = vadd.f32 %v2826, %v2829
        %vm2831 = vweird.f32 %v2810
        %vm2832 = vweird.f32 %v2826
        %vm2833 = vmor %vm2831, %vm2832
        %v2834 = vsel %vm2833, %v2826, %v2830
        %v2835 = vand.u32 2147483647, %v2810
        %vm2836 = vcmp.eq.f32.partialorder %v2835, 8.507059e+37
        %v2837 = vand.u32 %v2810, 2147483648
        %v2838 = vor.u32 1.1754944e-38, %v2837
        %v2839 = vsel %vm2836, %v2838, %v2834
        %v2840 = vmul.f32 1.0, %v2839
        %v2841 = vmul.f32 %v2785, %v2825
        %v2842 = vmul.f32 %v2798, %v2840
        %v2843 = vpack.c.bf16 %v2841, %v2841
        %v2844 = vpack.c.bf16 %v2842, %v2842
        %s2845 = scalar_lea.vmem %s12, 384
        %v2846 = vld [vmem:[%s2845] sm:$0xf]
        %v2847 = vld [vmem:[%s2845 + $0x4] sm:$0xf]
        %v2848 = vld [vmem:[%s2845 + $0x8] sm:$0xf]
        %v2849 = vld [vmem:[%s2845 + $0xc] sm:$0xf]
        %v2850 = vld [vmem:[%s2845 + $0x10] sm:$0xf]
        %v2851 = vld [vmem:[%s2845 + $0x14] sm:$0xf]
        %v2852 = vld [vmem:[%s2845 + $0x18] sm:$0xf]
        %v2853 = vld [vmem:[%s2845 + $0x1c] sm:$0xf]
        %v2854 = vld [vmem:[%s2845 + $0x20] sm:$0xf]
        %v2855 = vld [vmem:[%s2845 + $0x24] sm:$0xf]
        %v2856 = vld [vmem:[%s2845 + $0x28] sm:$0xf]
        %v2857 = vld [vmem:[%s2845 + $0x2c] sm:$0xf]
        %v2858 = vld [vmem:[%s2845 + $0x30] sm:$0xf]
        %v2859 = vld [vmem:[%s2845 + $0x34] sm:$0xf]
        %v2860 = vld [vmem:[%s2845 + $0x38] sm:$0xf]
        %v2861 = vld [vmem:[%s2845 + $0x3c] sm:$0xf]
        %v2862 = vld [vmem:[%s2845 + $0x40] sm:$0xf]
        %v2863 = vld [vmem:[%s2845 + $0x44] sm:$0xf]
        %v2864 = vld [vmem:[%s2845 + $0x48] sm:$0xf]
        %v2865 = vld [vmem:[%s2845 + $0x4c] sm:$0xf]
        %v2866 = vld [vmem:[%s2845 + $0x50] sm:$0xf]
        %v2867 = vld [vmem:[%s2845 + $0x54] sm:$0xf]
        %v2868 = vld [vmem:[%s2845 + $0x58] sm:$0xf]
        %v2869 = vld [vmem:[%s2845 + $0x5c] sm:$0xf]
        %v2870 = vld [vmem:[%s2845 + $0x60] sm:$0xf]
        %v2871 = vld [vmem:[%s2845 + $0x64] sm:$0xf]
        %v2872 = vld [vmem:[%s2845 + $0x68] sm:$0xf]
        %v2873 = vld [vmem:[%s2845 + $0x6c] sm:$0xf]
        %v2874 = vld [vmem:[%s2845 + $0x70] sm:$0xf]
        %v2875 = vld [vmem:[%s2845 + $0x74] sm:$0xf]
        %v2876 = vld [vmem:[%s2845 + $0x78] sm:$0xf]
        %v2877 = vld [vmem:[%s2845 + $0x7c] sm:$0xf]
        %v2910 = vunpack.c.l.b16 %v2846
        %v2911 = vunpack.c.l.b16 %v2847
        %v2912 = vunpack.c.l.b16 %v2848
        %v2913 = vunpack.c.l.b16 %v2849
        %v2914 = vunpack.c.l.b16 %v2850
        %v2915 = vunpack.c.l.b16 %v2851
        %v2916 = vunpack.c.l.b16 %v2852
        %v2917 = vunpack.c.l.b16 %v2853
        %v2918 = vunpack.c.l.b16 %v2854
        %v2919 = vunpack.c.l.b16 %v2855
        %v2920 = vunpack.c.l.b16 %v2856
        %v2921 = vunpack.c.l.b16 %v2857
        %v2922 = vunpack.c.l.b16 %v2858
        %v2923 = vunpack.c.l.b16 %v2859
        %v2924 = vunpack.c.l.b16 %v2860
        %v2925 = vunpack.c.l.b16 %v2861
        %v2926 = vunpack.c.l.b16 %v2862
        %v2927 = vunpack.c.l.b16 %v2863
        %v2928 = vunpack.c.l.b16 %v2864
        %v2929 = vunpack.c.l.b16 %v2865
        %v2930 = vunpack.c.l.b16 %v2866
        %v2931 = vunpack.c.l.b16 %v2867
        %v2932 = vunpack.c.l.b16 %v2868
        %v2933 = vunpack.c.l.b16 %v2869
        %v2934 = vunpack.c.l.b16 %v2870
        %v2935 = vunpack.c.l.b16 %v2871
        %v2936 = vunpack.c.l.b16 %v2872
        %v2937 = vunpack.c.l.b16 %v2873
        %v2938 = vunpack.c.l.b16 %v2874
        %v2939 = vunpack.c.l.b16 %v2875
        %v2940 = vunpack.c.l.b16 %v2876
        %v2941 = vunpack.c.l.b16 %v2877
        %v2942 = vpack.c.b16 %v2911, %v2910
        %v2943 = vpack.c.b16 %v2913, %v2912
        %v2944 = vpack.c.b16 %v2915, %v2914
        %v2945 = vpack.c.b16 %v2917, %v2916
        %v2946 = vpack.c.b16 %v2919, %v2918
        %v2947 = vpack.c.b16 %v2921, %v2920
        %v2948 = vpack.c.b16 %v2923, %v2922
        %v2949 = vpack.c.b16 %v2925, %v2924
        %v2950 = vpack.c.b16 %v2927, %v2926
        %v2951 = vpack.c.b16 %v2929, %v2928
        %v2952 = vpack.c.b16 %v2931, %v2930
        %v2953 = vpack.c.b16 %v2933, %v2932
        %v2954 = vpack.c.b16 %v2935, %v2934
        %v2955 = vpack.c.b16 %v2937, %v2936
        %v2956 = vpack.c.b16 %v2939, %v2938
        %v2957 = vpack.c.b16 %v2941, %v2940
        %2974 = vmatpush.bf16.msra.mxu0 %v2949
        %2975 = vmatpush.bf16.msra.mxu0 %v2948
        %2976 = vmatpush.bf16.msra.mxu0 %v2947
        %2977 = vmatpush.bf16.msra.mxu0 %v2946
        %2978 = vmatpush.bf16.msra.mxu0 %v2945
        %2979 = vmatpush.bf16.msra.mxu0 %v2944
        %2980 = vmatpush.bf16.msra.mxu0 %v2943
        %2981 = vmatpush.bf16.msra.mxu0 %v2942
        %2982 = vmatmul.bf16.gmra.mxu0 %v2843
        %v2983 = vpop.f32.mrf.mxu0
        %v2984 = vadd.f32 0.0, %v2983
        %v2985 = vpop.f32.mrf.mxu0
        %2986 = vdwg.mxu0
        %2987 = vmatpush.bf16.msra.mxu0 %v2957
        %2988 = vmatpush.bf16.msra.mxu0 %v2956
        %2989 = vmatpush.bf16.msra.mxu0 %v2955
        %2990 = vmatpush.bf16.msra.mxu0 %v2954
        %2991 = vmatpush.bf16.msra.mxu0 %v2953
        %2992 = vmatpush.bf16.msra.mxu0 %v2952
        %2993 = vmatpush.bf16.msra.mxu0 %v2951
        %2994 = vmatpush.bf16.msra.mxu0 %v2950
        %2995 = vmatmul.bf16.gmra.mxu0 %v2844
        %v2996 = vpop.f32.mrf.mxu0
        %v2997 = vadd.f32 %v2984, %v2996
        %v2998 = vpop.f32.mrf.mxu0
        %2999 = vdwg.mxu0
        %v3000 = vadd.f32 %v2686, %v2997
        %v3001 = vld [vmem:[%s13 + $0x3] sm:$0x1]
        %v3002 = vperm.slane %v3001, 0
        %v3003 = vadd.f32 %v3000, %v3002
        %v3004 = vld [vmem:[#allocation7 + $0x4] sm:$0x1]
        %v3005 = vld [vmem:[#allocation8 + $0x4] sm:$0x1]
        %v3006 = vsel %vm606, %v3003, 0.0
        %3007 = vadd.xlane.f32.xlu0 %v3006
        %v3008 = vpop.xlane.xlu0 %3007
        %v3009 = vmul.f32 %v3008, %v616
        %v3010 = vsub.f32 %v3003, %v3009
        %v3011 = vmul.f32 %v3010, %v3010
        %v3012 = vsel %vm606, %v3011, 0.0
        %3013 = vadd.xlane.f32.xlu0 %v3012
        %v3014 = vpop.xlane.xlu0 %3013
        %v3015 = vmul.f32 %v3014, %v616
        %v3016 = vadd.f32 %v3015, 1e-12
        %v3017 = vrsqrt.pop %v3016
        %v3018 = vmul.f32 %v3017, %v3016
        %v3019 = vmul.f32 %v3018, %v3017
        %v3020 = vmul.f32 0.5, %v3019
        %v3021 = vsub.f32 1.5, %v3020
        %v3022 = vmul.f32 %v3017, %v3021
        %vm3023 = vweird.f32 %v3016
        %vm3024 = vweird.f32 %v3017
        %vm3025 = vmor %vm3023, %vm3024
        %v3026 = vsel %vm3025, %v3017, %v3022
        %v3027 = vmul.f32 %v3010, %v3026
        %v3028 = vperm.slane %v3004, 0
        %v3029 = vmul.f32 %v3028, %v3027
        %v3030 = vperm.slane %v3005, 0
        %v3031 = vadd.f32 %v3029, %v3030
        %v3032 = vpack.c.bf16 %v3031, %v3031
        %s3033 = scalar_lea.vmem %s4, 384
        %v3034 = vld [vmem:[%s3033] sm:$0xff]
        %v3035 = vld [vmem:[%s3033 + $0x8] sm:$0xf]
        %v3036 = vld [vmem:[%s3033 + $0xc] sm:$0xff]
        %v3037 = vld [vmem:[%s3033 + $0x14] sm:$0xf]
        %v3038 = vld [vmem:[%s3033 + $0x18] sm:$0xff]
        %v3039 = vld [vmem:[%s3033 + $0x20] sm:$0xf]
        %v3040 = vld [vmem:[%s3033 + $0x24] sm:$0xff]
        %v3041 = vld [vmem:[%s3033 + $0x2c] sm:$0xf]
        %v3042 = vld [vmem:[%s3033 + $0x30] sm:$0xff]
        %v3043 = vld [vmem:[%s3033 + $0x38] sm:$0xf]
        %v3044 = vld [vmem:[%s3033 + $0x3c] sm:$0xff]
        %v3045 = vld [vmem:[%s3033 + $0x44] sm:$0xf]
        %v3046 = vld [vmem:[%s3033 + $0x48] sm:$0xff]
        %v3047 = vld [vmem:[%s3033 + $0x50] sm:$0xf]
        %v3048 = vld [vmem:[%s3033 + $0x54] sm:$0xff]
        %v3049 = vld [vmem:[%s3033 + $0x5c] sm:$0xf]
        %s3050 = scalar_lea.vmem [#allocation10], 4
        %v3051 = vld [vmem:[%s3050] ss:$8 sm:$0x7]
        %v3053 = vperm.slane %v3051, 0
        %v3054 = vperm.slane %v3051, 1
        %v3055 = vperm.slane %v3051, 2
        %v3075 = vunpack.c.l.b16 %v3034
        %v3076 = vunpack.c.h.b16 %v3034
        %v3077 = vunpack.c.l.b16 %v3035
        %v3078 = vunpack.c.l.b16 %v3036
        %v3079 = vunpack.c.h.b16 %v3036
        %v3080 = vunpack.c.l.b16 %v3037
        %v3081 = vunpack.c.l.b16 %v3038
        %v3082 = vunpack.c.h.b16 %v3038
        %v3083 = vunpack.c.l.b16 %v3039
        %v3084 = vunpack.c.l.b16 %v3040
        %v3085 = vunpack.c.h.b16 %v3040
        %v3086 = vunpack.c.l.b16 %v3041
        %v3087 = vunpack.c.l.b16 %v3042
        %v3088 = vunpack.c.h.b16 %v3042
        %v3089 = vunpack.c.l.b16 %v3043
        %v3090 = vunpack.c.l.b16 %v3044
        %v3091 = vunpack.c.h.b16 %v3044
        %v3092 = vunpack.c.l.b16 %v3045
        %v3093 = vunpack.c.l.b16 %v3046
        %v3094 = vunpack.c.h.b16 %v3046
        %v3095 = vunpack.c.l.b16 %v3047
        %v3096 = vunpack.c.l.b16 %v3048
        %v3097 = vunpack.c.h.b16 %v3048
        %v3098 = vunpack.c.l.b16 %v3049
        %v3099 = vpack.c.b16 %v3078, %v3075
        %v3100 = vpack.c.b16 %v3079, %v3076
        %v3101 = vpack.c.b16 %v3080, %v3077
        %v3102 = vpack.c.b16 %v3084, %v3081
        %v3103 = vpack.c.b16 %v3085, %v3082
        %v3104 = vpack.c.b16 %v3086, %v3083
        %v3105 = vpack.c.b16 %v3090, %v3087
        %v3106 = vpack.c.b16 %v3091, %v3088
        %v3107 = vpack.c.b16 %v3092, %v3089
        %v3108 = vpack.c.b16 %v3096, %v3093
        %v3109 = vpack.c.b16 %v3097, %v3094
        %v3110 = vpack.c.b16 %v3098, %v3095
        %v3124 = vsel %vm606, %v3032, 0
        %3126 = vmatpush.bf16.msra.mxu0 0
        %3127 = vmatpush.bf16.msra.mxu0 0
        %3128 = vmatpush.bf16.msra.mxu0 0
        %3129 = vmatpush.bf16.msra.mxu0 0
        %3130 = vmatpush.bf16.msra.mxu0 %v3108
        %3131 = vmatpush.bf16.msra.mxu0 %v3105
        %3132 = vmatpush.bf16.msra.mxu0 %v3102
        %3133 = vmatpush.bf16.msra.mxu0 %v3099
        %3134 = vmatmul.bf16.gmra.mxu0 %v3124
        %v3135 = vpop.f32.mrf.mxu0
        %v3136 = vadd.f32 %v3053, %v3135
        %v3137 = vpop.f32.mrf.mxu0
        %3138 = vdwg.mxu0
        %3139 = vmatpush.bf16.msra.mxu0 0
        %3140 = vmatpush.bf16.msra.mxu0 0
        %3141 = vmatpush.bf16.msra.mxu0 0
        %3142 = vmatpush.bf16.msra.mxu0 0
        %3143 = vmatpush.bf16.msra.mxu0 %v3109
        %3144 = vmatpush.bf16.msra.mxu0 %v3106
        %3145 = vmatpush.bf16.msra.mxu0 %v3103
        %3146 = vmatpush.bf16.msra.mxu0 %v3100
        %3147 = vmatmul.bf16.gmra.mxu0 %v3124
        %v3148 = vpop.f32.mrf.mxu0
        %v3149 = vadd.f32 %v3054, %v3148
        %v3150 = vpop.f32.mrf.mxu0
        %3151 = vdwg.mxu0
        %3152 = vmatpush.bf16.msra.mxu0 0
        %3153 = vmatpush.bf16.msra.mxu0 0
        %3154 = vmatpush.bf16.msra.mxu0 0
        %3155 = vmatpush.bf16.msra.mxu0 0
        %3156 = vmatpush.bf16.msra.mxu0 %v3110
        %3157 = vmatpush.bf16.msra.mxu0 %v3107
        %3158 = vmatpush.bf16.msra.mxu0 %v3104
        %3159 = vmatpush.bf16.msra.mxu0 %v3101
        %3160 = vmatmul.bf16.gmra.mxu0 %v3124
        %v3161 = vpop.f32.mrf.mxu0
        %v3162 = vadd.f32 %v3055, %v3161
        %v3163 = vpop.f32.mrf.mxu0
        %3164 = vdwg.mxu0
        %v3165 = vmul.f32 %v3136, 0.125
        %v3166 = vpack.c.bf16 %v3165, %v3165
        %v3167 = vpack.c.bf16 %v3149, %v3149
        %v3169 = vsel %vm606, %v3166, 0
        %v3172 = vsel %vm606, %v3167, 0
        %3174 = vmatpush.bf16.xpose.msra.mxu0 0
        %3175 = vmatpush.bf16.xpose.msra.mxu0 0
        %3176 = vmatpush.bf16.xpose.msra.mxu0 0
        %3177 = vmatpush.bf16.xpose.msra.mxu0 0
        %3178 = vmatpush.bf16.xpose.msra.mxu0 0
        %3179 = vmatpush.bf16.xpose.msra.mxu0 0
        %3180 = vmatpush.bf16.xpose.msra.mxu0 0
        %3181 = vmatpush.bf16.xpose.msra.mxu0 %v3172
        %3182 = vmatmul.bf16.gmra.mxu0 %v3169
        %v3183 = vpop.f32.mrf.mxu0
        %v3184 = vadd.f32 0.0, %v3183
        %v3185 = vpop.f32.mrf.mxu0
        %3186 = vdwg.mxu0
        %v3187 = vsel %vm793, %v3184, -inf
        %3188 = vmax.xlane.f32.xlu0 %v3187
        %v3189 = vpop.xlane.xlu0 %3188
        %v3190 = vsub.f32 %v3184, %v3189
        %v3191 = vmul.f32 %v3190, 1.442695
        %v3192 = vpow.pop %v3191
        %v3193 = vsel %vm793, %v3192, 0.0
        %3194 = vadd.xlane.f32.xlu0 %v3193
        %v3195 = vpop.xlane.xlu0 %3194
        %v3196 = vrcp.pop %v3195
        %v3197 = vmul.f32 %v3195, %v3196
        %v3198 = vsub.f32 1.0, %v3197
        %v3199 = vmul.f32 %v3196, %v3198
        %v3200 = vadd.f32 %v3196, %v3199
        %vm3201 = vweird.f32 %v3195
        %vm3202 = vweird.f32 %v3196
        %vm3203 = vmor %vm3201, %vm3202
        %v3204 = vsel %vm3203, %v3196, %v3200
        %v3205 = vand.u32 2147483647, %v3195
        %vm3206 = vcmp.eq.f32.partialorder %v3205, 8.507059e+37
        %v3207 = vand.u32 %v3195, 2147483648
        %v3208 = vor.u32 1.1754944e-38, %v3207
        %v3209 = vsel %vm3206, %v3208, %v3204
        %v3210 = vmul.f32 %v3192, %v3209
        %v3211 = vpack.c.bf16 %v3210, %v3210
        %v3212 = vpack.c.bf16 %v3162, %v3162
        %v3214 = vsel %vm793, %v3211, 0
        %v3217 = vsel %vm823, %v3212, 0
        %3219 = vmatpush.bf16.msra.mxu0 0
        %3220 = vmatpush.bf16.msra.mxu0 0
        %3221 = vmatpush.bf16.msra.mxu0 0
        %3222 = vmatpush.bf16.msra.mxu0 0
        %3223 = vmatpush.bf16.msra.mxu0 0
        %3224 = vmatpush.bf16.msra.mxu0 0
        %3225 = vmatpush.bf16.msra.mxu0 0
        %3226 = vmatpush.bf16.msra.mxu0 %v3217
        %3227 = vmatmul.bf16.gmra.mxu0 %v3214
        %v3228 = vpop.f32.mrf.mxu0
        %v3229 = vadd.f32 0.0, %v3228
        %v3230 = vpop.f32.mrf.mxu0
        %3231 = vdwg.mxu0
        %v3232 = vpack.c.bf16 %v3229, %v3229
        %s3233 = scalar_lea.vmem %s6, 128
        %v3234 = vld [vmem:[%s3233] sm:$0xf]
        %v3235 = vld [vmem:[%s3233 + $0x4] sm:$0xf]
        %v3236 = vld [vmem:[%s3233 + $0x8] sm:$0xf]
        %v3237 = vld [vmem:[%s3233 + $0xc] sm:$0xf]
        %v3238 = vld [vmem:[%s3233 + $0x10] sm:$0xf]
        %v3239 = vld [vmem:[%s3233 + $0x14] sm:$0xf]
        %v3240 = vld [vmem:[%s3233 + $0x18] sm:$0xf]
        %v3241 = vld [vmem:[%s3233 + $0x1c] sm:$0xf]
        %v3250 = vunpack.c.l.b16 %v3234
        %v3251 = vunpack.c.l.b16 %v3235
        %v3252 = vunpack.c.l.b16 %v3236
        %v3253 = vunpack.c.l.b16 %v3237
        %v3254 = vunpack.c.l.b16 %v3238
        %v3255 = vunpack.c.l.b16 %v3239
        %v3256 = vunpack.c.l.b16 %v3240
        %v3257 = vunpack.c.l.b16 %v3241
        %v3258 = vpack.c.b16 %v3251, %v3250
        %v3259 = vpack.c.b16 %v3253, %v3252
        %v3260 = vpack.c.b16 %v3255, %v3254
        %v3261 = vpack.c.b16 %v3257, %v3256
        %v3267 = vsel %vm606, %v3232, 0
        %3269 = vmatpush.bf16.msra.mxu0 0
        %3270 = vmatpush.bf16.msra.mxu0 0
        %3271 = vmatpush.bf16.msra.mxu0 0
        %3272 = vmatpush.bf16.msra.mxu0 0
        %3273 = vmatpush.bf16.msra.mxu0 %v3261
        %3274 = vmatpush.bf16.msra.mxu0 %v3260
        %3275 = vmatpush.bf16.msra.mxu0 %v3259
        %3276 = vmatpush.bf16.msra.mxu0 %v3258
        %3277 = vmatmul.bf16.gmra.mxu0 %v3267
        %v3278 = vpop.f32.mrf.mxu0
        %v3279 = vadd.f32 0.0, %v3278
        %v3280 = vpop.f32.mrf.mxu0
        %3281 = vdwg.mxu0
        %v3282 = vadd.f32 %v3003, %v3279
        %v3283 = vld [vmem:[#allocation11 + $0x4] sm:$0x1]
        %v3284 = vperm.slane %v3283, 0
        %v3285 = vadd.f32 %v3282, %v3284
        %v3286 = vld [vmem:[#allocation13 + $0x4] sm:$0x1]
        %v3287 = vld [vmem:[#allocation14 + $0x4] sm:$0x1]
        %v3288 = vsel %vm606, %v3285, 0.0
        %3289 = vadd.xlane.f32.xlu0 %v3288
        %v3290 = vpop.xlane.xlu0 %3289
        %v3291 = vmul.f32 %v3290, %v616
        %v3292 = vsub.f32 %v3285, %v3291
        %v3293 = vmul.f32 %v3292, %v3292
        %v3294 = vsel %vm606, %v3293, 0.0
        %3295 = vadd.xlane.f32.xlu0 %v3294
        %v3296 = vpop.xlane.xlu0 %3295
        %v3297 = vmul.f32 %v3296, %v616
        %v3298 = vadd.f32 %v3297, 1e-12
        %v3299 = vrsqrt.pop %v3298
        %v3300 = vmul.f32 %v3299, %v3298
        %v3301 = vmul.f32 %v3300, %v3299
        %v3302 = vmul.f32 0.5, %v3301
        %v3303 = vsub.f32 1.5, %v3302
        %v3304 = vmul.f32 %v3299, %v3303
        %vm3305 = vweird.f32 %v3298
        %vm3306 = vweird.f32 %v3299
        %vm3307 = vmor %vm3305, %vm3306
        %v3308 = vsel %vm3307, %v3299, %v3304
        %v3309 = vmul.f32 %v3292, %v3308
        %v3310 = vperm.slane %v3286, 0
        %v3311 = vmul.f32 %v3310, %v3309
        %v3312 = vperm.slane %v3287, 0
        %v3313 = vadd.f32 %v3311, %v3312
        %v3314 = vpack.c.bf16 %v3313, %v3313
        %s3315 = scalar_lea.vmem %s10, 256
        %v3316 = vld [vmem:[%s3315] sm:$0xff]
        %v3317 = vld [vmem:[%s3315 + $0x8] sm:$0xff]
        %v3318 = vld [vmem:[%s3315 + $0x10] sm:$0xff]
        %v3319 = vld [vmem:[%s3315 + $0x18] sm:$0xff]
        %v3320 = vld [vmem:[%s3315 + $0x20] sm:$0xff]
        %v3321 = vld [vmem:[%s3315 + $0x28] sm:$0xff]
        %v3322 = vld [vmem:[%s3315 + $0x30] sm:$0xff]
        %v3323 = vld [vmem:[%s3315 + $0x38] sm:$0xff]
        %s3324 = scalar_lea.vmem [#allocation16], 4
        %v3325 = vld [vmem:[%s3324] ss:$8 sm:$0x3]
        %v3327 = vperm.slane %v3325, 0
        %v3328 = vperm.slane %v3325, 1
        %v3339 = vunpack.c.l.b16 %v3316
        %v3340 = vunpack.c.h.b16 %v3316
        %v3341 = vunpack.c.l.b16 %v3317
        %v3342 = vunpack.c.h.b16 %v3317
        %v3343 = vunpack.c.l.b16 %v3318
        %v3344 = vunpack.c.h.b16 %v3318
        %v3345 = vunpack.c.l.b16 %v3319
        %v3346 = vunpack.c.h.b16 %v3319
        %v3347 = vunpack.c.l.b16 %v3320
        %v3348 = vunpack.c.h.b16 %v3320
        %v3349 = vunpack.c.l.b16 %v3321
        %v3350 = vunpack.c.h.b16 %v3321
        %v3351 = vunpack.c.l.b16 %v3322
        %v3352 = vunpack.c.h.b16 %v3322
        %v3353 = vunpack.c.l.b16 %v3323
        %v3354 = vunpack.c.h.b16 %v3323
        %v3355 = vpack.c.b16 %v3341, %v3339
        %v3356 = vpack.c.b16 %v3342, %v3340
        %v3357 = vpack.c.b16 %v3345, %v3343
        %v3358 = vpack.c.b16 %v3346, %v3344
        %v3359 = vpack.c.b16 %v3349, %v3347
        %v3360 = vpack.c.b16 %v3350, %v3348
        %v3361 = vpack.c.b16 %v3353, %v3351
        %v3362 = vpack.c.b16 %v3354, %v3352
        %v3372 = vsel %vm606, %v3314, 0
        %3374 = vmatpush.bf16.msra.mxu0 0
        %3375 = vmatpush.bf16.msra.mxu0 0
        %3376 = vmatpush.bf16.msra.mxu0 0
        %3377 = vmatpush.bf16.msra.mxu0 0
        %3378 = vmatpush.bf16.msra.mxu0 %v3361
        %3379 = vmatpush.bf16.msra.mxu0 %v3359
        %3380 = vmatpush.bf16.msra.mxu0 %v3357
        %3381 = vmatpush.bf16.msra.mxu0 %v3355
        %3382 = vmatmul.bf16.gmra.mxu0 %v3372
        %v3383 = vpop.f32.mrf.mxu0
        %v3384 = vadd.f32 %v3327, %v3383
        %v3385 = vpop.f32.mrf.mxu0
        %3386 = vdwg.mxu0
        %3387 = vmatpush.bf16.msra.mxu0 0
        %3388 = vmatpush.bf16.msra.mxu0 0
        %3389 = vmatpush.bf16.msra.mxu0 0
        %3390 = vmatpush.bf16.msra.mxu0 0
        %3391 = vmatpush.bf16.msra.mxu0 %v3362
        %3392 = vmatpush.bf16.msra.mxu0 %v3360
        %3393 = vmatpush.bf16.msra.mxu0 %v3358
        %3394 = vmatpush.bf16.msra.mxu0 %v3356
        %3395 = vmatmul.bf16.gmra.mxu0 %v3372
        %v3396 = vpop.f32.mrf.mxu0
        %v3397 = vadd.f32 %v3328, %v3396
        %v3398 = vpop.f32.mrf.mxu0
        %3399 = vdwg.mxu0
        %v3400 = vmul.f32 %v3384, 1.702
        %v3401 = vmul.f32 %v3397, 1.702
        %v3402 = vxor.u32 %v3400, 2147483648
        %v3403 = vxor.u32 %v3401, 2147483648
        %v3404 = vmul.f32 %v3402, 1.442695
        %v3405 = vpow.pop %v3404
        %v3406 = vmul.f32 %v3403, 1.442695
        %v3407 = vpow.pop %v3406
        %v3408 = vadd.f32 %v3405, 1.0
        %v3409 = vadd.f32 %v3407, 1.0
        %v3410 = vrcp.pop %v3408
        %v3411 = vmul.f32 %v3408, %v3410
        %v3412 = vsub.f32 1.0, %v3411
        %v3413 = vmul.f32 %v3410, %v3412
        %v3414 = vadd.f32 %v3410, %v3413
        %vm3415 = vweird.f32 %v3408
        %vm3416 = vweird.f32 %v3410
        %vm3417 = vmor %vm3415, %vm3416
        %v3418 = vsel %vm3417, %v3410, %v3414
        %v3419 = vand.u32 2147483647, %v3408
        %vm3420 = vcmp.eq.f32.partialorder %v3419, 8.507059e+37
        %v3421 = vand.u32 %v3408, 2147483648
        %v3422 = vor.u32 1.1754944e-38, %v3421
        %v3423 = vsel %vm3420, %v3422, %v3418
        %v3424 = vmul.f32 1.0, %v3423
        %v3425 = vrcp.pop %v3409
        %v3426 = vmul.f32 %v3409, %v3425
        %v3427 = vsub.f32 1.0, %v3426
        %v3428 = vmul.f32 %v3425, %v3427
        %v3429 = vadd.f32 %v3425, %v3428
        %vm3430 = vweird.f32 %v3409
        %vm3431 = vweird.f32 %v3425
        %vm3432 = vmor %vm3430, %vm3431
        %v3433 = vsel %vm3432, %v3425, %v3429
        %v3434 = vand.u32 2147483647, %v3409
        %vm3435 = vcmp.eq.f32.partialorder %v3434, 8.507059e+37
        %v3436 = vand.u32 %v3409, 2147483648
        %v3437 = vor.u32 1.1754944e-38, %v3436
        %v3438 = vsel %vm3435, %v3437, %v3433
        %v3439 = vmul.f32 1.0, %v3438
        %v3440 = vmul.f32 %v3384, %v3424
        %v3441 = vmul.f32 %v3397, %v3439
        %v3442 = vpack.c.bf16 %v3440, %v3440
        %v3443 = vpack.c.bf16 %v3441, %v3441
        %s3444 = scalar_lea.vmem %s12, 512
        %v3445 = vld [vmem:[%s3444] sm:$0xf]
        %v3446 = vld [vmem:[%s3444 + $0x4] sm:$0xf]
        %v3447 = vld [vmem:[%s3444 + $0x8] sm:$0xf]
        %v3448 = vld [vmem:[%s3444 + $0xc] sm:$0xf]
        %v3449 = vld [vmem:[%s3444 + $0x10] sm:$0xf]
        %v3450 = vld [vmem:[%s3444 + $0x14] sm:$0xf]
        %v3451 = vld [vmem:[%s3444 + $0x18] sm:$0xf]
        %v3452 = vld [vmem:[%s3444 + $0x1c] sm:$0xf]
        %v3453 = vld [vmem:[%s3444 + $0x20] sm:$0xf]
        %v3454 = vld [vmem:[%s3444 + $0x24] sm:$0xf]
        %v3455 = vld [vmem:[%s3444 + $0x28] sm:$0xf]
        %v3456 = vld [vmem:[%s3444 + $0x2c] sm:$0xf]
        %v3457 = vld [vmem:[%s3444 + $0x30] sm:$0xf]
        %v3458 = vld [vmem:[%s3444 + $0x34] sm:$0xf]
        %v3459 = vld [vmem:[%s3444 + $0x38] sm:$0xf]
        %v3460 = vld [vmem:[%s3444 + $0x3c] sm:$0xf]
        %v3461 = vld [vmem:[%s3444 + $0x40] sm:$0xf]
        %v3462 = vld [vmem:[%s3444 + $0x44] sm:$0xf]
        %v3463 = vld [vmem:[%s3444 + $0x48] sm:$0xf]
        %v3464 = vld [vmem:[%s3444 + $0x4c] sm:$0xf]
        %v3465 = vld [vmem:[%s3444 + $0x50] sm:$0xf]
        %v3466 = vld [vmem:[%s3444 + $0x54] sm:$0xf]
        %v3467 = vld [vmem:[%s3444 + $0x58] sm:$0xf]
        %v3468 = vld [vmem:[%s3444 + $0x5c] sm:$0xf]
        %v3469 = vld [vmem:[%s3444 + $0x60] sm:$0xf]
        %v3470 = vld [vmem:[%s3444 + $0x64] sm:$0xf]
        %v3471 = vld [vmem:[%s3444 + $0x68] sm:$0xf]
        %v3472 = vld [vmem:[%s3444 + $0x6c] sm:$0xf]
        %v3473 = vld [vmem:[%s3444 + $0x70] sm:$0xf]
        %v3474 = vld [vmem:[%s3444 + $0x74] sm:$0xf]
        %v3475 = vld [vmem:[%s3444 + $0x78] sm:$0xf]
        %v3476 = vld [vmem:[%s3444 + $0x7c] sm:$0xf]
        %v3509 = vunpack.c.l.b16 %v3445
        %v3510 = vunpack.c.l.b16 %v3446
        %v3511 = vunpack.c.l.b16 %v3447
        %v3512 = vunpack.c.l.b16 %v3448
        %v3513 = vunpack.c.l.b16 %v3449
        %v3514 = vunpack.c.l.b16 %v3450
        %v3515 = vunpack.c.l.b16 %v3451
        %v3516 = vunpack.c.l.b16 %v3452
        %v3517 = vunpack.c.l.b16 %v3453
        %v3518 = vunpack.c.l.b16 %v3454
        %v3519 = vunpack.c.l.b16 %v3455
        %v3520 = vunpack.c.l.b16 %v3456
        %v3521 = vunpack.c.l.b16 %v3457
        %v3522 = vunpack.c.l.b16 %v3458
        %v3523 = vunpack.c.l.b16 %v3459
        %v3524 = vunpack.c.l.b16 %v3460
        %v3525 = vunpack.c.l.b16 %v3461
        %v3526 = vunpack.c.l.b16 %v3462
        %v3527 = vunpack.c.l.b16 %v3463
        %v3528 = vunpack.c.l.b16 %v3464
        %v3529 = vunpack.c.l.b16 %v3465
        %v3530 = vunpack.c.l.b16 %v3466
        %v3531 = vunpack.c.l.b16 %v3467
        %v3532 = vunpack.c.l.b16 %v3468
        %v3533 = vunpack.c.l.b16 %v3469
        %v3534 = vunpack.c.l.b16 %v3470
        %v3535 = vunpack.c.l.b16 %v3471
        %v3536 = vunpack.c.l.b16 %v3472
        %v3537 = vunpack.c.l.b16 %v3473
        %v3538 = vunpack.c.l.b16 %v3474
        %v3539 = vunpack.c.l.b16 %v3475
        %v3540 = vunpack.c.l.b16 %v3476
        %v3541 = vpack.c.b16 %v3510, %v3509
        %v3542 = vpack.c.b16 %v3512, %v3511
        %v3543 = vpack.c.b16 %v3514, %v3513
        %v3544 = vpack.c.b16 %v3516, %v3515
        %v3545 = vpack.c.b16 %v3518, %v3517
        %v3546 = vpack.c.b16 %v3520, %v3519
        %v3547 = vpack.c.b16 %v3522, %v3521
        %v3548 = vpack.c.b16 %v3524, %v3523
        %v3549 = vpack.c.b16 %v3526, %v3525
        %v3550 = vpack.c.b16 %v3528, %v3527
        %v3551 = vpack.c.b16 %v3530, %v3529
        %v3552 = vpack.c.b16 %v3532, %v3531
        %v3553 = vpack.c.b16 %v3534, %v3533
        %v3554 = vpack.c.b16 %v3536, %v3535
        %v3555 = vpack.c.b16 %v3538, %v3537
        %v3556 = vpack.c.b16 %v3540, %v3539
        %3573 = vmatpush.bf16.msra.mxu0 %v3548
        %3574 = vmatpush.bf16.msra.mxu0 %v3547
        %3575 = vmatpush.bf16.msra.mxu0 %v3546
        %3576 = vmatpush.bf16.msra.mxu0 %v3545
        %3577 = vmatpush.bf16.msra.mxu0 %v3544
        %3578 = vmatpush.bf16.msra.mxu0 %v3543
        %3579 = vmatpush.bf16.msra.mxu0 %v3542
        %3580 = vmatpush.bf16.msra.mxu0 %v3541
        %3581 = vmatmul.bf16.gmra.mxu0 %v3442
        %v3582 = vpop.f32.mrf.mxu0
        %v3583 = vadd.f32 0.0, %v3582
        %v3584 = vpop.f32.mrf.mxu0
        %3585 = vdwg.mxu0
        %3586 = vmatpush.bf16.msra.mxu0 %v3556
        %3587 = vmatpush.bf16.msra.mxu0 %v3555
        %3588 = vmatpush.bf16.msra.mxu0 %v3554
        %3589 = vmatpush.bf16.msra.mxu0 %v3553
        %3590 = vmatpush.bf16.msra.mxu0 %v3552
        %3591 = vmatpush.bf16.msra.mxu0 %v3551
        %3592 = vmatpush.bf16.msra.mxu0 %v3550
        %3593 = vmatpush.bf16.msra.mxu0 %v3549
        %3594 = vmatmul.bf16.gmra.mxu0 %v3443
        %v3595 = vpop.f32.mrf.mxu0
        %v3596 = vadd.f32 %v3583, %v3595
        %v3597 = vpop.f32.mrf.mxu0
        %3598 = vdwg.mxu0
        %v3599 = vadd.f32 %v3285, %v3596
        %v3600 = vld [vmem:[%s13 + $0x4] sm:$0x1]
        %v3601 = vperm.slane %v3600, 0
        %v3602 = vadd.f32 %v3599, %v3601
        %v3603 = vld [vmem:[#allocation7 + $0x5] sm:$0x1]
        %v3604 = vld [vmem:[#allocation8 + $0x5] sm:$0x1]
        %v3605 = vsel %vm606, %v3602, 0.0
        %3606 = vadd.xlane.f32.xlu0 %v3605
        %v3607 = vpop.xlane.xlu0 %3606
        %v3608 = vmul.f32 %v3607, %v616
        %v3609 = vsub.f32 %v3602, %v3608
        %v3610 = vmul.f32 %v3609, %v3609
        %v3611 = vsel %vm606, %v3610, 0.0
        %3612 = vadd.xlane.f32.xlu0 %v3611
        %v3613 = vpop.xlane.xlu0 %3612
        %v3614 = vmul.f32 %v3613, %v616
        %v3615 = vadd.f32 %v3614, 1e-12
        %v3616 = vrsqrt.pop %v3615
        %v3617 = vmul.f32 %v3616, %v3615
        %v3618 = vmul.f32 %v3617, %v3616
        %v3619 = vmul.f32 0.5, %v3618
        %v3620 = vsub.f32 1.5, %v3619
        %v3621 = vmul.f32 %v3616, %v3620
        %vm3622 = vweird.f32 %v3615
        %vm3623 = vweird.f32 %v3616
        %vm3624 = vmor %vm3622, %vm3623
        %v3625 = vsel %vm3624, %v3616, %v3621
        %v3626 = vmul.f32 %v3609, %v3625
        %v3627 = vperm.slane %v3603, 0
        %v3628 = vmul.f32 %v3627, %v3626
        %v3629 = vperm.slane %v3604, 0
        %v3630 = vadd.f32 %v3628, %v3629
        %v3631 = vpack.c.bf16 %v3630, %v3630
        %s3632 = scalar_lea.vmem %s4, 480
        %v3633 = vld [vmem:[%s3632] sm:$0xff]
        %v3634 = vld [vmem:[%s3632 + $0x8] sm:$0xf]
        %v3635 = vld [vmem:[%s3632 + $0xc] sm:$0xff]
        %v3636 = vld [vmem:[%s3632 + $0x14] sm:$0xf]
        %v3637 = vld [vmem:[%s3632 + $0x18] sm:$0xff]
        %v3638 = vld [vmem:[%s3632 + $0x20] sm:$0xf]
        %v3639 = vld [vmem:[%s3632 + $0x24] sm:$0xff]
        %v3640 = vld [vmem:[%s3632 + $0x2c] sm:$0xf]
        %v3641 = vld [vmem:[%s3632 + $0x30] sm:$0xff]
        %v3642 = vld [vmem:[%s3632 + $0x38] sm:$0xf]
        %v3643 = vld [vmem:[%s3632 + $0x3c] sm:$0xff]
        %v3644 = vld [vmem:[%s3632 + $0x44] sm:$0xf]
        %v3645 = vld [vmem:[%s3632 + $0x48] sm:$0xff]
        %v3646 = vld [vmem:[%s3632 + $0x50] sm:$0xf]
        %v3647 = vld [vmem:[%s3632 + $0x54] sm:$0xff]
        %v3648 = vld [vmem:[%s3632 + $0x5c] sm:$0xf]
        %s3649 = scalar_lea.vmem [#allocation10], 5
        %v3650 = vld [vmem:[%s3649] ss:$8 sm:$0x7]
        %v3652 = vperm.slane %v3650, 0
        %v3653 = vperm.slane %v3650, 1
        %v3654 = vperm.slane %v3650, 2
        %v3674 = vunpack.c.l.b16 %v3633
        %v3675 = vunpack.c.h.b16 %v3633
        %v3676 = vunpack.c.l.b16 %v3634
        %v3677 = vunpack.c.l.b16 %v3635
        %v3678 = vunpack.c.h.b16 %v3635
        %v3679 = vunpack.c.l.b16 %v3636
        %v3680 = vunpack.c.l.b16 %v3637
        %v3681 = vunpack.c.h.b16 %v3637
        %v3682 = vunpack.c.l.b16 %v3638
        %v3683 = vunpack.c.l.b16 %v3639
        %v3684 = vunpack.c.h.b16 %v3639
        %v3685 = vunpack.c.l.b16 %v3640
        %v3686 = vunpack.c.l.b16 %v3641
        %v3687 = vunpack.c.h.b16 %v3641
        %v3688 = vunpack.c.l.b16 %v3642
        %v3689 = vunpack.c.l.b16 %v3643
        %v3690 = vunpack.c.h.b16 %v3643
        %v3691 = vunpack.c.l.b16 %v3644
        %v3692 = vunpack.c.l.b16 %v3645
        %v3693 = vunpack.c.h.b16 %v3645
        %v3694 = vunpack.c.l.b16 %v3646
        %v3695 = vunpack.c.l.b16 %v3647
        %v3696 = vunpack.c.h.b16 %v3647
        %v3697 = vunpack.c.l.b16 %v3648
        %v3698 = vpack.c.b16 %v3677, %v3674
        %v3699 = vpack.c.b16 %v3678, %v3675
        %v3700 = vpack.c.b16 %v3679, %v3676
        %v3701 = vpack.c.b16 %v3683, %v3680
        %v3702 = vpack.c.b16 %v3684, %v3681
        %v3703 = vpack.c.b16 %v3685, %v3682
        %v3704 = vpack.c.b16 %v3689, %v3686
        %v3705 = vpack.c.b16 %v3690, %v3687
        %v3706 = vpack.c.b16 %v3691, %v3688
        %v3707 = vpack.c.b16 %v3695, %v3692
        %v3708 = vpack.c.b16 %v3696, %v3693
        %v3709 = vpack.c.b16 %v3697, %v3694
        %v3723 = vsel %vm606, %v3631, 0
        %3725 = vmatpush.bf16.msra.mxu0 0
        %3726 = vmatpush.bf16.msra.mxu0 0
        %3727 = vmatpush.bf16.msra.mxu0 0
        %3728 = vmatpush.bf16.msra.mxu0 0
        %3729 = vmatpush.bf16.msra.mxu0 %v3707
        %3730 = vmatpush.bf16.msra.mxu0 %v3704
        %3731 = vmatpush.bf16.msra.mxu0 %v3701
        %3732 = vmatpush.bf16.msra.mxu0 %v3698
        %3733 = vmatmul.bf16.gmra.mxu0 %v3723
        %v3734 = vpop.f32.mrf.mxu0
        %v3735 = vadd.f32 %v3652, %v3734
        %v3736 = vpop.f32.mrf.mxu0
        %3737 = vdwg.mxu0
        %3738 = vmatpush.bf16.msra.mxu0 0
        %3739 = vmatpush.bf16.msra.mxu0 0
        %3740 = vmatpush.bf16.msra.mxu0 0
        %3741 = vmatpush.bf16.msra.mxu0 0
        %3742 = vmatpush.bf16.msra.mxu0 %v3708
        %3743 = vmatpush.bf16.msra.mxu0 %v3705
        %3744 = vmatpush.bf16.msra.mxu0 %v3702
        %3745 = vmatpush.bf16.msra.mxu0 %v3699
        %3746 = vmatmul.bf16.gmra.mxu0 %v3723
        %v3747 = vpop.f32.mrf.mxu0
        %v3748 = vadd.f32 %v3653, %v3747
        %v3749 = vpop.f32.mrf.mxu0
        %3750 = vdwg.mxu0
        %3751 = vmatpush.bf16.msra.mxu0 0
        %3752 = vmatpush.bf16.msra.mxu0 0
        %3753 = vmatpush.bf16.msra.mxu0 0
        %3754 = vmatpush.bf16.msra.mxu0 0
        %3755 = vmatpush.bf16.msra.mxu0 %v3709
        %3756 = vmatpush.bf16.msra.mxu0 %v3706
        %3757 = vmatpush.bf16.msra.mxu0 %v3703
        %3758 = vmatpush.bf16.msra.mxu0 %v3700
        %3759 = vmatmul.bf16.gmra.mxu0 %v3723
        %v3760 = vpop.f32.mrf.mxu0
        %v3761 = vadd.f32 %v3654, %v3760
        %v3762 = vpop.f32.mrf.mxu0
        %3763 = vdwg.mxu0
        %v3764 = vmul.f32 %v3735, 0.125
        %v3765 = vpack.c.bf16 %v3764, %v3764
        %v3766 = vpack.c.bf16 %v3748, %v3748
        %v3768 = vsel %vm606, %v3765, 0
        %v3771 = vsel %vm606, %v3766, 0
        %3773 = vmatpush.bf16.xpose.msra.mxu0 0
        %3774 = vmatpush.bf16.xpose.msra.mxu0 0
        %3775 = vmatpush.bf16.xpose.msra.mxu0 0
        %3776 = vmatpush.bf16.xpose.msra.mxu0 0
        %3777 = vmatpush.bf16.xpose.msra.mxu0 0
        %3778 = vmatpush.bf16.xpose.msra.mxu0 0
        %3779 = vmatpush.bf16.xpose.msra.mxu0 0
        %3780 = vmatpush.bf16.xpose.msra.mxu0 %v3771
        %3781 = vmatmul.bf16.gmra.mxu0 %v3768
        %v3782 = vpop.f32.mrf.mxu0
        %v3783 = vadd.f32 0.0, %v3782
        %v3784 = vpop.f32.mrf.mxu0
        %3785 = vdwg.mxu0
        %v3786 = vsel %vm793, %v3783, -inf
        %3787 = vmax.xlane.f32.xlu0 %v3786
        %v3788 = vpop.xlane.xlu0 %3787
        %v3789 = vsub.f32 %v3783, %v3788
        %v3790 = vmul.f32 %v3789, 1.442695
        %v3791 = vpow.pop %v3790
        %v3792 = vsel %vm793, %v3791, 0.0
        %3793 = vadd.xlane.f32.xlu0 %v3792
        %v3794 = vpop.xlane.xlu0 %3793
        %v3795 = vrcp.pop %v3794
        %v3796 = vmul.f32 %v3794, %v3795
        %v3797 = vsub.f32 1.0, %v3796
        %v3798 = vmul.f32 %v3795, %v3797
        %v3799 = vadd.f32 %v3795, %v3798
        %vm3800 = vweird.f32 %v3794
        %vm3801 = vweird.f32 %v3795
        %vm3802 = vmor %vm3800, %vm3801
        %v3803 = vsel %vm3802, %v3795, %v3799
        %v3804 = vand.u32 2147483647, %v3794
        %vm3805 = vcmp.eq.f32.partialorder %v3804, 8.507059e+37
        %v3806 = vand.u32 %v3794, 2147483648
        %v3807 = vor.u32 1.1754944e-38, %v3806
        %v3808 = vsel %vm3805, %v3807, %v3803
        %v3809 = vmul.f32 %v3791, %v3808
        %v3810 = vpack.c.bf16 %v3809, %v3809
        %v3811 = vpack.c.bf16 %v3761, %v3761
        %v3813 = vsel %vm793, %v3810, 0
        %v3816 = vsel %vm823, %v3811, 0
        %3818 = vmatpush.bf16.msra.mxu0 0
        %3819 = vmatpush.bf16.msra.mxu0 0
        %3820 = vmatpush.bf16.msra.mxu0 0
        %3821 = vmatpush.bf16.msra.mxu0 0
        %3822 = vmatpush.bf16.msra.mxu0 0
        %3823 = vmatpush.bf16.msra.mxu0 0
        %3824 = vmatpush.bf16.msra.mxu0 0
        %3825 = vmatpush.bf16.msra.mxu0 %v3816
        %3826 = vmatmul.bf16.gmra.mxu0 %v3813
        %v3827 = vpop.f32.mrf.mxu0
        %v3828 = vadd.f32 0.0, %v3827
        %v3829 = vpop.f32.mrf.mxu0
        %3830 = vdwg.mxu0
        %v3831 = vpack.c.bf16 %v3828, %v3828
        %s3832 = scalar_lea.vmem %s6, 160
        %v3833 = vld [vmem:[%s3832] sm:$0xf]
        %v3834 = vld [vmem:[%s3832 + $0x4] sm:$0xf]
        %v3835 = vld [vmem:[%s3832 + $0x8] sm:$0xf]
        %v3836 = vld [vmem:[%s3832 + $0xc] sm:$0xf]
        %v3837 = vld [vmem:[%s3832 + $0x10] sm:$0xf]
        %v3838 = vld [vmem:[%s3832 + $0x14] sm:$0xf]
        %v3839 = vld [vmem:[%s3832 + $0x18] sm:$0xf]
        %v3840 = vld [vmem:[%s3832 + $0x1c] sm:$0xf]
        %v3849 = vunpack.c.l.b16 %v3833
        %v3850 = vunpack.c.l.b16 %v3834
        %v3851 = vunpack.c.l.b16 %v3835
        %v3852 = vunpack.c.l.b16 %v3836
        %v3853 = vunpack.c.l.b16 %v3837
        %v3854 = vunpack.c.l.b16 %v3838
        %v3855 = vunpack.c.l.b16 %v3839
        %v3856 = vunpack.c.l.b16 %v3840
        %v3857 = vpack.c.b16 %v3850, %v3849
        %v3858 = vpack.c.b16 %v3852, %v3851
        %v3859 = vpack.c.b16 %v3854, %v3853
        %v3860 = vpack.c.b16 %v3856, %v3855
        %v3866 = vsel %vm606, %v3831, 0
        %3868 = vmatpush.bf16.msra.mxu0 0
        %3869 = vmatpush.bf16.msra.mxu0 0
        %3870 = vmatpush.bf16.msra.mxu0 0
        %3871 = vmatpush.bf16.msra.mxu0 0
        %3872 = vmatpush.bf16.msra.mxu0 %v3860
        %3873 = vmatpush.bf16.msra.mxu0 %v3859
        %3874 = vmatpush.bf16.msra.mxu0 %v3858
        %3875 = vmatpush.bf16.msra.mxu0 %v3857
        %3876 = vmatmul.bf16.gmra.mxu0 %v3866
        %v3877 = vpop.f32.mrf.mxu0
        %v3878 = vadd.f32 0.0, %v3877
        %v3879 = vpop.f32.mrf.mxu0
        %3880 = vdwg.mxu0
        %v3881 = vadd.f32 %v3602, %v3878
        %v3882 = vld [vmem:[#allocation11 + $0x5] sm:$0x1]
        %v3883 = vperm.slane %v3882, 0
        %v3884 = vadd.f32 %v3881, %v3883
        %v3885 = vld [vmem:[#allocation13 + $0x5] sm:$0x1]
        %v3886 = vld [vmem:[#allocation14 + $0x5] sm:$0x1]
        %v3887 = vsel %vm606, %v3884, 0.0
        %3888 = vadd.xlane.f32.xlu0 %v3887
        %v3889 = vpop.xlane.xlu0 %3888
        %v3890 = vmul.f32 %v3889, %v616
        %v3891 = vsub.f32 %v3884, %v3890
        %v3892 = vmul.f32 %v3891, %v3891
        %v3893 = vsel %vm606, %v3892, 0.0
        %3894 = vadd.xlane.f32.xlu0 %v3893
        %v3895 = vpop.xlane.xlu0 %3894
        %v3896 = vmul.f32 %v3895, %v616
        %v3897 = vadd.f32 %v3896, 1e-12
        %v3898 = vrsqrt.pop %v3897
        %v3899 = vmul.f32 %v3898, %v3897
        %v3900 = vmul.f32 %v3899, %v3898
        %v3901 = vmul.f32 0.5, %v3900
        %v3902 = vsub.f32 1.5, %v3901
        %v3903 = vmul.f32 %v3898, %v3902
        %vm3904 = vweird.f32 %v3897
        %vm3905 = vweird.f32 %v3898
        %vm3906 = vmor %vm3904, %vm3905
        %v3907 = vsel %vm3906, %v3898, %v3903
        %v3908 = vmul.f32 %v3891, %v3907
        %v3909 = vperm.slane %v3885, 0
        %v3910 = vmul.f32 %v3909, %v3908
        %v3911 = vperm.slane %v3886, 0
        %v3912 = vadd.f32 %v3910, %v3911
        %v3913 = vpack.c.bf16 %v3912, %v3912
        %s3914 = scalar_lea.vmem %s10, 320
        %v3915 = vld [vmem:[%s3914] sm:$0xff]
        %v3916 = vld [vmem:[%s3914 + $0x8] sm:$0xff]
        %v3917 = vld [vmem:[%s3914 + $0x10] sm:$0xff]
        %v3918 = vld [vmem:[%s3914 + $0x18] sm:$0xff]
        %v3919 = vld [vmem:[%s3914 + $0x20] sm:$0xff]
        %v3920 = vld [vmem:[%s3914 + $0x28] sm:$0xff]
        %v3921 = vld [vmem:[%s3914 + $0x30] sm:$0xff]
        %v3922 = vld [vmem:[%s3914 + $0x38] sm:$0xff]
        %s3923 = scalar_lea.vmem [#allocation16], 5
        %v3924 = vld [vmem:[%s3923] ss:$8 sm:$0x3]
        %v3926 = vperm.slane %v3924, 0
        %v3927 = vperm.slane %v3924, 1
        %v3938 = vunpack.c.l.b16 %v3915
        %v3939 = vunpack.c.h.b16 %v3915
        %v3940 = vunpack.c.l.b16 %v3916
        %v3941 = vunpack.c.h.b16 %v3916
        %v3942 = vunpack.c.l.b16 %v3917
        %v3943 = vunpack.c.h.b16 %v3917
        %v3944 = vunpack.c.l.b16 %v3918
        %v3945 = vunpack.c.h.b16 %v3918
        %v3946 = vunpack.c.l.b16 %v3919
        %v3947 = vunpack.c.h.b16 %v3919
        %v3948 = vunpack.c.l.b16 %v3920
        %v3949 = vunpack.c.h.b16 %v3920
        %v3950 = vunpack.c.l.b16 %v3921
        %v3951 = vunpack.c.h.b16 %v3921
        %v3952 = vunpack.c.l.b16 %v3922
        %v3953 = vunpack.c.h.b16 %v3922
        %v3954 = vpack.c.b16 %v3940, %v3938
        %v3955 = vpack.c.b16 %v3941, %v3939
        %v3956 = vpack.c.b16 %v3944, %v3942
        %v3957 = vpack.c.b16 %v3945, %v3943
        %v3958 = vpack.c.b16 %v3948, %v3946
        %v3959 = vpack.c.b16 %v3949, %v3947
        %v3960 = vpack.c.b16 %v3952, %v3950
        %v3961 = vpack.c.b16 %v3953, %v3951
        %v3971 = vsel %vm606, %v3913, 0
        %3973 = vmatpush.bf16.msra.mxu0 0
        %3974 = vmatpush.bf16.msra.mxu0 0
        %3975 = vmatpush.bf16.msra.mxu0 0
        %3976 = vmatpush.bf16.msra.mxu0 0
        %3977 = vmatpush.bf16.msra.mxu0 %v3960
        %3978 = vmatpush.bf16.msra.mxu0 %v3958
        %3979 = vmatpush.bf16.msra.mxu0 %v3956
        %3980 = vmatpush.bf16.msra.mxu0 %v3954
        %3981 = vmatmul.bf16.gmra.mxu0 %v3971
        %v3982 = vpop.f32.mrf.mxu0
        %v3983 = vadd.f32 %v3926, %v3982
        %v3984 = vpop.f32.mrf.mxu0
        %3985 = vdwg.mxu0
        %3986 = vmatpush.bf16.msra.mxu0 0
        %3987 = vmatpush.bf16.msra.mxu0 0
        %3988 = vmatpush.bf16.msra.mxu0 0
        %3989 = vmatpush.bf16.msra.mxu0 0
        %3990 = vmatpush.bf16.msra.mxu0 %v3961
        %3991 = vmatpush.bf16.msra.mxu0 %v3959
        %3992 = vmatpush.bf16.msra.mxu0 %v3957
        %3993 = vmatpush.bf16.msra.mxu0 %v3955
        %3994 = vmatmul.bf16.gmra.mxu0 %v3971
        %v3995 = vpop.f32.mrf.mxu0
        %v3996 = vadd.f32 %v3927, %v3995
        %v3997 = vpop.f32.mrf.mxu0
        %3998 = vdwg.mxu0
        %v3999 = vmul.f32 %v3983, 1.702
        %v4000 = vmul.f32 %v3996, 1.702
        %v4001 = vxor.u32 %v3999, 2147483648
        %v4002 = vxor.u32 %v4000, 2147483648
        %v4003 = vmul.f32 %v4001, 1.442695
        %v4004 = vpow.pop %v4003
        %v4005 = vmul.f32 %v4002, 1.442695
        %v4006 = vpow.pop %v4005
        %v4007 = vadd.f32 %v4004, 1.0
        %v4008 = vadd.f32 %v4006, 1.0
        %v4009 = vrcp.pop %v4007
        %v4010 = vmul.f32 %v4007, %v4009
        %v4011 = vsub.f32 1.0, %v4010
        %v4012 = vmul.f32 %v4009, %v4011
        %v4013 = vadd.f32 %v4009, %v4012
        %vm4014 = vweird.f32 %v4007
        %vm4015 = vweird.f32 %v4009
        %vm4016 = vmor %vm4014, %vm4015
        %v4017 = vsel %vm4016, %v4009, %v4013
        %v4018 = vand.u32 2147483647, %v4007
        %vm4019 = vcmp.eq.f32.partialorder %v4018, 8.507059e+37
        %v4020 = vand.u32 %v4007, 2147483648
        %v4021 = vor.u32 1.1754944e-38, %v4020
        %v4022 = vsel %vm4019, %v4021, %v4017
        %v4023 = vmul.f32 1.0, %v4022
        %v4024 = vrcp.pop %v4008
        %v4025 = vmul.f32 %v4008, %v4024
        %v4026 = vsub.f32 1.0, %v4025
        %v4027 = vmul.f32 %v4024, %v4026
        %v4028 = vadd.f32 %v4024, %v4027
        %vm4029 = vweird.f32 %v4008
        %vm4030 = vweird.f32 %v4024
        %vm4031 = vmor %vm4029, %vm4030
        %v4032 = vsel %vm4031, %v4024, %v4028
        %v4033 = vand.u32 2147483647, %v4008
        %vm4034 = vcmp.eq.f32.partialorder %v4033, 8.507059e+37
        %v4035 = vand.u32 %v4008, 2147483648
        %v4036 = vor.u32 1.1754944e-38, %v4035
        %v4037 = vsel %vm4034, %v4036, %v4032
        %v4038 = vmul.f32 1.0, %v4037
        %v4039 = vmul.f32 %v3983, %v4023
        %v4040 = vmul.f32 %v3996, %v4038
        %v4041 = vpack.c.bf16 %v4039, %v4039
        %v4042 = vpack.c.bf16 %v4040, %v4040
        %s4043 = scalar_lea.vmem %s12, 640
        %v4044 = vld [vmem:[%s4043] sm:$0xf]
        %v4045 = vld [vmem:[%s4043 + $0x4] sm:$0xf]
        %v4046 = vld [vmem:[%s4043 + $0x8] sm:$0xf]
        %v4047 = vld [vmem:[%s4043 + $0xc] sm:$0xf]
        %v4048 = vld [vmem:[%s4043 + $0x10] sm:$0xf]
        %v4049 = vld [vmem:[%s4043 + $0x14] sm:$0xf]
        %v4050 = vld [vmem:[%s4043 + $0x18] sm:$0xf]
        %v4051 = vld [vmem:[%s4043 + $0x1c] sm:$0xf]
        %v4052 = vld [vmem:[%s4043 + $0x20] sm:$0xf]
        %v4053 = vld [vmem:[%s4043 + $0x24] sm:$0xf]
        %v4054 = vld [vmem:[%s4043 + $0x28] sm:$0xf]
        %v4055 = vld [vmem:[%s4043 + $0x2c] sm:$0xf]
        %v4056 = vld [vmem:[%s4043 + $0x30] sm:$0xf]
        %v4057 = vld [vmem:[%s4043 + $0x34] sm:$0xf]
        %v4058 = vld [vmem:[%s4043 + $0x38] sm:$0xf]
        %v4059 = vld [vmem:[%s4043 + $0x3c] sm:$0xf]
        %v4060 = vld [vmem:[%s4043 + $0x40] sm:$0xf]
        %v4061 = vld [vmem:[%s4043 + $0x44] sm:$0xf]
        %v4062 = vld [vmem:[%s4043 + $0x48] sm:$0xf]
        %v4063 = vld [vmem:[%s4043 + $0x4c] sm:$0xf]
        %v4064 = vld [vmem:[%s4043 + $0x50] sm:$0xf]
        %v4065 = vld [vmem:[%s4043 + $0x54] sm:$0xf]
        %v4066 = vld [vmem:[%s4043 + $0x58] sm:$0xf]
        %v4067 = vld [vmem:[%s4043 + $0x5c] sm:$0xf]
        %v4068 = vld [vmem:[%s4043 + $0x60] sm:$0xf]
        %v4069 = vld [vmem:[%s4043 + $0x64] sm:$0xf]
        %v4070 = vld [vmem:[%s4043 + $0x68] sm:$0xf]
        %v4071 = vld [vmem:[%s4043 + $0x6c] sm:$0xf]
        %v4072 = vld [vmem:[%s4043 + $0x70] sm:$0xf]
        %v4073 = vld [vmem:[%s4043 + $0x74] sm:$0xf]
        %v4074 = vld [vmem:[%s4043 + $0x78] sm:$0xf]
        %v4075 = vld [vmem:[%s4043 + $0x7c] sm:$0xf]
        %v4108 = vunpack.c.l.b16 %v4044
        %v4109 = vunpack.c.l.b16 %v4045
        %v4110 = vunpack.c.l.b16 %v4046
        %v4111 = vunpack.c.l.b16 %v4047
        %v4112 = vunpack.c.l.b16 %v4048
        %v4113 = vunpack.c.l.b16 %v4049
        %v4114 = vunpack.c.l.b16 %v4050
        %v4115 = vunpack.c.l.b16 %v4051
        %v4116 = vunpack.c.l.b16 %v4052
        %v4117 = vunpack.c.l.b16 %v4053
        %v4118 = vunpack.c.l.b16 %v4054
        %v4119 = vunpack.c.l.b16 %v4055
        %v4120 = vunpack.c.l.b16 %v4056
        %v4121 = vunpack.c.l.b16 %v4057
        %v4122 = vunpack.c.l.b16 %v4058
        %v4123 = vunpack.c.l.b16 %v4059
        %v4124 = vunpack.c.l.b16 %v4060
        %v4125 = vunpack.c.l.b16 %v4061
        %v4126 = vunpack.c.l.b16 %v4062
        %v4127 = vunpack.c.l.b16 %v4063
        %v4128 = vunpack.c.l.b16 %v4064
        %v4129 = vunpack.c.l.b16 %v4065
        %v4130 = vunpack.c.l.b16 %v4066
        %v4131 = vunpack.c.l.b16 %v4067
        %v4132 = vunpack.c.l.b16 %v4068
        %v4133 = vunpack.c.l.b16 %v4069
        %v4134 = vunpack.c.l.b16 %v4070
        %v4135 = vunpack.c.l.b16 %v4071
        %v4136 = vunpack.c.l.b16 %v4072
        %v4137 = vunpack.c.l.b16 %v4073
        %v4138 = vunpack.c.l.b16 %v4074
        %v4139 = vunpack.c.l.b16 %v4075
        %v4140 = vpack.c.b16 %v4109, %v4108
        %v4141 = vpack.c.b16 %v4111, %v4110
        %v4142 = vpack.c.b16 %v4113, %v4112
        %v4143 = vpack.c.b16 %v4115, %v4114
        %v4144 = vpack.c.b16 %v4117, %v4116
        %v4145 = vpack.c.b16 %v4119, %v4118
        %v4146 = vpack.c.b16 %v4121, %v4120
        %v4147 = vpack.c.b16 %v4123, %v4122
        %v4148 = vpack.c.b16 %v4125, %v4124
        %v4149 = vpack.c.b16 %v4127, %v4126
        %v4150 = vpack.c.b16 %v4129, %v4128
        %v4151 = vpack.c.b16 %v4131, %v4130
        %v4152 = vpack.c.b16 %v4133, %v4132
        %v4153 = vpack.c.b16 %v4135, %v4134
        %v4154 = vpack.c.b16 %v4137, %v4136
        %v4155 = vpack.c.b16 %v4139, %v4138
        %4172 = vmatpush.bf16.msra.mxu0 %v4147
        %4173 = vmatpush.bf16.msra.mxu0 %v4146
        %4174 = vmatpush.bf16.msra.mxu0 %v4145
        %4175 = vmatpush.bf16.msra.mxu0 %v4144
        %4176 = vmatpush.bf16.msra.mxu0 %v4143
        %4177 = vmatpush.bf16.msra.mxu0 %v4142
        %4178 = vmatpush.bf16.msra.mxu0 %v4141
        %4179 = vmatpush.bf16.msra.mxu0 %v4140
        %4180 = vmatmul.bf16.gmra.mxu0 %v4041
        %v4181 = vpop.f32.mrf.mxu0
        %v4182 = vadd.f32 0.0, %v4181
        %v4183 = vpop.f32.mrf.mxu0
        %4184 = vdwg.mxu0
        %4185 = vmatpush.bf16.msra.mxu0 %v4155
        %4186 = vmatpush.bf16.msra.mxu0 %v4154
        %4187 = vmatpush.bf16.msra.mxu0 %v4153
        %4188 = vmatpush.bf16.msra.mxu0 %v4152
        %4189 = vmatpush.bf16.msra.mxu0 %v4151
        %4190 = vmatpush.bf16.msra.mxu0 %v4150
        %4191 = vmatpush.bf16.msra.mxu0 %v4149
        %4192 = vmatpush.bf16.msra.mxu0 %v4148
        %4193 = vmatmul.bf16.gmra.mxu0 %v4042
        %v4194 = vpop.f32.mrf.mxu0
        %v4195 = vadd.f32 %v4182, %v4194
        %v4196 = vpop.f32.mrf.mxu0
        %4197 = vdwg.mxu0
        %v4198 = vadd.f32 %v3884, %v4195
        %v4199 = vld [vmem:[%s13 + $0x5] sm:$0x1]
        %v4200 = vperm.slane %v4199, 0
        %v4201 = vadd.f32 %v4198, %v4200
        %v4202 = vadd.f32 %v4201, %v601
        %v4203 = vsel %vm606, %v4202, 0.0
        %v4204 = vrot.slane %v4203, 4
        %v4205 = vadd.f32 %v4203, %v4204
        %v4206 = vrot.slane %v4205, 2
        %v4207 = vadd.f32 %v4205, %v4206
        %v4208 = vrot.slane %v4207, 1
        %v4209 = vadd.f32 %v4207, %v4208
        %v4210 = vmul.f32 %v4209, 0.125
        %vm4211 = vcmask 516096
        %4212 = vst.msk [vmem:[%s599] sm:$0x1] %vm4211, %v4210
        %s4213 = sand.u32 %s342, 1
        %s4214 = scalar_lea.sflag [#allocation4], %s4213
        %s4215 = sand.u32 %s342, 1
        %s4216 = scalar_lea.vmem [#allocation17], %s4215
        // Predicated region
        $region113: #{tpu_custom_call.1} parent=75 // pred_check
          %p4217 = pneg %p352
        $region114: #{tpu_custom_call.1} parent=75 // pred_check_branch
          %4219 = sbr.rel (%p4217) target = $region116
        $region115: #{tpu_custom_call.1} parent=75 // pred_region
          %4221 = vsyncadd %s4214, 0
          %s4222 = scalar_lea.hbm %s14, %s35
          %s4224 = sshll.u32 %s4216, 4
          %s4225 = int_to_ptr.vmem [resolvable:$true] %s4224
          %s4226 = sshll.u32 %s4222, 4
          %s4227 = int_to_ptr.hbm [resolvable:$true] %s4226
          %4229 = dma.vmem_to_hbm [thread:$0]  %s4225, 16, %s4227, %s4214
        $region116: #{tpu_custom_call.1} parent=75 // pred_fallthru
          _
      $region76: #{tpu_custom_call.1} parent=5 // pred_fallthru
        _
      %p4230 = scmp.le.s32.totalorder 2, %s30
      // Predicated region
      $region117: #{tpu_custom_call.1} parent=5 // pred_check
        %p4231 = pneg %p4230
      $region118: #{tpu_custom_call.1} parent=5 // pred_check_branch
        %4233 = sbr.rel (%p4231) target = $region120
      $region119: #{tpu_custom_call.1} parent=5 // pred_region
        %s4234 = ssub.s32 %s30, 2
        // Predicated region
        $region121: #{tpu_custom_call.1} parent=119 // pred_check
          %p4235 = pneg %p358
        $region122: #{tpu_custom_call.1} parent=119 // pred_check_branch
          %4237 = sbr.rel (%p4235) target = $region124
        $region123: #{tpu_custom_call.1} parent=119 // pred_region
          %s4238 = sand.u32 %s343, 1
          %s4239 = scalar_lea.sflag [#allocation4], %s4238
          %s4240 = sand.u32 %s343, 1
          %s4241 = scalar_lea.vmem [#allocation17], %s4240
          %4243 = dma.done %s4239, 16
        $region124: #{tpu_custom_call.1} parent=119 // pred_fallthru
          _
      $region120: #{tpu_custom_call.1} parent=5 // pred_fallthru
        _
    $region6: #{tpu_custom_call.1} parent=1 // loop_footer
      %s34 = sadd.s32 1, %s30
    $region7: #{tpu_custom_call.1} parent=1 // loop_footer_branch
      %29 = sbr.rel target = $region3
    $region8: #{tpu_custom_call.1} parent=1 // loop_exit
      _
    %4244 = vsyncpa [#allocation3], 1
    %s4245 = scalar_lea.sflag [#allocation3], 1
    %4246 = vsyncpa %s4245, 1
    %4247 = vsyncpa [#allocation6], 1
    %4248 = vsyncpa [#allocation9], 1
    %4249 = vsyncpa [#allocation12], 1
    %4250 = vsyncpa [#allocation15], 1
    %4251 = vsyncpa [#allocation4], 1
    %s4252 = scalar_lea.sflag [#allocation4], 1
    %4253 = vsyncpa %s4252, 1

</llo_original>
